<compile_context>
chip_gen: v5e
topology: v5e:2x2
jax: 0.10.0
libtpu: 0.0.40
codegen_flags: <defaults>
</compile_context>

<pallas_src>
import functools

import jax
import jax.numpy as jnp
from jax.experimental import pallas as pl
from jax.experimental.pallas import tpu as pltpu


# ----------------------------- Pallas kernel --------------------------------
def _ttc_encoder_kernel(
    x_ref,                                   # (nb, C_in, T) activations (bf16/f32)
    w10, w1a, w1b,                           # layer1: conv0, res.conv1(+bn1), res.conv2(+bn2)
    w20, w2a, w2b,                           # layer2
    w30, w3a, w3b,                           # layer3
    wc,                                      # final conv2
    b_ref,                                   # (sum_C, 1) f32 packed per-channel biases
    o_ref,                                   # (nb, 256, T)
    *, chans,
):
    c1, c2, c3 = chans
    nb = x_ref.shape[0]

    def conv(h, w_r, boff, cout):
        # 1x1 conv == channel matmul: (Cout, Cin) @ (Cin, T) + bias.
        # bf16 operands on the MXU, f32 accumulation; bias/ReLU/residual in f32.
        return (jnp.dot(w_r[...], h.astype(jnp.bfloat16),
                        preferred_element_type=jnp.float32)
                + b_ref[boff:boff + cout, :])

    def relu(v):
        return jnp.maximum(v, 0.0)

    def stage(h, w0, wa, wb, boff, c):
        t = conv(h, w0, boff, c)                 # layerN[0] conv (no norm in module)
        y = relu(conv(t, wa, boff + c, c))       # res conv1 + folded bn1 + relu
        y = relu(conv(y, wb, boff + 2 * c, c))   # res conv2 + folded bn2 + relu
        return relu(t + y)                       # residual add + relu

    off2 = 3 * c1
    off3 = off2 + 3 * c2
    off4 = off3 + 3 * c3

    for b in range(nb):                          # static unroll over images per block
        # x_ref[b] is used exactly once (first conv) -> no extra f32 temp.
        x1 = stage(x_ref[b], w10, w1a, w1b, 0, c1)    # (c1, T)
        x2 = stage(x1, w20, w2a, w2b, off2, c2)       # (c2, T)
        x3 = stage(x2, w30, w3a, w3b, off3, c3)       # (c3, T)
        x4 = conv(x3, wc, off4, c3)                   # (c3, T)

        # Channel-concat == contiguous sublane-slice stores (lane-dense).
        o_ref[b, 0:c1, :] = x1.astype(o_ref.dtype)
        o_ref[b, c1:c1 + c2, :] = x2.astype(o_ref.dtype)
        o_ref[b, c1 + c2:c1 + c2 + c3, :] = x3.astype(o_ref.dtype)
        o_ref[b, c1 + c2 + c3:c1 + c2 + 2 * c3, :] = x4.astype(o_ref.dtype)


# ------------------------------ Wrapper --------------------------------------
def _vmem_capacity_bytes():
    """Best-effort per-core VMEM query; conservative (v7x, 64 MiB) fallback."""
    try:
        return int(pltpu.get_tpu_info().vmem_capacity_bytes)
    except Exception:
        return 64 << 20


def _pick_tile_hw(hw_pad, max_tile):
    """Largest 128-multiple tile that divides hw_pad (hw_pad is a 128 multiple)."""
    if hw_pad <= max_tile:
        return hw_pad
    t = (max_tile // 128) * 128
    while t >= 128 and hw_pad % t:
        t -= 128
    return max(t, 128)


def ttc_encoder_forward(x_nchw, weights, bias_packed, *, output_dim=256,
                        max_tile_hw=None, out_dtype=jnp.bfloat16):
    """TTCEncoder forward.

    x_nchw: (N, C_in, H, W), NCHW.  bf16 preferred (the kernel is HBM-bound so
    bf16 I/O is the dominant lever); f32 also accepted, no extra cast pass is
    added either way.  Returns (N, output_dim, H, W) in `out_dtype` (bf16 by
    default; pass jnp.float32 if the consumer needs full precision).
    """
    n, c_in, h, w = x_nchw.shape
    c1, c2, c3 = output_dim // 2, output_dim // 4, output_dim // 8
    c_out = c1 + c2 + 2 * c3
    hw = h * w

    # NCHW kept native: (N, C, H, W) -> (N, C, H*W) is a free reshape (pixels
    # on the lane axis); no wrapper-side transpose passes.
    x_flat = x_nchw.reshape(n, c_in, hw)

    # Guarantee 128-multiple lane tiles (unmasked vst on the 256-row output
    # slab).  Pad pixels are zeros and get cropped after the kernel.
    hw_pad = ((hw + 127) // 128) * 128
    if hw_pad != hw:
        # TODO(synk): this zero-pad (and the crop below) is an extra HBM pass;
        #             only taken when H*W is not a multiple of 128.
        x_flat = jnp.pad(x_flat, ((0, 0), (0, 0), (0, hw_pad - hw)))

    vmem_cap = _vmem_capacity_bytes()
    if max_tile_hw is None:
        # v5e/v6e (128 MiB VMEM) afford larger lane tiles; keep 2048 on v7x (64 MiB).
        max_tile_hw = 4096 if vmem_cap >= (100 << 20) else 2048

    tile_hw = _pick_tile_hw(hw_pad, max_tile_hw)
    n_hw_tiles = hw_pad // tile_hw

    # v7x megacore: make sure there are >=2 grid items when N == 1.
    if n == 1 and n_hw_tiles < 2 and hw_pad >= 256:
        t = (hw_pad // 2 // 128) * 128
        while t >= 128 and hw_pad % t:
            t -= 128
        if t >= 128:
            tile_hw = t
            n_hw_tiles = hw_pad // tile_hw

    # Tiny-image case (whole image fits one tile): stack images per block to
    # amortize the ~0.35 us per-grid-step overhead, but keep >=2 grid items
    # (megacore) and a modest per-step input slab.
    nb = 1
    if tile_hw == hw_pad:
        for cand in range(2, n + 1):
            if n % cand:
                continue
            if cand * c_in * tile_hw * x_flat.dtype.itemsize > (4 << 20):
                continue
            if (n // cand) * n_hw_tiles >= 2:
                nb = cand

    grid = (n // nb, n_hw_tiles)

    params = (*weights, bias_packed)
    # All params are 2-D (weights (Cout, Cin) bf16, packed biases (sum_C, 1)
    # f32) and grid-invariant (constant index_map -> resident in VMEM).
    weight_specs = [pl.BlockSpec(p.shape, lambda i, j: (0, 0)) for p in params]
    weight_bytes = sum(p.size * p.dtype.itemsize for p in params)

    # VMEM sizing: actual need + headroom, never the whole physical VMEM
    # (v7x has only 64 MiB/TC).  Always leave >=16 MiB for compiler scratch.
    in_item = x_flat.dtype.itemsize
    out_item = jnp.dtype(out_dtype).itemsize
    vmem_need = (2 * nb * c_in * tile_hw * in_item        # input double-buffer
                 + 2 * nb * c_out * tile_hw * out_item    # output double-buffer
                 + 2 * weight_bytes                       # resident params
                 + nb * 8 * c1 * tile_hw * 4              # f32 intermediates in flight
                 + (4 << 20))                             # slack
    vmem_limit = int(min(max(vmem_need, 16 << 20), vmem_cap - (16 << 20)))

    flops_per_px = 2 * (c_in * c1 + 2 * c1 * c1
                        + c1 * c2 + 2 * c2 * c2
                        + c2 * c3 + 2 * c3 * c3
                        + c3 * c3)
    cost = pl.CostEstimate(
        flops=flops_per_px * n * hw,
        transcendentals=0,
        bytes_accessed=n * hw * (c_in * in_item + c_out * out_item) + weight_bytes,
    )

    kernel = functools.partial(_ttc_encoder_kernel, chans=(c1, c2, c3))

    out_flat = pl.pallas_call(
        kernel,
        out_shape=jax.ShapeDtypeStruct((n, c_out, hw_pad), out_dtype),
        grid_spec=pltpu.PrefetchScalarGridSpec(
            num_scalar_prefetch=0,
            grid=grid,
            in_specs=[pl.BlockSpec((nb, c_in, tile_hw), lambda i, j: (i, 0, j))]
            + weight_specs,
            out_specs=pl.BlockSpec((nb, c_out, tile_hw), lambda i, j: (i, 0, j)),
        ),
        compiler_params=pltpu.CompilerParams(
            # Independent (image-block, pixel-tile) work items: both axes
            # parallel -> megacore sharding on v7x.  Default Buffered(2) kept:
            # the kernel is bandwidth-bound, not DMA-latency-bound.
            dimension_semantics=("parallel", "parallel"),
            vmem_limit_bytes=vmem_limit,
        ),
        cost_estimate=cost,
    )(x_flat, *params)

    if hw_pad != hw:
        out_flat = out_flat[:, :, :hw]
    return out_flat.reshape(n, c_out, h, w)


# ------------------------- Deterministic parameters --------------------------
def _conv_params(key, c_in, c_out):
    """kaiming_normal_(fan_out, relu) style weight, PyTorch (Cout, Cin) layout."""
    kw, kb = jax.random.split(key)
    std = jnp.sqrt(2.0 / c_out)  # fan_out for a 1x1 kernel
    wgt = jax.random.normal(kw, (c_out, c_in), jnp.float32) * std
    b = jax.random.normal(kb, (c_out,), jnp.float32) * 0.01
    return wgt, b


def _bn_params(key, c, eps=1e-5):
    """Eval-mode BatchNorm2d folded to per-channel (scale, shift)."""
    kg, kb, km, kv = jax.random.split(key, 4)
    gamma = 1.0 + 0.1 * jax.random.normal(kg, (c,), jnp.float32)
    beta = 0.1 * jax.random.normal(kb, (c,), jnp.float32)
    mean = 0.1 * jax.random.normal(km, (c,), jnp.float32)
    var = 0.5 + jnp.abs(jax.random.normal(kv, (c,), jnp.float32))
    scale = gamma * jax.lax.rsqrt(var + eps)
    shift = beta - mean * scale
    return scale, shift


def _fold(wgt, b, scale=None, shift=None):
    """Fold eval-mode BN (y = s*(Wx+b)+h) into the conv; bf16 weight, f32 (C,1) bias."""
    if scale is not None:
        wgt = wgt * scale[:, None]
        b = b * scale + shift
    return wgt.astype(jnp.bfloat16), b.astype(jnp.float32).reshape(-1, 1)


def make_params(key, input_dim=484, output_dim=256):
    """Returns (weights: list of 10 bf16 (Cout,Cin) arrays, bias_packed: (sum_C,1) f32)."""
    c1, c2, c3 = output_dim // 2, output_dim // 4, output_dim // 8
    dims = [input_dim, c1, c2, c3]
    keys = iter(jax.random.split(key, 16))
    weights, biases = [], []
    for li in range(3):
        cin, c = dims[li], dims[li + 1]
        w0, b0 = _conv_params(next(keys), cin, c)   # layerN[0] conv (no norm)
        wa, ba = _conv_params(next(keys), c, c)     # res conv1
        sa, ha = _bn_params(next(keys), c)          # res bn1 (eval mode)
        wb, bb = _conv_params(next(keys), c, c)     # res conv2
        sb, hb = _bn_params(next(keys), c)          # res bn2 (eval mode)
        for (w_, b_, s_, h_) in ((w0, b0, None, None), (wa, ba, sa, ha), (wb, bb, sb, hb)):
            wf, bf = _fold(w_, b_, s_, h_)
            weights.append(wf)
            biases.append(bf)
    wlast, blast = _conv_params(next(keys), c3, c3)  # final conv2
    wf, bf = _fold(wlast, blast)
    weights.append(wf)
    biases.append(bf)
    bias_packed = jnp.concatenate(biases, axis=0)    # (3*c1+3*c2+4*c3, 1) f32
    return weights, bias_packed


# ------------------------------ Reference ------------------------------------
def ttc_encoder_reference(x_nchw, weights, bias_packed, *, matmul_dtype=jnp.bfloat16,
                          output_dim=256):
    """Plain-JAX mirror of the kernel math (set matmul_dtype=f32 for full precision)."""
    c1, c2, c3 = output_dim // 2, output_dim // 4, output_dim // 8
    chans = [c1, c1, c1, c2, c2, c2, c3, c3, c3, c3]
    offs, o = [], 0
    for c in chans:
        offs.append(o)
        o += c
    biases = [bias_packed[offs[k]:offs[k] + chans[k], 0] for k in range(10)]

    n, cin, h, w = x_nchw.shape
    x = x_nchw.reshape(n, cin, h * w).astype(jnp.float32)

    def conv(hh, wt, bb):
        y = jnp.einsum("oi,nip->nop",
                       wt.astype(matmul_dtype), hh.astype(matmul_dtype),
                       preferred_element_type=jnp.float32)
        return y + bb[None, :, None]

    def stage(hh, k):
        t = conv(hh, weights[k], biases[k])
        y = jnp.maximum(conv(t, weights[k + 1], biases[k + 1]), 0.0)
        y = jnp.maximum(conv(y, weights[k + 2], biases[k + 2]), 0.0)
        return jnp.maximum(t + y, 0.0)

    x1 = stage(x, 0)
    x2 = stage(x1, 3)
    x3 = stage(x2, 6)
    x4 = conv(x3, weights[9], biases[9])
    out = jnp.concatenate([x1, x2, x3, x4], axis=1)
    return out.reshape(n, output_dim, h, w)


# -------------------------------- Main ----------------------------------------
if __name__ == "__main__":
    key = jax.random.PRNGKey(0)
    k_x, k_p = jax.random.split(key)

    N, C_IN, H, W = 2, 484, 16, 16  # input_dim=484; H*W = 256 pixels per image
    # Producer hands the kernel bf16 activations (no extra wrapper cast pass).
    x = jax.random.normal(k_x, (N, C_IN, H, W), jnp.float32).astype(jnp.bfloat16)
    weights, bias_packed = make_params(k_p)

    out = jax.block_until_ready(ttc_encoder_forward(x, weights, bias_packed))
    assert out.shape == (N, 256, H, W), out.shape
    assert out.dtype == jnp.bfloat16, out.dtype
    out_f32 = out.astype(jnp.float32)

    # Check vs a reference using the same bf16-operand / f32-accumulate math,
    # rounded to bf16 at the output exactly like the kernel's stores.
    ref = jax.block_until_ready(ttc_encoder_reference(x, weights, bias_packed))
    ref_bf = ref.astype(jnp.bfloat16).astype(jnp.float32)
    max_err = float(jnp.max(jnp.abs(out_f32 - ref_bf)))
    assert jnp.allclose(out_f32, ref_bf, atol=3e-2, rtol=3e-2), max_err

    # Loose sanity check vs the full-f32 formulation (bf16 rounding only).
    ref32 = ttc_encoder_reference(x, weights, bias_packed, matmul_dtype=jnp.float32)
    rel = jnp.linalg.norm((out_f32 - ref32).ravel()) / jnp.linalg.norm(ref32.ravel())
    assert float(rel) < 5e-2, float(rel)

    print("KERNEL_OK")
</pallas_src>

<mosaic_0001>
module attributes {stable_mosaic.version = 11 : i64} {
  func.func @_ttc_encoder_kernel(%arg0: i32, %arg1: i32, %arg2: memref<1x484x256xbf16, #tpu.memory_space<vmem>>, %arg3: memref<128x484xbf16, #tpu.memory_space<vmem>>, %arg4: memref<128x128xbf16, #tpu.memory_space<vmem>>, %arg5: memref<128x128xbf16, #tpu.memory_space<vmem>>, %arg6: memref<64x128xbf16, #tpu.memory_space<vmem>>, %arg7: memref<64x64xbf16, #tpu.memory_space<vmem>>, %arg8: memref<64x64xbf16, #tpu.memory_space<vmem>>, %arg9: memref<32x64xbf16, #tpu.memory_space<vmem>>, %arg10: memref<32x32xbf16, #tpu.memory_space<vmem>>, %arg11: memref<32x32xbf16, #tpu.memory_space<vmem>>, %arg12: memref<32x32xbf16, #tpu.memory_space<vmem>>, %arg13: memref<704x1xf32, #tpu.memory_space<vmem>>, %arg14: memref<1x256x256xbf16, #tpu.memory_space<vmem>>) attributes {dimension_semantics = [#tpu.dimension_semantics<parallel>, #tpu.dimension_semantics<parallel>], iteration_bounds = array<i64: 2, 1>, scalar_prefetch = 0 : i64, scratch_operands = 0 : i64, tpu.core_type = #tpu.core_type<tc>, window_params = [{transform_indices = @transform_0, window_bounds = array<i64: 1, 484, 256>}, {pipeline_mode = #tpu.pipeline_mode<synchronous>, transform_indices = @transform_1, window_bounds = array<i64: 128, 484>}, {pipeline_mode = #tpu.pipeline_mode<synchronous>, transform_indices = @transform_2, window_bounds = array<i64: 128, 128>}, {pipeline_mode = #tpu.pipeline_mode<synchronous>, transform_indices = @transform_3, window_bounds = array<i64: 128, 128>}, {pipeline_mode = #tpu.pipeline_mode<synchronous>, transform_indices = @transform_4, window_bounds = array<i64: 64, 128>}, {pipeline_mode = #tpu.pipeline_mode<synchronous>, transform_indices = @transform_5, window_bounds = array<i64: 64, 64>}, {pipeline_mode = #tpu.pipeline_mode<synchronous>, transform_indices = @transform_6, window_bounds = array<i64: 64, 64>}, {pipeline_mode = #tpu.pipeline_mode<synchronous>, transform_indices = @transform_7, window_bounds = array<i64: 32, 64>}, {pipeline_mode = #tpu.pipeline_mode<synchronous>, transform_indices = @transform_8, window_bounds = array<i64: 32, 32>}, {pipeline_mode = #tpu.pipeline_mode<synchronous>, transform_indices = @transform_9, window_bounds = array<i64: 32, 32>}, {pipeline_mode = #tpu.pipeline_mode<synchronous>, transform_indices = @transform_10, window_bounds = array<i64: 32, 32>}, {pipeline_mode = #tpu.pipeline_mode<synchronous>, transform_indices = @transform_11, window_bounds = array<i64: 704, 1>}, {transform_indices = @transform_12, window_bounds = array<i64: 1, 256, 256>}]} {
    %c0 = arith.constant 0 : index
    %c0_0 = arith.constant 0 : index
    %c0_1 = arith.constant 0 : index
    %0 = vector.load %arg2[%c0, %c0_0, %c0_1] : memref<1x484x256xbf16, #tpu.memory_space<vmem>>, vector<1x484x256xbf16>
    %1 = vector.shape_cast %0 : vector<1x484x256xbf16> to vector<484x256xbf16>
    %c0_2 = arith.constant 0 : index
    %c0_3 = arith.constant 0 : index
    %2 = vector.load %arg3[%c0_2, %c0_3] : memref<128x484xbf16, #tpu.memory_space<vmem>>, vector<128x484xbf16>
    %cst = arith.constant dense<0.000000e+00> : vector<128x256xf32>
    %3 = tpu.matmul %2, %1, %cst {dimension_numbers = #tpu.dot_dimension_numbers<[1], [0], [0], [1], [0, 0, 1, 1], [], []>} : vector<128x484xbf16>, vector<484x256xbf16>, vector<128x256xf32> -> vector<128x256xf32>
    %c0_4 = arith.constant 0 : index
    %c0_5 = arith.constant 0 : index
    %4 = vector.load %arg13[%c0_4, %c0_5] : memref<704x1xf32, #tpu.memory_space<vmem>>, vector<128x1xf32>
    %5 = vector.broadcast %4 : vector<128x1xf32> to vector<128x256xf32>
    %6 = arith.addf %3, %5 : vector<128x256xf32>
    %c0_6 = arith.constant 0 : index
    %c0_7 = arith.constant 0 : index
    %7 = vector.load %arg4[%c0_6, %c0_7] : memref<128x128xbf16, #tpu.memory_space<vmem>>, vector<128x128xbf16>
    %8 = arith.truncf %6 : vector<128x256xf32> to vector<128x256xbf16>
    %cst_8 = arith.constant dense<0.000000e+00> : vector<128x256xf32>
    %9 = tpu.matmul %7, %8, %cst_8 {dimension_numbers = #tpu.dot_dimension_numbers<[1], [0], [0], [1], [0, 0, 1, 1], [], []>} : vector<128x128xbf16>, vector<128x256xbf16>, vector<128x256xf32> -> vector<128x256xf32>
    %c128 = arith.constant 128 : index
    %c0_9 = arith.constant 0 : index
    %10 = vector.load %arg13[%c128, %c0_9] : memref<704x1xf32, #tpu.memory_space<vmem>>, vector<128x1xf32>
    %11 = vector.broadcast %10 : vector<128x1xf32> to vector<128x256xf32>
    %12 = arith.addf %9, %11 : vector<128x256xf32>
    %cst_10 = arith.constant 0.000000e+00 : f32
    %13 = vector.broadcast %cst_10 : f32 to vector<128x256xf32>
    %14 = arith.maximumf %12, %13 : vector<128x256xf32>
    %c0_11 = arith.constant 0 : index
    %c0_12 = arith.constant 0 : index
    %15 = vector.load %arg5[%c0_11, %c0_12] : memref<128x128xbf16, #tpu.memory_space<vmem>>, vector<128x128xbf16>
    %16 = arith.truncf %14 : vector<128x256xf32> to vector<128x256xbf16>
    %cst_13 = arith.constant dense<0.000000e+00> : vector<128x256xf32>
    %17 = tpu.matmul %15, %16, %cst_13 {dimension_numbers = #tpu.dot_dimension_numbers<[1], [0], [0], [1], [0, 0, 1, 1], [], []>} : vector<128x128xbf16>, vector<128x256xbf16>, vector<128x256xf32> -> vector<128x256xf32>
    %c256 = arith.constant 256 : index
    %c0_14 = arith.constant 0 : index
    %18 = vector.load %arg13[%c256, %c0_14] : memref<704x1xf32, #tpu.memory_space<vmem>>, vector<128x1xf32>
    %19 = vector.broadcast %18 : vector<128x1xf32> to vector<128x256xf32>
    %20 = arith.addf %17, %19 : vector<128x256xf32>
    %cst_15 = arith.constant 0.000000e+00 : f32
    %21 = vector.broadcast %cst_15 : f32 to vector<128x256xf32>
    %22 = arith.maximumf %20, %21 : vector<128x256xf32>
    %23 = arith.addf %6, %22 : vector<128x256xf32>
    %cst_16 = arith.constant 0.000000e+00 : f32
    %24 = vector.broadcast %cst_16 : f32 to vector<128x256xf32>
    %25 = arith.maximumf %23, %24 : vector<128x256xf32>
    %c0_17 = arith.constant 0 : index
    %c0_18 = arith.constant 0 : index
    %26 = vector.load %arg6[%c0_17, %c0_18] : memref<64x128xbf16, #tpu.memory_space<vmem>>, vector<64x128xbf16>
    %27 = arith.truncf %25 : vector<128x256xf32> to vector<128x256xbf16>
    %cst_19 = arith.constant dense<0.000000e+00> : vector<64x256xf32>
    %28 = tpu.matmul %26, %27, %cst_19 {dimension_numbers = #tpu.dot_dimension_numbers<[1], [0], [0], [1], [0, 0, 1, 1], [], []>} : vector<64x128xbf16>, vector<128x256xbf16>, vector<64x256xf32> -> vector<64x256xf32>
    %c384 = arith.constant 384 : index
    %c0_20 = arith.constant 0 : index
    %29 = vector.load %arg13[%c384, %c0_20] : memref<704x1xf32, #tpu.memory_space<vmem>>, vector<64x1xf32>
    %30 = vector.broadcast %29 : vector<64x1xf32> to vector<64x256xf32>
    %31 = arith.addf %28, %30 : vector<64x256xf32>
    %c0_21 = arith.constant 0 : index
    %c0_22 = arith.constant 0 : index
    %32 = vector.load %arg7[%c0_21, %c0_22] : memref<64x64xbf16, #tpu.memory_space<vmem>>, vector<64x64xbf16>
    %33 = arith.truncf %31 : vector<64x256xf32> to vector<64x256xbf16>
    %cst_23 = arith.constant dense<0.000000e+00> : vector<64x256xf32>
    %34 = tpu.matmul %32, %33, %cst_23 {dimension_numbers = #tpu.dot_dimension_numbers<[1], [0], [0], [1], [0, 0, 1, 1], [], []>} : vector<64x64xbf16>, vector<64x256xbf16>, vector<64x256xf32> -> vector<64x256xf32>
    %c448 = arith.constant 448 : index
    %c0_24 = arith.constant 0 : index
    %35 = vector.load %arg13[%c448, %c0_24] : memref<704x1xf32, #tpu.memory_space<vmem>>, vector<64x1xf32>
    %36 = vector.broadcast %35 : vector<64x1xf32> to vector<64x256xf32>
    %37 = arith.addf %34, %36 : vector<64x256xf32>
    %cst_25 = arith.constant 0.000000e+00 : f32
    %38 = vector.broadcast %cst_25 : f32 to vector<64x256xf32>
    %39 = arith.maximumf %37, %38 : vector<64x256xf32>
    %c0_26 = arith.constant 0 : index
    %c0_27 = arith.constant 0 : index
    %40 = vector.load %arg8[%c0_26, %c0_27] : memref<64x64xbf16, #tpu.memory_space<vmem>>, vector<64x64xbf16>
    %41 = arith.truncf %39 : vector<64x256xf32> to vector<64x256xbf16>
    %cst_28 = arith.constant dense<0.000000e+00> : vector<64x256xf32>
    %42 = tpu.matmul %40, %41, %cst_28 {dimension_numbers = #tpu.dot_dimension_numbers<[1], [0], [0], [1], [0, 0, 1, 1], [], []>} : vector<64x64xbf16>, vector<64x256xbf16>, vector<64x256xf32> -> vector<64x256xf32>
    %c512 = arith.constant 512 : index
    %c0_29 = arith.constant 0 : index
    %43 = vector.load %arg13[%c512, %c0_29] : memref<704x1xf32, #tpu.memory_space<vmem>>, vector<64x1xf32>
    %44 = vector.broadcast %43 : vector<64x1xf32> to vector<64x256xf32>
    %45 = arith.addf %42, %44 : vector<64x256xf32>
    %cst_30 = arith.constant 0.000000e+00 : f32
    %46 = vector.broadcast %cst_30 : f32 to vector<64x256xf32>
    %47 = arith.maximumf %45, %46 : vector<64x256xf32>
    %48 = arith.addf %31, %47 : vector<64x256xf32>
    %cst_31 = arith.constant 0.000000e+00 : f32
    %49 = vector.broadcast %cst_31 : f32 to vector<64x256xf32>
    %50 = arith.maximumf %48, %49 : vector<64x256xf32>
    %c0_32 = arith.constant 0 : index
    %c0_33 = arith.constant 0 : index
    %51 = vector.load %arg9[%c0_32, %c0_33] : memref<32x64xbf16, #tpu.memory_space<vmem>>, vector<32x64xbf16>
    %52 = arith.truncf %50 : vector<64x256xf32> to vector<64x256xbf16>
    %cst_34 = arith.constant dense<0.000000e+00> : vector<32x256xf32>
    %53 = tpu.matmul %51, %52, %cst_34 {dimension_numbers = #tpu.dot_dimension_numbers<[1], [0], [0], [1], [0, 0, 1, 1], [], []>} : vector<32x64xbf16>, vector<64x256xbf16>, vector<32x256xf32> -> vector<32x256xf32>
    %c576 = arith.constant 576 : index
    %c0_35 = arith.constant 0 : index
    %54 = vector.load %arg13[%c576, %c0_35] : memref<704x1xf32, #tpu.memory_space<vmem>>, vector<32x1xf32>
    %55 = vector.broadcast %54 : vector<32x1xf32> to vector<32x256xf32>
    %56 = arith.addf %53, %55 : vector<32x256xf32>
    %c0_36 = arith.constant 0 : index
    %c0_37 = arith.constant 0 : index
    %57 = vector.load %arg10[%c0_36, %c0_37] : memref<32x32xbf16, #tpu.memory_space<vmem>>, vector<32x32xbf16>
    %58 = arith.truncf %56 : vector<32x256xf32> to vector<32x256xbf16>
    %cst_38 = arith.constant dense<0.000000e+00> : vector<32x256xf32>
    %59 = tpu.matmul %57, %58, %cst_38 {dimension_numbers = #tpu.dot_dimension_numbers<[1], [0], [0], [1], [0, 0, 1, 1], [], []>} : vector<32x32xbf16>, vector<32x256xbf16>, vector<32x256xf32> -> vector<32x256xf32>
    %c608 = arith.constant 608 : index
    %c0_39 = arith.constant 0 : index
    %60 = vector.load %arg13[%c608, %c0_39] : memref<704x1xf32, #tpu.memory_space<vmem>>, vector<32x1xf32>
    %61 = vector.broadcast %60 : vector<32x1xf32> to vector<32x256xf32>
    %62 = arith.addf %59, %61 : vector<32x256xf32>
    %cst_40 = arith.constant 0.000000e+00 : f32
    %63 = vector.broadcast %cst_40 : f32 to vector<32x256xf32>
    %64 = arith.maximumf %62, %63 : vector<32x256xf32>
    %c0_41 = arith.constant 0 : index
    %c0_42 = arith.constant 0 : index
    %65 = vector.load %arg11[%c0_41, %c0_42] : memref<32x32xbf16, #tpu.memory_space<vmem>>, vector<32x32xbf16>
    %66 = arith.truncf %64 : vector<32x256xf32> to vector<32x256xbf16>
    %cst_43 = arith.constant dense<0.000000e+00> : vector<32x256xf32>
    %67 = tpu.matmul %65, %66, %cst_43 {dimension_numbers = #tpu.dot_dimension_numbers<[1], [0], [0], [1], [0, 0, 1, 1], [], []>} : vector<32x32xbf16>, vector<32x256xbf16>, vector<32x256xf32> -> vector<32x256xf32>
    %c640 = arith.constant 640 : index
    %c0_44 = arith.constant 0 : index
    %68 = vector.load %arg13[%c640, %c0_44] : memref<704x1xf32, #tpu.memory_space<vmem>>, vector<32x1xf32>
    %69 = vector.broadcast %68 : vector<32x1xf32> to vector<32x256xf32>
    %70 = arith.addf %67, %69 : vector<32x256xf32>
    %cst_45 = arith.constant 0.000000e+00 : f32
    %71 = vector.broadcast %cst_45 : f32 to vector<32x256xf32>
    %72 = arith.maximumf %70, %71 : vector<32x256xf32>
    %73 = arith.addf %56, %72 : vector<32x256xf32>
    %cst_46 = arith.constant 0.000000e+00 : f32
    %74 = vector.broadcast %cst_46 : f32 to vector<32x256xf32>
    %75 = arith.maximumf %73, %74 : vector<32x256xf32>
    %c0_47 = arith.constant 0 : index
    %c0_48 = arith.constant 0 : index
    %76 = vector.load %arg12[%c0_47, %c0_48] : memref<32x32xbf16, #tpu.memory_space<vmem>>, vector<32x32xbf16>
    %77 = arith.truncf %75 : vector<32x256xf32> to vector<32x256xbf16>
    %cst_49 = arith.constant dense<0.000000e+00> : vector<32x256xf32>
    %78 = tpu.matmul %76, %77, %cst_49 {dimension_numbers = #tpu.dot_dimension_numbers<[1], [0], [0], [1], [0, 0, 1, 1], [], []>} : vector<32x32xbf16>, vector<32x256xbf16>, vector<32x256xf32> -> vector<32x256xf32>
    %c672 = arith.constant 672 : index
    %c0_50 = arith.constant 0 : index
    %79 = vector.load %arg13[%c672, %c0_50] : memref<704x1xf32, #tpu.memory_space<vmem>>, vector<32x1xf32>
    %80 = vector.broadcast %79 : vector<32x1xf32> to vector<32x256xf32>
    %81 = arith.addf %78, %80 : vector<32x256xf32>
    %82 = arith.truncf %25 : vector<128x256xf32> to vector<128x256xbf16>
    %c0_51 = arith.constant 0 : index
    %c0_52 = arith.constant 0 : index
    %c0_53 = arith.constant 0 : index
    %83 = vector.load %arg14[%c0_51, %c0_52, %c0_53] : memref<1x256x256xbf16, #tpu.memory_space<vmem>>, vector<1x128x256xbf16>
    %84 = vector.shape_cast %83 : vector<1x128x256xbf16> to vector<128x256xbf16>
    %85 = vector.shape_cast %82 : vector<128x256xbf16> to vector<1x128x256xbf16>
    tpu.vector_store %arg14[%c0_51, %c0_52, %c0_53], %85 {strides = array<i32>} : memref<1x256x256xbf16, #tpu.memory_space<vmem>>, vector<1x128x256xbf16>,
    %86 = arith.truncf %50 : vector<64x256xf32> to vector<64x256xbf16>
    %c0_54 = arith.constant 0 : index
    %c128_55 = arith.constant 128 : index
    %c0_56 = arith.constant 0 : index
    %87 = vector.load %arg14[%c0_54, %c128_55, %c0_56] : memref<1x256x256xbf16, #tpu.memory_space<vmem>>, vector<1x64x256xbf16>
    %88 = vector.shape_cast %87 : vector<1x64x256xbf16> to vector<64x256xbf16>
    %89 = vector.shape_cast %86 : vector<64x256xbf16> to vector<1x64x256xbf16>
    tpu.vector_store %arg14[%c0_54, %c128_55, %c0_56], %89 {strides = array<i32>} : memref<1x256x256xbf16, #tpu.memory_space<vmem>>, vector<1x64x256xbf16>,
    %90 = arith.truncf %75 : vector<32x256xf32> to vector<32x256xbf16>
    %c0_57 = arith.constant 0 : index
    %c192 = arith.constant 192 : index
    %c0_58 = arith.constant 0 : index
    %91 = vector.load %arg14[%c0_57, %c192, %c0_58] : memref<1x256x256xbf16, #tpu.memory_space<vmem>>, vector<1x32x256xbf16>
    %92 = vector.shape_cast %91 : vector<1x32x256xbf16> to vector<32x256xbf16>
    %93 = vector.shape_cast %90 : vector<32x256xbf16> to vector<1x32x256xbf16>
    tpu.vector_store %arg14[%c0_57, %c192, %c0_58], %93 {strides = array<i32>} : memref<1x256x256xbf16, #tpu.memory_space<vmem>>, vector<1x32x256xbf16>,
    %94 = arith.truncf %81 : vector<32x256xf32> to vector<32x256xbf16>
    %c0_59 = arith.constant 0 : index
    %c224 = arith.constant 224 : index
    %c0_60 = arith.constant 0 : index
    %95 = vector.load %arg14[%c0_59, %c224, %c0_60] : memref<1x256x256xbf16, #tpu.memory_space<vmem>>, vector<1x32x256xbf16>
    %96 = vector.shape_cast %95 : vector<1x32x256xbf16> to vector<32x256xbf16>
    %97 = vector.shape_cast %94 : vector<32x256xbf16> to vector<1x32x256xbf16>
    tpu.vector_store %arg14[%c0_59, %c224, %c0_60], %97 {strides = array<i32>} : memref<1x256x256xbf16, #tpu.memory_space<vmem>>, vector<1x32x256xbf16>,
    return
  }
  func.func @transform_0(%arg0: i32, %arg1: i32) -> (i32, i32, i32) {
    %c0_i32 = arith.constant 0 : i32
    %c0_i32_0 = arith.constant 0 : i32
    return %arg0, %c0_i32, %arg1 : i32, i32, i32
  }
  func.func @transform_1(%arg0: i32, %arg1: i32) -> (i32, i32) {
    %c0_i32 = arith.constant 0 : i32
    %c0_i32_0 = arith.constant 0 : i32
    %c0_i32_1 = arith.constant 0 : i32
    return %c0_i32, %c0_i32_0 : i32, i32
  }
  func.func @transform_2(%arg0: i32, %arg1: i32) -> (i32, i32) {
    %c0_i32 = arith.constant 0 : i32
    %c0_i32_0 = arith.constant 0 : i32
    %c0_i32_1 = arith.constant 0 : i32
    return %c0_i32, %c0_i32_0 : i32, i32
  }
  func.func @transform_3(%arg0: i32, %arg1: i32) -> (i32, i32) {
    %c0_i32 = arith.constant 0 : i32
    %c0_i32_0 = arith.constant 0 : i32
    %c0_i32_1 = arith.constant 0 : i32
    return %c0_i32, %c0_i32_0 : i32, i32
  }
  func.func @transform_4(%arg0: i32, %arg1: i32) -> (i32, i32) {
    %c0_i32 = arith.constant 0 : i32
    %c0_i32_0 = arith.constant 0 : i32
    %c0_i32_1 = arith.constant 0 : i32
    return %c0_i32, %c0_i32_0 : i32, i32
  }
  func.func @transform_5(%arg0: i32, %arg1: i32) -> (i32, i32) {
    %c0_i32 = arith.constant 0 : i32
    %c0_i32_0 = arith.constant 0 : i32
    %c0_i32_1 = arith.constant 0 : i32
    return %c0_i32, %c0_i32_0 : i32, i32
  }
  func.func @transform_6(%arg0: i32, %arg1: i32) -> (i32, i32) {
    %c0_i32 = arith.constant 0 : i32
    %c0_i32_0 = arith.constant 0 : i32
    %c0_i32_1 = arith.constant 0 : i32
    return %c0_i32, %c0_i32_0 : i32, i32
  }
  func.func @transform_7(%arg0: i32, %arg1: i32) -> (i32, i32) {
    %c0_i32 = arith.constant 0 : i32
    %c0_i32_0 = arith.constant 0 : i32
    %c0_i32_1 = arith.constant 0 : i32
    return %c0_i32, %c0_i32_0 : i32, i32
  }
  func.func @transform_8(%arg0: i32, %arg1: i32) -> (i32, i32) {
    %c0_i32 = arith.constant 0 : i32
    %c0_i32_0 = arith.constant 0 : i32
    %c0_i32_1 = arith.constant 0 : i32
    return %c0_i32, %c0_i32_0 : i32, i32
  }
  func.func @transform_9(%arg0: i32, %arg1: i32) -> (i32, i32) {
    %c0_i32 = arith.constant 0 : i32
    %c0_i32_0 = arith.constant 0 : i32
    %c0_i32_1 = arith.constant 0 : i32
    return %c0_i32, %c0_i32_0 : i32, i32
  }
  func.func @transform_10(%arg0: i32, %arg1: i32) -> (i32, i32) {
    %c0_i32 = arith.constant 0 : i32
    %c0_i32_0 = arith.constant 0 : i32
    %c0_i32_1 = arith.constant 0 : i32
    return %c0_i32, %c0_i32_0 : i32, i32
  }
  func.func @transform_11(%arg0: i32, %arg1: i32) -> (i32, i32) {
    %c0_i32 = arith.constant 0 : i32
    %c0_i32_0 = arith.constant 0 : i32
    %c0_i32_1 = arith.constant 0 : i32
    return %c0_i32, %c0_i32_0 : i32, i32
  }
  func.func @transform_12(%arg0: i32, %arg1: i32) -> (i32, i32, i32) {
    %c0_i32 = arith.constant 0 : i32
    %c0_i32_0 = arith.constant 0 : i32
    return %arg0, %c0_i32, %arg1 : i32, i32, i32
  }
}

</mosaic_0001>

<llo_original>
// kernel: tpu_custom_call.1
$region0: #{tpu_custom_call.1}
  #allocation0 [shape = 'u32[]', space=smem, size = 0x4, offset = 0x4, fixed_abs, tag = 'smem constant byte address 0x4 - core index']
  #allocation1 [shape = 'u32[72,128]{1,0:T(1,128)}', space=vmem, size = 0x9000, scoped, tag = 'internal scratch']
  %s0 = inlined_call_operand.vmem [shape: bf16[2,484,256], index: 0, kind: input, shape index: {}]
  %s1 = inlined_call_operand.vmem [shape: bf16[128,484], index: 1, kind: input, shape index: {}]
  %s2 = inlined_call_operand.vmem [shape: bf16[128,128], index: 2, kind: input, shape index: {}]
  %s3 = inlined_call_operand.vmem [shape: bf16[128,128], index: 3, kind: input, shape index: {}]
  %s4 = inlined_call_operand.vmem [shape: bf16[64,128], index: 4, kind: input, shape index: {}]
  %s5 = inlined_call_operand.vmem [shape: bf16[64,64], index: 5, kind: input, shape index: {}]
  %s6 = inlined_call_operand.vmem [shape: bf16[64,64], index: 6, kind: input, shape index: {}]
  %s7 = inlined_call_operand.vmem [shape: bf16[32,64], index: 7, kind: input, shape index: {}]
  %s8 = inlined_call_operand.vmem [shape: bf16[32,32], index: 8, kind: input, shape index: {}]
  %s9 = inlined_call_operand.vmem [shape: bf16[32,32], index: 9, kind: input, shape index: {}]
  %s10 = inlined_call_operand.vmem [shape: bf16[32,32], index: 10, kind: input, shape index: {}]
  %s11 = inlined_call_operand.vmem [shape: f32[704,1], index: 11, kind: input, shape index: {}]
  %s12 = inlined_call_operand.hbm [shape: bf16[2,256,256], index: 12, kind: output, shape index: {}]
  %s13 = sld [smem:[#allocation0]]
  $region81: #{tpu_custom_call.1} parent=0
    _
  %s15 = ssub.s32 1, %s13
  %s16 = scalar_select 0, %s15, %s13
  $region1: #{tpu_custom_call.1} parent=0
    #allocation2 [shape = 'u8[262144]{0}', space=vmem, size = 0x40000, scoped, tag = 'output window, operand 0']
    #allocation3 [shape = 's32[2]{0}', space=sflag, size = 0x8, scoped, tag = 'scoped memory for tpu_custom_call.1']
    %17 = vsyncpa [#allocation3], 0
    %s18 = scalar_lea.sflag [#allocation3], 1
    %19 = vsyncpa %s18, 0
    loop: start=0, step=1, limit=4
    $region2: #{tpu_custom_call.1} parent=1 // loop_pre_header
      _
    $region3: #{tpu_custom_call.1} parent=1 // loop_header
      %s21 = sphi 0, %s25
      %p22 = scmp.ge.s32.totalorder %s21, 4
      %s28 = sphi 0, %s40
      %s29 = sphi 0, %s36
      %s30 = sphi 0, %s28
      %s31 = sphi 0, %s29
      %s32 = sphi 0, %s30
      %s33 = sphi 0, %s31
      %s45 = sphi 0, %s47
      %s48 = sphi 0, %s45
      %s49 = sphi 0, %s48
      %s65 = sphi 0, %s49
      %s69 = sphi 0, %s69
      %s71 = sphi 0, %s69
      %s72 = sphi 0, %s71
      %s86 = sphi 0, %s72
      %s90 = sphi 0, %s90
      %s92 = sphi 0, %s90
      %s93 = sphi 0, %s92
      %s107 = sphi 0, %s93
      %s111 = sphi 0, %s111
      %s113 = sphi 0, %s111
      %s114 = sphi 0, %s113
      %s128 = sphi 0, %s114
      %s132 = sphi 0, %s132
      %s134 = sphi 0, %s132
      %s135 = sphi 0, %s134
      %s149 = sphi 0, %s135
      %s153 = sphi 0, %s153
      %s155 = sphi 0, %s153
      %s156 = sphi 0, %s155
      %s170 = sphi 0, %s156
      %s174 = sphi 0, %s174
      %s176 = sphi 0, %s174
      %s177 = sphi 0, %s176
      %s191 = sphi 0, %s177
      %s195 = sphi 0, %s195
      %s197 = sphi 0, %s195
      %s198 = sphi 0, %s197
      %s212 = sphi 0, %s198
      %s216 = sphi 0, %s216
      %s218 = sphi 0, %s216
      %s219 = sphi 0, %s218
      %s233 = sphi 0, %s219
      %s237 = sphi 0, %s237
      %s239 = sphi 0, %s237
      %s240 = sphi 0, %s239
      %s254 = sphi 0, %s240
      %s258 = sphi 0, %s258
      %s260 = sphi 0, %s258
      %s261 = sphi 0, %s260
      %s275 = sphi 0, %s261
      %s279 = sphi 0, %s279
      %s281 = sphi 0, %s279
      %s282 = sphi 0, %s281
      %s296 = sphi 0, %s282
      %s304 = sphi 0, %s306
      %s307 = sphi 0, %s304
      %s308 = sphi 0, %s307
      %s324 = sphi 0, %s308
    $region4: #{tpu_custom_call.1} parent=1 // loop_header_branch
      %24 = sbr.rel (%p22) target = $region8
    $region5: #{tpu_custom_call.1} parent=1 // loop_body
      %s26 = ssub.s32 %s21, 1
      %s27 = ssub.s32 %s21, 2
      %s34 = sadd.s32 1, %s29
      %p35 = scmp.ge.s32.totalorder %s34, 1
      %s36 = scalar_select %p35, 0, %s34
      %s37 = sadd.s32 1, %s28
      %s38 = scalar_select %p35, %s37, %s28
      %p39 = scmp.ge.s32.totalorder %s38, 2
      %s40 = scalar_select %p39, 0, %s38
      %s41 = ssub.s32 %s28, %s40
      %s42 = ssub.s32 %s29, %s36
      %s43 = sor.u32 %s41, %s42
      %p44 = scmp.eq.s32.totalorder %s43, 0
      %s46 = sadd.s32 %s45, 1
      %s47 = scalar_select %p44, %s45, %s46
      %p50 = pneg %p44
      %p51 = scmp.eq.s32.totalorder %s21, 1
      %p52 = por %p50, %p51
      %p53 = scmp.ne.s32.totalorder %s45, %s48
      %p54 = scmp.eq.s32.totalorder %s21, 0
      %p55 = por %p53, %p54
      %p56 = scmp.ne.s32.totalorder %s45, %s48
      %p57 = scmp.eq.s32.totalorder %s26, 1
      %p58 = por %p56, %p57
      %p59 = scmp.ne.s32.totalorder %s48, %s49
      %p60 = scmp.eq.s32.totalorder %s26, 0
      %p61 = por %p59, %p60
      %p62 = scmp.ne.s32.totalorder %s48, %s49
      %p63 = scmp.eq.s32.totalorder %s27, 1
      %p64 = por %p62, %p63
      %p66 = scmp.ne.s32.totalorder %s49, %s65
      %p67 = scmp.eq.s32.totalorder %s27, 0
      %p68 = por %p66, %p67
      %s70 = sadd.s32 %s69, 1
      %p73 = scmp.eq.s32.totalorder %s21, 1
      %p74 = scmp.ne.s32.totalorder %s69, %s71
      %p75 = scmp.eq.s32.totalorder %s21, 0
      %p76 = por %p74, %p75
      %p77 = scmp.ne.s32.totalorder %s69, %s71
      %p78 = scmp.eq.s32.totalorder %s26, 1
      %p79 = por %p77, %p78
      %p80 = scmp.ne.s32.totalorder %s71, %s72
      %p81 = scmp.eq.s32.totalorder %s26, 0
      %p82 = por %p80, %p81
      %p83 = scmp.ne.s32.totalorder %s71, %s72
      %p84 = scmp.eq.s32.totalorder %s27, 1
      %p85 = por %p83, %p84
      %p87 = scmp.ne.s32.totalorder %s72, %s86
      %p88 = scmp.eq.s32.totalorder %s27, 0
      %p89 = por %p87, %p88
      %s91 = sadd.s32 %s90, 1
      %p94 = scmp.eq.s32.totalorder %s21, 1
      %p95 = scmp.ne.s32.totalorder %s90, %s92
      %p96 = scmp.eq.s32.totalorder %s21, 0
      %p97 = por %p95, %p96
      %p98 = scmp.ne.s32.totalorder %s90, %s92
      %p99 = scmp.eq.s32.totalorder %s26, 1
      %p100 = por %p98, %p99
      %p101 = scmp.ne.s32.totalorder %s92, %s93
      %p102 = scmp.eq.s32.totalorder %s26, 0
      %p103 = por %p101, %p102
      %p104 = scmp.ne.s32.totalorder %s92, %s93
      %p105 = scmp.eq.s32.totalorder %s27, 1
      %p106 = por %p104, %p105
      %p108 = scmp.ne.s32.totalorder %s93, %s107
      %p109 = scmp.eq.s32.totalorder %s27, 0
      %p110 = por %p108, %p109
      %s112 = sadd.s32 %s111, 1
      %p115 = scmp.eq.s32.totalorder %s21, 1
      %p116 = scmp.ne.s32.totalorder %s111, %s113
      %p117 = scmp.eq.s32.totalorder %s21, 0
      %p118 = por %p116, %p117
      %p119 = scmp.ne.s32.totalorder %s111, %s113
      %p120 = scmp.eq.s32.totalorder %s26, 1
      %p121 = por %p119, %p120
      %p122 = scmp.ne.s32.totalorder %s113, %s114
      %p123 = scmp.eq.s32.totalorder %s26, 0
      %p124 = por %p122, %p123
      %p125 = scmp.ne.s32.totalorder %s113, %s114
      %p126 = scmp.eq.s32.totalorder %s27, 1
      %p127 = por %p125, %p126
      %p129 = scmp.ne.s32.totalorder %s114, %s128
      %p130 = scmp.eq.s32.totalorder %s27, 0
      %p131 = por %p129, %p130
      %s133 = sadd.s32 %s132, 1
      %p136 = scmp.eq.s32.totalorder %s21, 1
      %p137 = scmp.ne.s32.totalorder %s132, %s134
      %p138 = scmp.eq.s32.totalorder %s21, 0
      %p139 = por %p137, %p138
      %p140 = scmp.ne.s32.totalorder %s132, %s134
      %p141 = scmp.eq.s32.totalorder %s26, 1
      %p142 = por %p140, %p141
      %p143 = scmp.ne.s32.totalorder %s134, %s135
      %p144 = scmp.eq.s32.totalorder %s26, 0
      %p145 = por %p143, %p144
      %p146 = scmp.ne.s32.totalorder %s134, %s135
      %p147 = scmp.eq.s32.totalorder %s27, 1
      %p148 = por %p146, %p147
      %p150 = scmp.ne.s32.totalorder %s135, %s149
      %p151 = scmp.eq.s32.totalorder %s27, 0
      %p152 = por %p150, %p151
      %s154 = sadd.s32 %s153, 1
      %p157 = scmp.eq.s32.totalorder %s21, 1
      %p158 = scmp.ne.s32.totalorder %s153, %s155
      %p159 = scmp.eq.s32.totalorder %s21, 0
      %p160 = por %p158, %p159
      %p161 = scmp.ne.s32.totalorder %s153, %s155
      %p162 = scmp.eq.s32.totalorder %s26, 1
      %p163 = por %p161, %p162
      %p164 = scmp.ne.s32.totalorder %s155, %s156
      %p165 = scmp.eq.s32.totalorder %s26, 0
      %p166 = por %p164, %p165
      %p167 = scmp.ne.s32.totalorder %s155, %s156
      %p168 = scmp.eq.s32.totalorder %s27, 1
      %p169 = por %p167, %p168
      %p171 = scmp.ne.s32.totalorder %s156, %s170
      %p172 = scmp.eq.s32.totalorder %s27, 0
      %p173 = por %p171, %p172
      %s175 = sadd.s32 %s174, 1
      %p178 = scmp.eq.s32.totalorder %s21, 1
      %p179 = scmp.ne.s32.totalorder %s174, %s176
      %p180 = scmp.eq.s32.totalorder %s21, 0
      %p181 = por %p179, %p180
      %p182 = scmp.ne.s32.totalorder %s174, %s176
      %p183 = scmp.eq.s32.totalorder %s26, 1
      %p184 = por %p182, %p183
      %p185 = scmp.ne.s32.totalorder %s176, %s177
      %p186 = scmp.eq.s32.totalorder %s26, 0
      %p187 = por %p185, %p186
      %p188 = scmp.ne.s32.totalorder %s176, %s177
      %p189 = scmp.eq.s32.totalorder %s27, 1
      %p190 = por %p188, %p189
      %p192 = scmp.ne.s32.totalorder %s177, %s191
      %p193 = scmp.eq.s32.totalorder %s27, 0
      %p194 = por %p192, %p193
      %s196 = sadd.s32 %s195, 1
      %p199 = scmp.eq.s32.totalorder %s21, 1
      %p200 = scmp.ne.s32.totalorder %s195, %s197
      %p201 = scmp.eq.s32.totalorder %s21, 0
      %p202 = por %p200, %p201
      %p203 = scmp.ne.s32.totalorder %s195, %s197
      %p204 = scmp.eq.s32.totalorder %s26, 1
      %p205 = por %p203, %p204
      %p206 = scmp.ne.s32.totalorder %s197, %s198
      %p207 = scmp.eq.s32.totalorder %s26, 0
      %p208 = por %p206, %p207
      %p209 = scmp.ne.s32.totalorder %s197, %s198
      %p210 = scmp.eq.s32.totalorder %s27, 1
      %p211 = por %p209, %p210
      %p213 = scmp.ne.s32.totalorder %s198, %s212
      %p214 = scmp.eq.s32.totalorder %s27, 0
      %p215 = por %p213, %p214
      %s217 = sadd.s32 %s216, 1
      %p220 = scmp.eq.s32.totalorder %s21, 1
      %p221 = scmp.ne.s32.totalorder %s216, %s218
      %p222 = scmp.eq.s32.totalorder %s21, 0
      %p223 = por %p221, %p222
      %p224 = scmp.ne.s32.totalorder %s216, %s218
      %p225 = scmp.eq.s32.totalorder %s26, 1
      %p226 = por %p224, %p225
      %p227 = scmp.ne.s32.totalorder %s218, %s219
      %p228 = scmp.eq.s32.totalorder %s26, 0
      %p229 = por %p227, %p228
      %p230 = scmp.ne.s32.totalorder %s218, %s219
      %p231 = scmp.eq.s32.totalorder %s27, 1
      %p232 = por %p230, %p231
      %p234 = scmp.ne.s32.totalorder %s219, %s233
      %p235 = scmp.eq.s32.totalorder %s27, 0
      %p236 = por %p234, %p235
      %s238 = sadd.s32 %s237, 1
      %p241 = scmp.eq.s32.totalorder %s21, 1
      %p242 = scmp.ne.s32.totalorder %s237, %s239
      %p243 = scmp.eq.s32.totalorder %s21, 0
      %p244 = por %p242, %p243
      %p245 = scmp.ne.s32.totalorder %s237, %s239
      %p246 = scmp.eq.s32.totalorder %s26, 1
      %p247 = por %p245, %p246
      %p248 = scmp.ne.s32.totalorder %s239, %s240
      %p249 = scmp.eq.s32.totalorder %s26, 0
      %p250 = por %p248, %p249
      %p251 = scmp.ne.s32.totalorder %s239, %s240
      %p252 = scmp.eq.s32.totalorder %s27, 1
      %p253 = por %p251, %p252
      %p255 = scmp.ne.s32.totalorder %s240, %s254
      %p256 = scmp.eq.s32.totalorder %s27, 0
      %p257 = por %p255, %p256
      %s259 = sadd.s32 %s258, 1
      %p262 = scmp.eq.s32.totalorder %s21, 1
      %p263 = scmp.ne.s32.totalorder %s258, %s260
      %p264 = scmp.eq.s32.totalorder %s21, 0
      %p265 = por %p263, %p264
      %p266 = scmp.ne.s32.totalorder %s258, %s260
      %p267 = scmp.eq.s32.totalorder %s26, 1
      %p268 = por %p266, %p267
      %p269 = scmp.ne.s32.totalorder %s260, %s261
      %p270 = scmp.eq.s32.totalorder %s26, 0
      %p271 = por %p269, %p270
      %p272 = scmp.ne.s32.totalorder %s260, %s261
      %p273 = scmp.eq.s32.totalorder %s27, 1
      %p274 = por %p272, %p273
      %p276 = scmp.ne.s32.totalorder %s261, %s275
      %p277 = scmp.eq.s32.totalorder %s27, 0
      %p278 = por %p276, %p277
      %s280 = sadd.s32 %s279, 1
      %p283 = scmp.eq.s32.totalorder %s21, 1
      %p284 = scmp.ne.s32.totalorder %s279, %s281
      %p285 = scmp.eq.s32.totalorder %s21, 0
      %p286 = por %p284, %p285
      %p287 = scmp.ne.s32.totalorder %s279, %s281
      %p288 = scmp.eq.s32.totalorder %s26, 1
      %p289 = por %p287, %p288
      %p290 = scmp.ne.s32.totalorder %s281, %s282
      %p291 = scmp.eq.s32.totalorder %s26, 0
      %p292 = por %p290, %p291
      %p293 = scmp.ne.s32.totalorder %s281, %s282
      %p294 = scmp.eq.s32.totalorder %s27, 1
      %p295 = por %p293, %p294
      %p297 = scmp.ne.s32.totalorder %s282, %s296
      %p298 = scmp.eq.s32.totalorder %s27, 0
      %p299 = por %p297, %p298
      %s300 = ssub.s32 %s28, %s40
      %s301 = ssub.s32 %s29, %s36
      %s302 = sor.u32 %s300, %s301
      %p303 = scmp.eq.s32.totalorder %s302, 0
      %s305 = sadd.s32 %s304, 1
      %s306 = scalar_select %p303, %s304, %s305
      %p309 = pneg %p303
      %p310 = scmp.eq.s32.totalorder %s21, 1
      %p311 = por %p309, %p310
      %p312 = scmp.ne.s32.totalorder %s304, %s307
      %p313 = scmp.eq.s32.totalorder %s21, 0
      %p314 = por %p312, %p313
      %p315 = scmp.ne.s32.totalorder %s304, %s307
      %p316 = scmp.eq.s32.totalorder %s26, 1
      %p317 = por %p315, %p316
      %p318 = scmp.ne.s32.totalorder %s307, %s308
      %p319 = scmp.eq.s32.totalorder %s26, 0
      %p320 = por %p318, %p319
      %p321 = scmp.ne.s32.totalorder %s307, %s308
      %p322 = scmp.eq.s32.totalorder %s27, 1
      %p323 = por %p321, %p322
      %p325 = scmp.ne.s32.totalorder %s308, %s324
      %p326 = scmp.eq.s32.totalorder %s27, 0
      %p327 = por %p325, %p326
      %p328 = scmp.le.s32.totalorder 1, %s21
      %p329 = scmp.lt.s32.totalorder %s21, 3
      %p330 = pnand %p328, %p329
      %p331 = pneg %p330
      // Predicated region
      $region9: #{tpu_custom_call.1} parent=5 // pred_check
        _
      $region10: #{tpu_custom_call.1} parent=5 // pred_check_branch
        %333 = sbr.rel (%p330) target = $region12
      $region11: #{tpu_custom_call.1} parent=5 // pred_region
        %s334 = ssub.s32 %s21, 1
        // Predicated region
        $region13: #{tpu_custom_call.1} parent=11 // pred_check
          %p335 = pneg %p82
        $region14: #{tpu_custom_call.1} parent=11 // pred_check_branch
          %337 = sbr.rel (%p335) target = $region16
        $region15: #{tpu_custom_call.1} parent=11 // pred_region
          _
        $region16: #{tpu_custom_call.1} parent=11 // pred_fallthru
          _
        // Predicated region
        $region17: #{tpu_custom_call.1} parent=11 // pred_check
          %p338 = pneg %p103
        $region18: #{tpu_custom_call.1} parent=11 // pred_check_branch
          %340 = sbr.rel (%p338) target = $region20
        $region19: #{tpu_custom_call.1} parent=11 // pred_region
          _
        $region20: #{tpu_custom_call.1} parent=11 // pred_fallthru
          _
        // Predicated region
        $region21: #{tpu_custom_call.1} parent=11 // pred_check
          %p341 = pneg %p124
        $region22: #{tpu_custom_call.1} parent=11 // pred_check_branch
          %343 = sbr.rel (%p341) target = $region24
        $region23: #{tpu_custom_call.1} parent=11 // pred_region
          _
        $region24: #{tpu_custom_call.1} parent=11 // pred_fallthru
          _
        // Predicated region
        $region25: #{tpu_custom_call.1} parent=11 // pred_check
          %p344 = pneg %p145
        $region26: #{tpu_custom_call.1} parent=11 // pred_check_branch
          %346 = sbr.rel (%p344) target = $region28
        $region27: #{tpu_custom_call.1} parent=11 // pred_region
          _
        $region28: #{tpu_custom_call.1} parent=11 // pred_fallthru
          _
        // Predicated region
        $region29: #{tpu_custom_call.1} parent=11 // pred_check
          %p347 = pneg %p166
        $region30: #{tpu_custom_call.1} parent=11 // pred_check_branch
          %349 = sbr.rel (%p347) target = $region32
        $region31: #{tpu_custom_call.1} parent=11 // pred_region
          _
        $region32: #{tpu_custom_call.1} parent=11 // pred_fallthru
          _
        // Predicated region
        $region33: #{tpu_custom_call.1} parent=11 // pred_check
          %p350 = pneg %p187
        $region34: #{tpu_custom_call.1} parent=11 // pred_check_branch
          %352 = sbr.rel (%p350) target = $region36
        $region35: #{tpu_custom_call.1} parent=11 // pred_region
          _
        $region36: #{tpu_custom_call.1} parent=11 // pred_fallthru
          _
        // Predicated region
        $region37: #{tpu_custom_call.1} parent=11 // pred_check
          %p353 = pneg %p208
        $region38: #{tpu_custom_call.1} parent=11 // pred_check_branch
          %355 = sbr.rel (%p353) target = $region40
        $region39: #{tpu_custom_call.1} parent=11 // pred_region
          _
        $region40: #{tpu_custom_call.1} parent=11 // pred_fallthru
          _
        // Predicated region
        $region41: #{tpu_custom_call.1} parent=11 // pred_check
          %p356 = pneg %p229
        $region42: #{tpu_custom_call.1} parent=11 // pred_check_branch
          %358 = sbr.rel (%p356) target = $region44
        $region43: #{tpu_custom_call.1} parent=11 // pred_region
          _
        $region44: #{tpu_custom_call.1} parent=11 // pred_fallthru
          _
        // Predicated region
        $region45: #{tpu_custom_call.1} parent=11 // pred_check
          %p359 = pneg %p250
        $region46: #{tpu_custom_call.1} parent=11 // pred_check_branch
          %361 = sbr.rel (%p359) target = $region48
        $region47: #{tpu_custom_call.1} parent=11 // pred_region
          _
        $region48: #{tpu_custom_call.1} parent=11 // pred_fallthru
          _
        // Predicated region
        $region49: #{tpu_custom_call.1} parent=11 // pred_check
          %p362 = pneg %p271
        $region50: #{tpu_custom_call.1} parent=11 // pred_check_branch
          %364 = sbr.rel (%p362) target = $region52
        $region51: #{tpu_custom_call.1} parent=11 // pred_region
          _
        $region52: #{tpu_custom_call.1} parent=11 // pred_fallthru
          _
        // Predicated region
        $region53: #{tpu_custom_call.1} parent=11 // pred_check
          %p365 = pneg %p292
        $region54: #{tpu_custom_call.1} parent=11 // pred_check_branch
          %367 = sbr.rel (%p365) target = $region56
        $region55: #{tpu_custom_call.1} parent=11 // pred_region
          _
        $region56: #{tpu_custom_call.1} parent=11 // pred_fallthru
          _
      $region12: #{tpu_custom_call.1} parent=5 // pred_fallthru
        _
      %p368 = scmp.lt.s32.totalorder %s21, 2
      // Predicated region
      $region57: #{tpu_custom_call.1} parent=5 // pred_check
        %p369 = pneg %p368
      $region58: #{tpu_custom_call.1} parent=5 // pred_check_branch
        %371 = sbr.rel (%p369) target = $region60
      $region59: #{tpu_custom_call.1} parent=5 // pred_region
        // Predicated region
        $region61: #{tpu_custom_call.1} parent=59 // pred_check
          %p372 = pneg %p55
        $region62: #{tpu_custom_call.1} parent=59 // pred_check_branch
          %374 = sbr.rel (%p372) target = $region64
        $region63: #{tpu_custom_call.1} parent=59 // pred_region
          %s375 = smul.u32 2, %s29
          %p376 = scmp.lt.s32.totalorder %s28, 1
          %s377 = scalar_select %p376, %s28, 1
          %p378 = scmp.lt.s32.totalorder %s375, 1
          %s379 = scalar_select %p378, %s375, 1
          %s380 = smul.addr %s377, 122
          %s381 = sadd.s32 %s379, %s380
          %s382 = smul.addr %s381, 4
          %s383 = scalar_lea.vmem %s0, %s382
          %s384 = smul.u32 2, %s29
        $region64: #{tpu_custom_call.1} parent=59 // pred_fallthru
          _
      $region60: #{tpu_custom_call.1} parent=5 // pred_fallthru
        _
      %p385 = scmp.le.s32.totalorder 1, %s21
      %p386 = scmp.lt.s32.totalorder %s21, 3
      %p387 = pnand %p385, %p386
      %p388 = pneg %p387
      // Predicated region
      $region65: #{tpu_custom_call.1} parent=5 // pred_check
        _
      $region66: #{tpu_custom_call.1} parent=5 // pred_check_branch
        %390 = sbr.rel (%p387) target = $region68
      $region67: #{tpu_custom_call.1} parent=5 // pred_region
        %s391 = ssub.s32 %s21, 1
        %s392 = smul.u32 2, %s31
        %p393 = scmp.lt.s32.totalorder %s30, 1
        %s394 = scalar_select %p393, %s30, 1
        %p395 = scmp.lt.s32.totalorder %s392, 1
        %s396 = scalar_select %p395, %s392, 1
        %s397 = smul.addr %s394, 122
        %s398 = sadd.s32 %s396, %s397
        %s399 = smul.addr %s398, 4
        %s400 = scalar_lea.vmem %s0, %s399
        %p401 = pneg %p61
        %p402 = pneg %p58
        %p403 = pneg %p82
        %p404 = pneg %p79
        %p405 = pneg %p103
        %p406 = pneg %p100
        %p407 = pneg %p124
        %p408 = pneg %p121
        %p409 = pneg %p145
        %p410 = pneg %p142
        %p411 = pneg %p166
        %p412 = pneg %p163
        %p413 = pneg %p187
        %p414 = pneg %p184
        %p415 = pneg %p208
        %p416 = pneg %p205
        %p417 = pneg %p229
        %p418 = pneg %p226
        %p419 = pneg %p250
        %p420 = pneg %p247
        %p421 = pneg %p271
        %p422 = pneg %p268
        %p423 = pneg %p292
        %p424 = pneg %p289
        %p425 = pneg %p320
        %p426 = pneg %p317
        %s427 = sand.u32 %s307, 1
        %s428 = scalar_lea.sflag [#allocation3], %s427
        %s429 = sand.u32 %s307, 1
        %s430 = smul.addr %s429, 256
        %s431 = scalar_lea.vmem [#allocation2], %s430
        %s432 = smul.u32 2, %s31
        %p433 = scmp.lt.s32.totalorder %s30, 1
        %s434 = scalar_select %p433, %s30, 1
        %p435 = scmp.lt.s32.totalorder %s432, 1
        %s436 = scalar_select %p435, %s432, 1
        %s437 = smul.addr %s434, 122
        %s438 = sadd.s32 %s436, %s437
        %s439 = smul.addr %s438, 4
        %s440 = scalar_lea.vmem %s0, %s439
        %s441 = smul.u32 2, %s31
        %s442 = smul.u32 2, %s31
        %v444 = vld [vmem:[%s440] sm:$0xff]
        %v445 = vld [vmem:[%s440 + $0x8] sm:$0xff]
        %v446 = vld [vmem:[%s440 + $0x10] sm:$0xff]
        %v447 = vld [vmem:[%s440 + $0x18] sm:$0xff]
        %v448 = vld [vmem:[%s440 + $0x20] sm:$0xff]
        %v449 = vld [vmem:[%s440 + $0x28] sm:$0xff]
        %v450 = vld [vmem:[%s440 + $0x30] sm:$0xff]
        %v451 = vld [vmem:[%s440 + $0x38] sm:$0xff]
        %v452 = vld [vmem:[%s440 + $0x40] sm:$0xff]
        %v453 = vld [vmem:[%s440 + $0x48] sm:$0xff]
        %v454 = vld [vmem:[%s440 + $0x50] sm:$0xff]
        %v455 = vld [vmem:[%s440 + $0x58] sm:$0xff]
        %v456 = vld [vmem:[%s440 + $0x60] sm:$0xff]
        %v457 = vld [vmem:[%s440 + $0x68] sm:$0xff]
        %v458 = vld [vmem:[%s440 + $0x70] sm:$0xff]
        %v459 = vld [vmem:[%s440 + $0x78] sm:$0xff]
        %v460 = vld [vmem:[%s440 + $0x80] sm:$0xff]
        %v461 = vld [vmem:[%s440 + $0x88] sm:$0xff]
        %v462 = vld [vmem:[%s440 + $0x90] sm:$0xff]
        %v463 = vld [vmem:[%s440 + $0x98] sm:$0xff]
        %v464 = vld [vmem:[%s440 + $0xa0] sm:$0xff]
        %v465 = vld [vmem:[%s440 + $0xa8] sm:$0xff]
        %v466 = vld [vmem:[%s440 + $0xb0] sm:$0xff]
        %v467 = vld [vmem:[%s440 + $0xb8] sm:$0xff]
        %v468 = vld [vmem:[%s440 + $0xc0] sm:$0xff]
        %v469 = vld [vmem:[%s440 + $0xc8] sm:$0xff]
        %v470 = vld [vmem:[%s440 + $0xd0] sm:$0xff]
        %v471 = vld [vmem:[%s440 + $0xd8] sm:$0xff]
        %v472 = vld [vmem:[%s440 + $0xe0] sm:$0xff]
        %v473 = vld [vmem:[%s440 + $0xe8] sm:$0xff]
        %v474 = vld [vmem:[%s440 + $0xf0] sm:$0xff]
        %v475 = vld [vmem:[%s440 + $0xf8] sm:$0xff]
        %v476 = vld [vmem:[%s440 + $0x100] sm:$0xff]
        %v477 = vld [vmem:[%s440 + $0x108] sm:$0xff]
        %v478 = vld [vmem:[%s440 + $0x110] sm:$0xff]
        %v479 = vld [vmem:[%s440 + $0x118] sm:$0xff]
        %v480 = vld [vmem:[%s440 + $0x120] sm:$0xff]
        %v481 = vld [vmem:[%s440 + $0x128] sm:$0xff]
        %v482 = vld [vmem:[%s440 + $0x130] sm:$0xff]
        %v483 = vld [vmem:[%s440 + $0x138] sm:$0xff]
        %v484 = vld [vmem:[%s440 + $0x140] sm:$0xff]
        %v485 = vld [vmem:[%s440 + $0x148] sm:$0xff]
        %v486 = vld [vmem:[%s440 + $0x150] sm:$0xff]
        %v487 = vld [vmem:[%s440 + $0x158] sm:$0xff]
        %v488 = vld [vmem:[%s440 + $0x160] sm:$0xff]
        %v489 = vld [vmem:[%s440 + $0x168] sm:$0xff]
        %v490 = vld [vmem:[%s440 + $0x170] sm:$0xff]
        %v491 = vld [vmem:[%s440 + $0x178] sm:$0xff]
        %v492 = vld [vmem:[%s440 + $0x180] sm:$0xff]
        %v493 = vld [vmem:[%s440 + $0x188] sm:$0xff]
        %v494 = vld [vmem:[%s440 + $0x190] sm:$0xff]
        %v495 = vld [vmem:[%s440 + $0x198] sm:$0xff]
        %v496 = vld [vmem:[%s440 + $0x1a0] sm:$0xff]
        %v497 = vld [vmem:[%s440 + $0x1a8] sm:$0xff]
        %v498 = vld [vmem:[%s440 + $0x1b0] sm:$0xff]
        %v499 = vld [vmem:[%s440 + $0x1b8] sm:$0xff]
        %v500 = vld [vmem:[%s440 + $0x1c0] sm:$0xff]
        %v501 = vld [vmem:[%s440 + $0x1c8] sm:$0xff]
        %v502 = vld [vmem:[%s440 + $0x1d0] sm:$0xff]
        %v503 = vld [vmem:[%s440 + $0x1d8] sm:$0xff]
        %v504 = vld [vmem:[%s440 + $0x1e0] sm:$0x33]
        %v505 = vld [vmem:[%s1] sm:$0xff]
        %v506 = vld [vmem:[%s1 + $0x8] sm:$0xff]
        %v507 = vld [vmem:[%s1 + $0x10] sm:$0xff]
        %v508 = vld [vmem:[%s1 + $0x18] sm:$0xff]
        %v509 = vld [vmem:[%s1 + $0x20] sm:$0xff]
        %v510 = vld [vmem:[%s1 + $0x28] sm:$0xff]
        %v511 = vld [vmem:[%s1 + $0x30] sm:$0xff]
        %v512 = vld [vmem:[%s1 + $0x38] sm:$0xff]
        %v513 = vld [vmem:[%s1 + $0x40] sm:$0xff]
        %v514 = vld [vmem:[%s1 + $0x48] sm:$0xff]
        %v515 = vld [vmem:[%s1 + $0x50] sm:$0xff]
        %v516 = vld [vmem:[%s1 + $0x58] sm:$0xff]
        %v517 = vld [vmem:[%s1 + $0x60] sm:$0xff]
        %v518 = vld [vmem:[%s1 + $0x68] sm:$0xff]
        %v519 = vld [vmem:[%s1 + $0x70] sm:$0xff]
        %v520 = vld [vmem:[%s1 + $0x78] sm:$0xff]
        %v521 = vld [vmem:[%s1 + $0x80] sm:$0xff]
        %v522 = vld [vmem:[%s1 + $0x88] sm:$0xff]
        %v523 = vld [vmem:[%s1 + $0x90] sm:$0xff]
        %v524 = vld [vmem:[%s1 + $0x98] sm:$0xff]
        %v525 = vld [vmem:[%s1 + $0xa0] sm:$0xff]
        %v526 = vld [vmem:[%s1 + $0xa8] sm:$0xff]
        %v527 = vld [vmem:[%s1 + $0xb0] sm:$0xff]
        %v528 = vld [vmem:[%s1 + $0xb8] sm:$0xff]
        %v529 = vld [vmem:[%s1 + $0xc0] sm:$0xff]
        %v530 = vld [vmem:[%s1 + $0xc8] sm:$0xff]
        %v531 = vld [vmem:[%s1 + $0xd0] sm:$0xff]
        %v532 = vld [vmem:[%s1 + $0xd8] sm:$0xff]
        %v533 = vld [vmem:[%s1 + $0xe0] sm:$0xff]
        %v534 = vld [vmem:[%s1 + $0xe8] sm:$0xff]
        %v535 = vld [vmem:[%s1 + $0xf0] sm:$0xff]
        %v536 = vld [vmem:[%s1 + $0xf8] sm:$0xff]
        %v537 = vld [vmem:[%s11] sm:$0xff]
        %v538 = vld [vmem:[%s11 + $0x8] sm:$0xff]
        %v539 = vld [vmem:[%s11 + $0x10] sm:$0xff]
        %v540 = vld [vmem:[%s11 + $0x18] sm:$0xff]
        %v541 = vld [vmem:[%s11 + $0x20] sm:$0xff]
        %v542 = vld [vmem:[%s11 + $0x28] sm:$0xff]
        %v543 = vld [vmem:[%s11 + $0x30] sm:$0xff]
        %v544 = vld [vmem:[%s11 + $0x38] sm:$0xff]
        %v545 = vld [vmem:[%s11 + $0x40] sm:$0xff]
        %v546 = vld [vmem:[%s11 + $0x48] sm:$0xff]
        %v547 = vld [vmem:[%s11 + $0x50] sm:$0xff]
        %v548 = vld [vmem:[%s11 + $0x58] sm:$0xff]
        %v549 = vld [vmem:[%s11 + $0x60] sm:$0xff]
        %v550 = vld [vmem:[%s11 + $0x68] sm:$0xff]
        %v551 = vld [vmem:[%s11 + $0x70] sm:$0xff]
        %v552 = vld [vmem:[%s11 + $0x78] sm:$0xff]
        %554 = vset.pattern.permute.xlu0 0
        %555 = vperm.xlu0 %554, %v537
        %v556 = vpop.permute.xlu0 %555
        %559 = vset.pattern.permute.xlu0 0
        %560 = vperm.xlu0 %559, %v538
        %v561 = vpop.permute.xlu0 %560
        %564 = vset.pattern.permute.xlu0 0
        %565 = vperm.xlu0 %564, %v539
        %v566 = vpop.permute.xlu0 %565
        %569 = vset.pattern.permute.xlu0 0
        %570 = vperm.xlu0 %569, %v540
        %v571 = vpop.permute.xlu0 %570
        %574 = vset.pattern.permute.xlu0 0
        %575 = vperm.xlu0 %574, %v541
        %v576 = vpop.permute.xlu0 %575
        %579 = vset.pattern.permute.xlu0 0
        %580 = vperm.xlu0 %579, %v542
        %v581 = vpop.permute.xlu0 %580
        %584 = vset.pattern.permute.xlu0 0
        %585 = vperm.xlu0 %584, %v543
        %v586 = vpop.permute.xlu0 %585
        %589 = vset.pattern.permute.xlu0 0
        %590 = vperm.xlu0 %589, %v544
        %v591 = vpop.permute.xlu0 %590
        %594 = vset.pattern.permute.xlu0 0
        %595 = vperm.xlu0 %594, %v545
        %v596 = vpop.permute.xlu0 %595
        %599 = vset.pattern.permute.xlu0 0
        %600 = vperm.xlu0 %599, %v546
        %v601 = vpop.permute.xlu0 %600
        %604 = vset.pattern.permute.xlu0 0
        %605 = vperm.xlu0 %604, %v547
        %v606 = vpop.permute.xlu0 %605
        %609 = vset.pattern.permute.xlu0 0
        %610 = vperm.xlu0 %609, %v548
        %v611 = vpop.permute.xlu0 %610
        %614 = vset.pattern.permute.xlu0 0
        %615 = vperm.xlu0 %614, %v549
        %v616 = vpop.permute.xlu0 %615
        %619 = vset.pattern.permute.xlu0 0
        %620 = vperm.xlu0 %619, %v550
        %v621 = vpop.permute.xlu0 %620
        %624 = vset.pattern.permute.xlu0 0
        %625 = vperm.xlu0 %624, %v551
        %v626 = vpop.permute.xlu0 %625
        %629 = vset.pattern.permute.xlu0 0
        %630 = vperm.xlu0 %629, %v552
        %v631 = vpop.permute.xlu0 %630
        %v665 = vunpack.c.l.b16 %v505
        %v666 = vunpack.c.h.b16 %v505
        %v667 = vunpack.c.l.b16 %v506
        %v668 = vunpack.c.h.b16 %v506
        %v669 = vunpack.c.l.b16 %v507
        %v670 = vunpack.c.h.b16 %v507
        %v671 = vunpack.c.l.b16 %v508
        %v672 = vunpack.c.h.b16 %v508
        %v673 = vunpack.c.l.b16 %v509
        %v674 = vunpack.c.h.b16 %v509
        %v675 = vunpack.c.l.b16 %v510
        %v676 = vunpack.c.h.b16 %v510
        %v677 = vunpack.c.l.b16 %v511
        %v678 = vunpack.c.h.b16 %v511
        %v679 = vunpack.c.l.b16 %v512
        %v680 = vunpack.c.h.b16 %v512
        %v681 = vunpack.c.l.b16 %v513
        %v682 = vunpack.c.h.b16 %v513
        %v683 = vunpack.c.l.b16 %v514
        %v684 = vunpack.c.h.b16 %v514
        %v685 = vunpack.c.l.b16 %v515
        %v686 = vunpack.c.h.b16 %v515
        %v687 = vunpack.c.l.b16 %v516
        %v688 = vunpack.c.h.b16 %v516
        %v689 = vunpack.c.l.b16 %v517
        %v690 = vunpack.c.h.b16 %v517
        %v691 = vunpack.c.l.b16 %v518
        %v692 = vunpack.c.h.b16 %v518
        %v693 = vunpack.c.l.b16 %v519
        %v694 = vunpack.c.h.b16 %v519
        %v695 = vunpack.c.l.b16 %v520
        %v696 = vunpack.c.h.b16 %v520
        %v697 = vunpack.c.l.b16 %v521
        %v698 = vunpack.c.h.b16 %v521
        %v699 = vunpack.c.l.b16 %v522
        %v700 = vunpack.c.h.b16 %v522
        %v701 = vunpack.c.l.b16 %v523
        %v702 = vunpack.c.h.b16 %v523
        %v703 = vunpack.c.l.b16 %v524
        %v704 = vunpack.c.h.b16 %v524
        %v705 = vunpack.c.l.b16 %v525
        %v706 = vunpack.c.h.b16 %v525
        %v707 = vunpack.c.l.b16 %v526
        %v708 = vunpack.c.h.b16 %v526
        %v709 = vunpack.c.l.b16 %v527
        %v710 = vunpack.c.h.b16 %v527
        %v711 = vunpack.c.l.b16 %v528
        %v712 = vunpack.c.h.b16 %v528
        %v713 = vunpack.c.l.b16 %v529
        %v714 = vunpack.c.h.b16 %v529
        %v715 = vunpack.c.l.b16 %v530
        %v716 = vunpack.c.h.b16 %v530
        %v717 = vunpack.c.l.b16 %v531
        %v718 = vunpack.c.h.b16 %v531
        %v719 = vunpack.c.l.b16 %v532
        %v720 = vunpack.c.h.b16 %v532
        %v721 = vunpack.c.l.b16 %v533
        %v722 = vunpack.c.h.b16 %v533
        %v723 = vunpack.c.l.b16 %v534
        %v724 = vunpack.c.h.b16 %v534
        %v725 = vunpack.c.l.b16 %v535
        %v726 = vunpack.c.h.b16 %v535
        %v727 = vunpack.c.l.b16 %v536
        %v728 = vunpack.c.h.b16 %v536
        %v729 = vpack.c.b16 %v669, %v665
        %v730 = vpack.c.b16 %v670, %v666
        %v731 = vpack.c.b16 %v671, %v667
        %v732 = vpack.c.b16 %v672, %v668
        %v733 = vpack.c.b16 %v677, %v673
        %v734 = vpack.c.b16 %v678, %v674
        %v735 = vpack.c.b16 %v679, %v675
        %v736 = vpack.c.b16 %v680, %v676
        %v737 = vpack.c.b16 %v685, %v681
        %v738 = vpack.c.b16 %v686, %v682
        %v739 = vpack.c.b16 %v687, %v683
        %v740 = vpack.c.b16 %v688, %v684
        %v741 = vpack.c.b16 %v693, %v689
        %v742 = vpack.c.b16 %v694, %v690
        %v743 = vpack.c.b16 %v695, %v691
        %v744 = vpack.c.b16 %v696, %v692
        %v745 = vpack.c.b16 %v701, %v697
        %v746 = vpack.c.b16 %v702, %v698
        %v747 = vpack.c.b16 %v703, %v699
        %v748 = vpack.c.b16 %v704, %v700
        %v749 = vpack.c.b16 %v709, %v705
        %v750 = vpack.c.b16 %v710, %v706
        %v751 = vpack.c.b16 %v711, %v707
        %v752 = vpack.c.b16 %v712, %v708
        %v753 = vpack.c.b16 %v717, %v713
        %v754 = vpack.c.b16 %v718, %v714
        %v755 = vpack.c.b16 %v719, %v715
        %v756 = vpack.c.b16 %v720, %v716
        %v757 = vpack.c.b16 %v725, %v721
        %v758 = vpack.c.b16 %v726, %v722
        %v759 = vpack.c.b16 %v727, %v723
        %v760 = vpack.c.b16 %v728, %v724
        %v846 = vunpack.c.l.b16 %v444
        %v847 = vunpack.c.h.b16 %v444
        %v848 = vunpack.c.l.b16 %v445
        %v849 = vunpack.c.h.b16 %v445
        %v850 = vunpack.c.l.b16 %v446
        %v851 = vunpack.c.h.b16 %v446
        %v852 = vunpack.c.l.b16 %v447
        %v853 = vunpack.c.h.b16 %v447
        %v854 = vunpack.c.l.b16 %v448
        %v855 = vunpack.c.h.b16 %v448
        %v856 = vunpack.c.l.b16 %v449
        %v857 = vunpack.c.h.b16 %v449
        %v858 = vunpack.c.l.b16 %v450
        %v859 = vunpack.c.h.b16 %v450
        %v860 = vunpack.c.l.b16 %v451
        %v861 = vunpack.c.h.b16 %v451
        %v862 = vunpack.c.l.b16 %v452
        %v863 = vunpack.c.h.b16 %v452
        %v864 = vunpack.c.l.b16 %v453
        %v865 = vunpack.c.h.b16 %v453
        %v866 = vunpack.c.l.b16 %v454
        %v867 = vunpack.c.h.b16 %v454
        %v868 = vunpack.c.l.b16 %v455
        %v869 = vunpack.c.h.b16 %v455
        %v870 = vunpack.c.l.b16 %v456
        %v871 = vunpack.c.h.b16 %v456
        %v872 = vunpack.c.l.b16 %v457
        %v873 = vunpack.c.h.b16 %v457
        %v874 = vunpack.c.l.b16 %v458
        %v875 = vunpack.c.h.b16 %v458
        %v876 = vunpack.c.l.b16 %v459
        %v877 = vunpack.c.h.b16 %v459
        %v878 = vunpack.c.l.b16 %v460
        %v879 = vunpack.c.h.b16 %v460
        %v880 = vunpack.c.l.b16 %v461
        %v881 = vunpack.c.h.b16 %v461
        %v882 = vunpack.c.l.b16 %v462
        %v883 = vunpack.c.h.b16 %v462
        %v884 = vunpack.c.l.b16 %v463
        %v885 = vunpack.c.h.b16 %v463
        %v886 = vunpack.c.l.b16 %v464
        %v887 = vunpack.c.h.b16 %v464
        %v888 = vunpack.c.l.b16 %v465
        %v889 = vunpack.c.h.b16 %v465
        %v890 = vunpack.c.l.b16 %v466
        %v891 = vunpack.c.h.b16 %v466
        %v892 = vunpack.c.l.b16 %v467
        %v893 = vunpack.c.h.b16 %v467
        %v894 = vunpack.c.l.b16 %v468
        %v895 = vunpack.c.h.b16 %v468
        %v896 = vunpack.c.l.b16 %v469
        %v897 = vunpack.c.h.b16 %v469
        %v898 = vunpack.c.l.b16 %v470
        %v899 = vunpack.c.h.b16 %v470
        %v900 = vunpack.c.l.b16 %v471
        %v901 = vunpack.c.h.b16 %v471
        %v902 = vunpack.c.l.b16 %v472
        %v903 = vunpack.c.h.b16 %v472
        %v904 = vunpack.c.l.b16 %v473
        %v905 = vunpack.c.h.b16 %v473
        %v906 = vunpack.c.l.b16 %v474
        %v907 = vunpack.c.h.b16 %v474
        %v908 = vunpack.c.l.b16 %v475
        %v909 = vunpack.c.h.b16 %v475
        %v910 = vunpack.c.l.b16 %v476
        %v911 = vunpack.c.h.b16 %v476
        %v912 = vunpack.c.l.b16 %v477
        %v913 = vunpack.c.h.b16 %v477
        %v914 = vunpack.c.l.b16 %v478
        %v915 = vunpack.c.h.b16 %v478
        %v916 = vunpack.c.l.b16 %v479
        %v917 = vunpack.c.h.b16 %v479
        %v918 = vunpack.c.l.b16 %v480
        %v919 = vunpack.c.h.b16 %v480
        %v920 = vunpack.c.l.b16 %v481
        %v921 = vunpack.c.h.b16 %v481
        %v922 = vunpack.c.l.b16 %v482
        %v923 = vunpack.c.h.b16 %v482
        %v924 = vunpack.c.l.b16 %v483
        %v925 = vunpack.c.h.b16 %v483
        %v926 = vunpack.c.l.b16 %v484
        %v927 = vunpack.c.h.b16 %v484
        %v928 = vunpack.c.l.b16 %v485
        %v929 = vunpack.c.h.b16 %v485
        %v930 = vunpack.c.l.b16 %v486
        %v931 = vunpack.c.h.b16 %v486
        %v932 = vunpack.c.l.b16 %v487
        %v933 = vunpack.c.h.b16 %v487
        %v934 = vunpack.c.l.b16 %v488
        %v935 = vunpack.c.h.b16 %v488
        %v936 = vunpack.c.l.b16 %v489
        %v937 = vunpack.c.h.b16 %v489
        %v938 = vunpack.c.l.b16 %v490
        %v939 = vunpack.c.h.b16 %v490
        %v940 = vunpack.c.l.b16 %v491
        %v941 = vunpack.c.h.b16 %v491
        %v942 = vunpack.c.l.b16 %v492
        %v943 = vunpack.c.h.b16 %v492
        %v944 = vunpack.c.l.b16 %v493
        %v945 = vunpack.c.h.b16 %v493
        %v946 = vunpack.c.l.b16 %v494
        %v947 = vunpack.c.h.b16 %v494
        %v948 = vunpack.c.l.b16 %v495
        %v949 = vunpack.c.h.b16 %v495
        %v950 = vunpack.c.l.b16 %v496
        %v951 = vunpack.c.h.b16 %v496
        %v952 = vunpack.c.l.b16 %v497
        %v953 = vunpack.c.h.b16 %v497
        %v954 = vunpack.c.l.b16 %v498
        %v955 = vunpack.c.h.b16 %v498
        %v956 = vunpack.c.l.b16 %v499
        %v957 = vunpack.c.h.b16 %v499
        %v958 = vunpack.c.l.b16 %v500
        %v959 = vunpack.c.h.b16 %v500
        %v960 = vunpack.c.l.b16 %v501
        %v961 = vunpack.c.h.b16 %v501
        %v962 = vunpack.c.l.b16 %v502
        %v963 = vunpack.c.h.b16 %v502
        %v964 = vunpack.c.l.b16 %v503
        %v965 = vunpack.c.h.b16 %v503
        %v966 = vunpack.c.l.b16 %v504
        %v967 = vunpack.c.h.b16 %v504
        %v968 = vpack.c.b16 %v848, %v846
        %v969 = vpack.c.b16 %v849, %v847
        %v970 = vpack.c.b16 %v852, %v850
        %v971 = vpack.c.b16 %v853, %v851
        %v972 = vpack.c.b16 %v856, %v854
        %v973 = vpack.c.b16 %v857, %v855
        %v974 = vpack.c.b16 %v860, %v858
        %v975 = vpack.c.b16 %v861, %v859
        %v976 = vpack.c.b16 %v864, %v862
        %v977 = vpack.c.b16 %v865, %v863
        %v978 = vpack.c.b16 %v868, %v866
        %v979 = vpack.c.b16 %v869, %v867
        %v980 = vpack.c.b16 %v872, %v870
        %v981 = vpack.c.b16 %v873, %v871
        %v982 = vpack.c.b16 %v876, %v874
        %v983 = vpack.c.b16 %v877, %v875
        %v984 = vpack.c.b16 %v880, %v878
        %v985 = vpack.c.b16 %v881, %v879
        %v986 = vpack.c.b16 %v884, %v882
        %v987 = vpack.c.b16 %v885, %v883
        %v988 = vpack.c.b16 %v888, %v886
        %v989 = vpack.c.b16 %v889, %v887
        %v990 = vpack.c.b16 %v892, %v890
        %v991 = vpack.c.b16 %v893, %v891
        %v992 = vpack.c.b16 %v896, %v894
        %v993 = vpack.c.b16 %v897, %v895
        %v994 = vpack.c.b16 %v900, %v898
        %v995 = vpack.c.b16 %v901, %v899
        %v996 = vpack.c.b16 %v904, %v902
        %v997 = vpack.c.b16 %v905, %v903
        %v998 = vpack.c.b16 %v908, %v906
        %v999 = vpack.c.b16 %v909, %v907
        %v1000 = vpack.c.b16 %v912, %v910
        %v1001 = vpack.c.b16 %v913, %v911
        %v1002 = vpack.c.b16 %v916, %v914
        %v1003 = vpack.c.b16 %v917, %v915
        %v1004 = vpack.c.b16 %v920, %v918
        %v1005 = vpack.c.b16 %v921, %v919
        %v1006 = vpack.c.b16 %v924, %v922
        %v1007 = vpack.c.b16 %v925, %v923
        %v1008 = vpack.c.b16 %v928, %v926
        %v1009 = vpack.c.b16 %v929, %v927
        %v1010 = vpack.c.b16 %v932, %v930
        %v1011 = vpack.c.b16 %v933, %v931
        %v1012 = vpack.c.b16 %v936, %v934
        %v1013 = vpack.c.b16 %v937, %v935
        %v1014 = vpack.c.b16 %v940, %v938
        %v1015 = vpack.c.b16 %v941, %v939
        %v1016 = vpack.c.b16 %v944, %v942
        %v1017 = vpack.c.b16 %v945, %v943
        %v1018 = vpack.c.b16 %v948, %v946
        %v1019 = vpack.c.b16 %v949, %v947
        %v1020 = vpack.c.b16 %v952, %v950
        %v1021 = vpack.c.b16 %v953, %v951
        %v1022 = vpack.c.b16 %v956, %v954
        %v1023 = vpack.c.b16 %v957, %v955
        %v1024 = vpack.c.b16 %v960, %v958
        %v1025 = vpack.c.b16 %v961, %v959
        %v1026 = vpack.c.b16 %v964, %v962
        %v1027 = vpack.c.b16 %v965, %v963
        %v1028 = vpack.c.b16 %v966, %v966
        %v1029 = vpack.c.b16 %v967, %v967
        %vm1090 = vcmask 818176
        %v1092 = vsel %vm1090, %v732, 0
        %v1095 = vsel %vm1090, %v736, 0
        %v1098 = vsel %vm1090, %v740, 0
        %v1101 = vsel %vm1090, %v744, 0
        %v1104 = vsel %vm1090, %v748, 0
        %v1107 = vsel %vm1090, %v752, 0
        %v1110 = vsel %vm1090, %v756, 0
        %v1113 = vsel %vm1090, %v760, 0
        %vm1115 = vcmask 1041408
        %v1117 = vsel %vm1115, %v1028, 0
        %v1120 = vsel %vm1115, %v1029, 0
        %1122 = vmatpush.bf16.msra.mxu0 %v982
        %1123 = vmatpush.bf16.msra.mxu0 %v980
        %1124 = vmatpush.bf16.msra.mxu0 %v978
        %1125 = vmatpush.bf16.msra.mxu0 %v976
        %1126 = vmatpush.bf16.msra.mxu0 %v974
        %1127 = vmatpush.bf16.msra.mxu0 %v972
        %1128 = vmatpush.bf16.msra.mxu0 %v970
        %1129 = vmatpush.bf16.msra.mxu0 %v968
        %1130 = vmatmul.bf16.gmra.mxu0 %v729
        %v1131 = vpop.f32.mrf.mxu0
        %v1132 = vadd.f32 %v556, %v1131
        %v1133 = vpop.f32.mrf.mxu0
        %v1134 = vadd.f32 %v561, %v1133
        %1135 = vmatmul.bf16.gmra.mxu0 %v733
        %v1136 = vpop.f32.mrf.mxu0
        %v1137 = vadd.f32 %v566, %v1136
        %v1138 = vpop.f32.mrf.mxu0
        %v1139 = vadd.f32 %v571, %v1138
        %1140 = vmatmul.bf16.gmra.mxu0 %v737
        %v1141 = vpop.f32.mrf.mxu0
        %v1142 = vadd.f32 %v576, %v1141
        %v1143 = vpop.f32.mrf.mxu0
        %v1144 = vadd.f32 %v581, %v1143
        %1145 = vmatmul.bf16.gmra.mxu0 %v741
        %v1146 = vpop.f32.mrf.mxu0
        %v1147 = vadd.f32 %v586, %v1146
        %v1148 = vpop.f32.mrf.mxu0
        %v1149 = vadd.f32 %v591, %v1148
        %1150 = vmatmul.bf16.gmra.mxu0 %v745
        %v1151 = vpop.f32.mrf.mxu0
        %v1152 = vadd.f32 %v596, %v1151
        %v1153 = vpop.f32.mrf.mxu0
        %v1154 = vadd.f32 %v601, %v1153
        %1155 = vmatmul.bf16.gmra.mxu0 %v749
        %v1156 = vpop.f32.mrf.mxu0
        %v1157 = vadd.f32 %v606, %v1156
        %v1158 = vpop.f32.mrf.mxu0
        %v1159 = vadd.f32 %v611, %v1158
        %1160 = vmatmul.bf16.gmra.mxu0 %v753
        %v1161 = vpop.f32.mrf.mxu0
        %v1162 = vadd.f32 %v616, %v1161
        %v1163 = vpop.f32.mrf.mxu0
        %v1164 = vadd.f32 %v621, %v1163
        %1165 = vmatmul.bf16.gmra.mxu0 %v757
        %v1166 = vpop.f32.mrf.mxu0
        %v1167 = vadd.f32 %v626, %v1166
        %v1168 = vpop.f32.mrf.mxu0
        %v1169 = vadd.f32 %v631, %v1168
        %1170 = vdwg.mxu0
        %1171 = vmatpush.bf16.msra.mxu0 %v998
        %1172 = vmatpush.bf16.msra.mxu0 %v996
        %1173 = vmatpush.bf16.msra.mxu0 %v994
        %1174 = vmatpush.bf16.msra.mxu0 %v992
        %1175 = vmatpush.bf16.msra.mxu0 %v990
        %1176 = vmatpush.bf16.msra.mxu0 %v988
        %1177 = vmatpush.bf16.msra.mxu0 %v986
        %1178 = vmatpush.bf16.msra.mxu0 %v984
        %1179 = vmatmul.bf16.gmra.mxu0 %v730
        %v1180 = vpop.f32.mrf.mxu0
        %v1181 = vadd.f32 %v1132, %v1180
        %v1182 = vpop.f32.mrf.mxu0
        %v1183 = vadd.f32 %v1134, %v1182
        %1184 = vmatmul.bf16.gmra.mxu0 %v734
        %v1185 = vpop.f32.mrf.mxu0
        %v1186 = vadd.f32 %v1137, %v1185
        %v1187 = vpop.f32.mrf.mxu0
        %v1188 = vadd.f32 %v1139, %v1187
        %1189 = vmatmul.bf16.gmra.mxu0 %v738
        %v1190 = vpop.f32.mrf.mxu0
        %v1191 = vadd.f32 %v1142, %v1190
        %v1192 = vpop.f32.mrf.mxu0
        %v1193 = vadd.f32 %v1144, %v1192
        %1194 = vmatmul.bf16.gmra.mxu0 %v742
        %v1195 = vpop.f32.mrf.mxu0
        %v1196 = vadd.f32 %v1147, %v1195
        %v1197 = vpop.f32.mrf.mxu0
        %v1198 = vadd.f32 %v1149, %v1197
        %1199 = vmatmul.bf16.gmra.mxu0 %v746
        %v1200 = vpop.f32.mrf.mxu0
        %v1201 = vadd.f32 %v1152, %v1200
        %v1202 = vpop.f32.mrf.mxu0
        %v1203 = vadd.f32 %v1154, %v1202
        %1204 = vmatmul.bf16.gmra.mxu0 %v750
        %v1205 = vpop.f32.mrf.mxu0
        %v1206 = vadd.f32 %v1157, %v1205
        %v1207 = vpop.f32.mrf.mxu0
        %v1208 = vadd.f32 %v1159, %v1207
        %1209 = vmatmul.bf16.gmra.mxu0 %v754
        %v1210 = vpop.f32.mrf.mxu0
        %v1211 = vadd.f32 %v1162, %v1210
        %v1212 = vpop.f32.mrf.mxu0
        %v1213 = vadd.f32 %v1164, %v1212
        %1214 = vmatmul.bf16.gmra.mxu0 %v758
        %v1215 = vpop.f32.mrf.mxu0
        %v1216 = vadd.f32 %v1167, %v1215
        %v1217 = vpop.f32.mrf.mxu0
        %v1218 = vadd.f32 %v1169, %v1217
        %1219 = vdwg.mxu0
        %1220 = vmatpush.bf16.msra.mxu0 %v1014
        %1221 = vmatpush.bf16.msra.mxu0 %v1012
        %1222 = vmatpush.bf16.msra.mxu0 %v1010
        %1223 = vmatpush.bf16.msra.mxu0 %v1008
        %1224 = vmatpush.bf16.msra.mxu0 %v1006
        %1225 = vmatpush.bf16.msra.mxu0 %v1004
        %1226 = vmatpush.bf16.msra.mxu0 %v1002
        %1227 = vmatpush.bf16.msra.mxu0 %v1000
        %1228 = vmatmul.bf16.gmra.mxu0 %v731
        %v1229 = vpop.f32.mrf.mxu0
        %v1230 = vadd.f32 %v1181, %v1229
        %v1231 = vpop.f32.mrf.mxu0
        %v1232 = vadd.f32 %v1183, %v1231
        %1233 = vmatmul.bf16.gmra.mxu0 %v735
        %v1234 = vpop.f32.mrf.mxu0
        %v1235 = vadd.f32 %v1186, %v1234
        %v1236 = vpop.f32.mrf.mxu0
        %v1237 = vadd.f32 %v1188, %v1236
        %1238 = vmatmul.bf16.gmra.mxu0 %v739
        %v1239 = vpop.f32.mrf.mxu0
        %v1240 = vadd.f32 %v1191, %v1239
        %v1241 = vpop.f32.mrf.mxu0
        %v1242 = vadd.f32 %v1193, %v1241
        %1243 = vmatmul.bf16.gmra.mxu0 %v743
        %v1244 = vpop.f32.mrf.mxu0
        %v1245 = vadd.f32 %v1196, %v1244
        %v1246 = vpop.f32.mrf.mxu0
        %v1247 = vadd.f32 %v1198, %v1246
        %1248 = vmatmul.bf16.gmra.mxu0 %v747
        %v1249 = vpop.f32.mrf.mxu0
        %v1250 = vadd.f32 %v1201, %v1249
        %v1251 = vpop.f32.mrf.mxu0
        %v1252 = vadd.f32 %v1203, %v1251
        %1253 = vmatmul.bf16.gmra.mxu0 %v751
        %v1254 = vpop.f32.mrf.mxu0
        %v1255 = vadd.f32 %v1206, %v1254
        %v1256 = vpop.f32.mrf.mxu0
        %v1257 = vadd.f32 %v1208, %v1256
        %1258 = vmatmul.bf16.gmra.mxu0 %v755
        %v1259 = vpop.f32.mrf.mxu0
        %v1260 = vadd.f32 %v1211, %v1259
        %v1261 = vpop.f32.mrf.mxu0
        %v1262 = vadd.f32 %v1213, %v1261
        %1263 = vmatmul.bf16.gmra.mxu0 %v759
        %v1264 = vpop.f32.mrf.mxu0
        %v1265 = vadd.f32 %v1216, %v1264
        %v1266 = vpop.f32.mrf.mxu0
        %v1267 = vadd.f32 %v1218, %v1266
        %1268 = vdwg.mxu0
        %1269 = vmatpush.bf16.msra.mxu0 0
        %1270 = vmatpush.bf16.msra.mxu0 %v1117
        %1271 = vmatpush.bf16.msra.mxu0 %v1026
        %1272 = vmatpush.bf16.msra.mxu0 %v1024
        %1273 = vmatpush.bf16.msra.mxu0 %v1022
        %1274 = vmatpush.bf16.msra.mxu0 %v1020
        %1275 = vmatpush.bf16.msra.mxu0 %v1018
        %1276 = vmatpush.bf16.msra.mxu0 %v1016
        %1277 = vmatmul.bf16.gmra.mxu0 %v1092
        %v1278 = vpop.f32.mrf.mxu0
        %v1279 = vadd.f32 %v1230, %v1278
        %v1280 = vpop.f32.mrf.mxu0
        %v1281 = vadd.f32 %v1232, %v1280
        %1282 = vmatmul.bf16.gmra.mxu0 %v1095
        %v1283 = vpop.f32.mrf.mxu0
        %v1284 = vadd.f32 %v1235, %v1283
        %v1285 = vpop.f32.mrf.mxu0
        %v1286 = vadd.f32 %v1237, %v1285
        %1287 = vmatmul.bf16.gmra.mxu0 %v1098
        %v1288 = vpop.f32.mrf.mxu0
        %v1289 = vadd.f32 %v1240, %v1288
        %v1290 = vpop.f32.mrf.mxu0
        %v1291 = vadd.f32 %v1242, %v1290
        %1292 = vmatmul.bf16.gmra.mxu0 %v1101
        %v1293 = vpop.f32.mrf.mxu0
        %v1294 = vadd.f32 %v1245, %v1293
        %v1295 = vpop.f32.mrf.mxu0
        %v1296 = vadd.f32 %v1247, %v1295
        %1297 = vmatmul.bf16.gmra.mxu0 %v1104
        %v1298 = vpop.f32.mrf.mxu0
        %v1299 = vadd.f32 %v1250, %v1298
        %v1300 = vpop.f32.mrf.mxu0
        %v1301 = vadd.f32 %v1252, %v1300
        %1302 = vmatmul.bf16.gmra.mxu0 %v1107
        %v1303 = vpop.f32.mrf.mxu0
        %v1304 = vadd.f32 %v1255, %v1303
        %v1305 = vpop.f32.mrf.mxu0
        %v1306 = vadd.f32 %v1257, %v1305
        %1307 = vmatmul.bf16.gmra.mxu0 %v1110
        %v1308 = vpop.f32.mrf.mxu0
        %v1309 = vadd.f32 %v1260, %v1308
        %v1310 = vpop.f32.mrf.mxu0
        %v1311 = vadd.f32 %v1262, %v1310
        %1312 = vmatmul.bf16.gmra.mxu0 %v1113
        %v1313 = vpop.f32.mrf.mxu0
        %v1314 = vadd.f32 %v1265, %v1313
        %v1315 = vpop.f32.mrf.mxu0
        %v1316 = vadd.f32 %v1267, %v1315
        %1317 = vdwg.mxu0
        %1318 = vmatpush.bf16.msra.mxu0 %v983
        %1319 = vmatpush.bf16.msra.mxu0 %v981
        %1320 = vmatpush.bf16.msra.mxu0 %v979
        %1321 = vmatpush.bf16.msra.mxu0 %v977
        %1322 = vmatpush.bf16.msra.mxu0 %v975
        %1323 = vmatpush.bf16.msra.mxu0 %v973
        %1324 = vmatpush.bf16.msra.mxu0 %v971
        %1325 = vmatpush.bf16.msra.mxu0 %v969
        %1326 = vmatmul.bf16.gmra.mxu0 %v729
        %v1327 = vpop.f32.mrf.mxu0
        %v1328 = vadd.f32 %v556, %v1327
        %v1329 = vpop.f32.mrf.mxu0
        %v1330 = vadd.f32 %v561, %v1329
        %1331 = vmatmul.bf16.gmra.mxu0 %v733
        %v1332 = vpop.f32.mrf.mxu0
        %v1333 = vadd.f32 %v566, %v1332
        %v1334 = vpop.f32.mrf.mxu0
        %v1335 = vadd.f32 %v571, %v1334
        %1336 = vmatmul.bf16.gmra.mxu0 %v737
        %v1337 = vpop.f32.mrf.mxu0
        %v1338 = vadd.f32 %v576, %v1337
        %v1339 = vpop.f32.mrf.mxu0
        %v1340 = vadd.f32 %v581, %v1339
        %1341 = vmatmul.bf16.gmra.mxu0 %v741
        %v1342 = vpop.f32.mrf.mxu0
        %v1343 = vadd.f32 %v586, %v1342
        %v1344 = vpop.f32.mrf.mxu0
        %v1345 = vadd.f32 %v591, %v1344
        %1346 = vmatmul.bf16.gmra.mxu0 %v745
        %v1347 = vpop.f32.mrf.mxu0
        %v1348 = vadd.f32 %v596, %v1347
        %v1349 = vpop.f32.mrf.mxu0
        %v1350 = vadd.f32 %v601, %v1349
        %1351 = vmatmul.bf16.gmra.mxu0 %v749
        %v1352 = vpop.f32.mrf.mxu0
        %v1353 = vadd.f32 %v606, %v1352
        %v1354 = vpop.f32.mrf.mxu0
        %v1355 = vadd.f32 %v611, %v1354
        %1356 = vmatmul.bf16.gmra.mxu0 %v753
        %v1357 = vpop.f32.mrf.mxu0
        %v1358 = vadd.f32 %v616, %v1357
        %v1359 = vpop.f32.mrf.mxu0
        %v1360 = vadd.f32 %v621, %v1359
        %1361 = vmatmul.bf16.gmra.mxu0 %v757
        %v1362 = vpop.f32.mrf.mxu0
        %v1363 = vadd.f32 %v626, %v1362
        %v1364 = vpop.f32.mrf.mxu0
        %v1365 = vadd.f32 %v631, %v1364
        %1366 = vdwg.mxu0
        %1367 = vmatpush.bf16.msra.mxu0 %v999
        %1368 = vmatpush.bf16.msra.mxu0 %v997
        %1369 = vmatpush.bf16.msra.mxu0 %v995
        %1370 = vmatpush.bf16.msra.mxu0 %v993
        %1371 = vmatpush.bf16.msra.mxu0 %v991
        %1372 = vmatpush.bf16.msra.mxu0 %v989
        %1373 = vmatpush.bf16.msra.mxu0 %v987
        %1374 = vmatpush.bf16.msra.mxu0 %v985
        %1375 = vmatmul.bf16.gmra.mxu0 %v730
        %v1376 = vpop.f32.mrf.mxu0
        %v1377 = vadd.f32 %v1328, %v1376
        %v1378 = vpop.f32.mrf.mxu0
        %v1379 = vadd.f32 %v1330, %v1378
        %1380 = vmatmul.bf16.gmra.mxu0 %v734
        %v1381 = vpop.f32.mrf.mxu0
        %v1382 = vadd.f32 %v1333, %v1381
        %v1383 = vpop.f32.mrf.mxu0
        %v1384 = vadd.f32 %v1335, %v1383
        %1385 = vmatmul.bf16.gmra.mxu0 %v738
        %v1386 = vpop.f32.mrf.mxu0
        %v1387 = vadd.f32 %v1338, %v1386
        %v1388 = vpop.f32.mrf.mxu0
        %v1389 = vadd.f32 %v1340, %v1388
        %1390 = vmatmul.bf16.gmra.mxu0 %v742
        %v1391 = vpop.f32.mrf.mxu0
        %v1392 = vadd.f32 %v1343, %v1391
        %v1393 = vpop.f32.mrf.mxu0
        %v1394 = vadd.f32 %v1345, %v1393
        %1395 = vmatmul.bf16.gmra.mxu0 %v746
        %v1396 = vpop.f32.mrf.mxu0
        %v1397 = vadd.f32 %v1348, %v1396
        %v1398 = vpop.f32.mrf.mxu0
        %v1399 = vadd.f32 %v1350, %v1398
        %1400 = vmatmul.bf16.gmra.mxu0 %v750
        %v1401 = vpop.f32.mrf.mxu0
        %v1402 = vadd.f32 %v1353, %v1401
        %v1403 = vpop.f32.mrf.mxu0
        %v1404 = vadd.f32 %v1355, %v1403
        %1405 = vmatmul.bf16.gmra.mxu0 %v754
        %v1406 = vpop.f32.mrf.mxu0
        %v1407 = vadd.f32 %v1358, %v1406
        %v1408 = vpop.f32.mrf.mxu0
        %v1409 = vadd.f32 %v1360, %v1408
        %1410 = vmatmul.bf16.gmra.mxu0 %v758
        %v1411 = vpop.f32.mrf.mxu0
        %v1412 = vadd.f32 %v1363, %v1411
        %v1413 = vpop.f32.mrf.mxu0
        %v1414 = vadd.f32 %v1365, %v1413
        %1415 = vdwg.mxu0
        %1416 = vmatpush.bf16.msra.mxu0 %v1015
        %1417 = vmatpush.bf16.msra.mxu0 %v1013
        %1418 = vmatpush.bf16.msra.mxu0 %v1011
        %1419 = vmatpush.bf16.msra.mxu0 %v1009
        %1420 = vmatpush.bf16.msra.mxu0 %v1007
        %1421 = vmatpush.bf16.msra.mxu0 %v1005
        %1422 = vmatpush.bf16.msra.mxu0 %v1003
        %1423 = vmatpush.bf16.msra.mxu0 %v1001
        %1424 = vmatmul.bf16.gmra.mxu0 %v731
        %v1425 = vpop.f32.mrf.mxu0
        %v1426 = vadd.f32 %v1377, %v1425
        %v1427 = vpop.f32.mrf.mxu0
        %v1428 = vadd.f32 %v1379, %v1427
        %1429 = vmatmul.bf16.gmra.mxu0 %v735
        %v1430 = vpop.f32.mrf.mxu0
        %v1431 = vadd.f32 %v1382, %v1430
        %v1432 = vpop.f32.mrf.mxu0
        %v1433 = vadd.f32 %v1384, %v1432
        %1434 = vmatmul.bf16.gmra.mxu0 %v739
        %v1435 = vpop.f32.mrf.mxu0
        %v1436 = vadd.f32 %v1387, %v1435
        %v1437 = vpop.f32.mrf.mxu0
        %v1438 = vadd.f32 %v1389, %v1437
        %1439 = vmatmul.bf16.gmra.mxu0 %v743
        %v1440 = vpop.f32.mrf.mxu0
        %v1441 = vadd.f32 %v1392, %v1440
        %v1442 = vpop.f32.mrf.mxu0
        %v1443 = vadd.f32 %v1394, %v1442
        %1444 = vmatmul.bf16.gmra.mxu0 %v747
        %v1445 = vpop.f32.mrf.mxu0
        %v1446 = vadd.f32 %v1397, %v1445
        %v1447 = vpop.f32.mrf.mxu0
        %v1448 = vadd.f32 %v1399, %v1447
        %1449 = vmatmul.bf16.gmra.mxu0 %v751
        %v1450 = vpop.f32.mrf.mxu0
        %v1451 = vadd.f32 %v1402, %v1450
        %v1452 = vpop.f32.mrf.mxu0
        %v1453 = vadd.f32 %v1404, %v1452
        %1454 = vmatmul.bf16.gmra.mxu0 %v755
        %v1455 = vpop.f32.mrf.mxu0
        %v1456 = vadd.f32 %v1407, %v1455
        %v1457 = vpop.f32.mrf.mxu0
        %v1458 = vadd.f32 %v1409, %v1457
        %1459 = vmatmul.bf16.gmra.mxu0 %v759
        %v1460 = vpop.f32.mrf.mxu0
        %v1461 = vadd.f32 %v1412, %v1460
        %v1462 = vpop.f32.mrf.mxu0
        %v1463 = vadd.f32 %v1414, %v1462
        %1464 = vdwg.mxu0
        %1465 = vmatpush.bf16.msra.mxu0 0
        %1466 = vmatpush.bf16.msra.mxu0 %v1120
        %1467 = vmatpush.bf16.msra.mxu0 %v1027
        %1468 = vmatpush.bf16.msra.mxu0 %v1025
        %1469 = vmatpush.bf16.msra.mxu0 %v1023
        %1470 = vmatpush.bf16.msra.mxu0 %v1021
        %1471 = vmatpush.bf16.msra.mxu0 %v1019
        %1472 = vmatpush.bf16.msra.mxu0 %v1017
        %1473 = vmatmul.bf16.gmra.mxu0 %v1092
        %v1474 = vpop.f32.mrf.mxu0
        %v1475 = vadd.f32 %v1426, %v1474
        %v1476 = vpop.f32.mrf.mxu0
        %v1477 = vadd.f32 %v1428, %v1476
        %1478 = vmatmul.bf16.gmra.mxu0 %v1095
        %v1479 = vpop.f32.mrf.mxu0
        %v1480 = vadd.f32 %v1431, %v1479
        %v1481 = vpop.f32.mrf.mxu0
        %v1482 = vadd.f32 %v1433, %v1481
        %1483 = vmatmul.bf16.gmra.mxu0 %v1098
        %v1484 = vpop.f32.mrf.mxu0
        %v1485 = vadd.f32 %v1436, %v1484
        %v1486 = vpop.f32.mrf.mxu0
        %v1487 = vadd.f32 %v1438, %v1486
        %1488 = vmatmul.bf16.gmra.mxu0 %v1101
        %v1489 = vpop.f32.mrf.mxu0
        %v1490 = vadd.f32 %v1441, %v1489
        %v1491 = vpop.f32.mrf.mxu0
        %v1492 = vadd.f32 %v1443, %v1491
        %1493 = vmatmul.bf16.gmra.mxu0 %v1104
        %v1494 = vpop.f32.mrf.mxu0
        %v1495 = vadd.f32 %v1446, %v1494
        %v1496 = vpop.f32.mrf.mxu0
        %v1497 = vadd.f32 %v1448, %v1496
        %1498 = vmatmul.bf16.gmra.mxu0 %v1107
        %v1499 = vpop.f32.mrf.mxu0
        %v1500 = vadd.f32 %v1451, %v1499
        %v1501 = vpop.f32.mrf.mxu0
        %v1502 = vadd.f32 %v1453, %v1501
        %1503 = vmatmul.bf16.gmra.mxu0 %v1110
        %v1504 = vpop.f32.mrf.mxu0
        %v1505 = vadd.f32 %v1456, %v1504
        %v1506 = vpop.f32.mrf.mxu0
        %v1507 = vadd.f32 %v1458, %v1506
        %1508 = vmatmul.bf16.gmra.mxu0 %v1113
        %v1509 = vpop.f32.mrf.mxu0
        %v1510 = vadd.f32 %v1461, %v1509
        %v1511 = vpop.f32.mrf.mxu0
        %v1512 = vadd.f32 %v1463, %v1511
        %1513 = vdwg.mxu0
        %v1514 = vld [vmem:[%s2] sm:$0xf]
        %v1515 = vld [vmem:[%s2 + $0x4] sm:$0xf]
        %v1516 = vld [vmem:[%s2 + $0x8] sm:$0xf]
        %v1517 = vld [vmem:[%s2 + $0xc] sm:$0xf]
        %v1518 = vld [vmem:[%s2 + $0x10] sm:$0xf]
        %v1519 = vld [vmem:[%s2 + $0x14] sm:$0xf]
        %v1520 = vld [vmem:[%s2 + $0x18] sm:$0xf]
        %v1521 = vld [vmem:[%s2 + $0x1c] sm:$0xf]
        %v1522 = vld [vmem:[%s2 + $0x20] sm:$0xf]
        %v1523 = vld [vmem:[%s2 + $0x24] sm:$0xf]
        %v1524 = vld [vmem:[%s2 + $0x28] sm:$0xf]
        %v1525 = vld [vmem:[%s2 + $0x2c] sm:$0xf]
        %v1526 = vld [vmem:[%s2 + $0x30] sm:$0xf]
        %v1527 = vld [vmem:[%s2 + $0x34] sm:$0xf]
        %v1528 = vld [vmem:[%s2 + $0x38] sm:$0xf]
        %v1529 = vld [vmem:[%s2 + $0x3c] sm:$0xf]
        %v1530 = vpack.c.bf16 %v1281, %v1279
        %v1531 = vpack.c.bf16 %v1477, %v1475
        %v1532 = vpack.c.bf16 %v1286, %v1284
        %v1533 = vpack.c.bf16 %v1482, %v1480
        %v1534 = vpack.c.bf16 %v1291, %v1289
        %v1535 = vpack.c.bf16 %v1487, %v1485
        %v1536 = vpack.c.bf16 %v1296, %v1294
        %v1537 = vpack.c.bf16 %v1492, %v1490
        %v1538 = vpack.c.bf16 %v1301, %v1299
        %v1539 = vpack.c.bf16 %v1497, %v1495
        %v1540 = vpack.c.bf16 %v1306, %v1304
        %v1541 = vpack.c.bf16 %v1502, %v1500
        %v1542 = vpack.c.bf16 %v1311, %v1309
        %v1543 = vpack.c.bf16 %v1507, %v1505
        %v1544 = vpack.c.bf16 %v1316, %v1314
        %v1545 = vpack.c.bf16 %v1512, %v1510
        %v1546 = vld [vmem:[%s11 + $0x80] sm:$0xff]
        %v1547 = vld [vmem:[%s11 + $0x88] sm:$0xff]
        %v1548 = vld [vmem:[%s11 + $0x90] sm:$0xff]
        %v1549 = vld [vmem:[%s11 + $0x98] sm:$0xff]
        %v1550 = vld [vmem:[%s11 + $0xa0] sm:$0xff]
        %v1551 = vld [vmem:[%s11 + $0xa8] sm:$0xff]
        %v1552 = vld [vmem:[%s11 + $0xb0] sm:$0xff]
        %v1553 = vld [vmem:[%s11 + $0xb8] sm:$0xff]
        %v1554 = vld [vmem:[%s11 + $0xc0] sm:$0xff]
        %v1555 = vld [vmem:[%s11 + $0xc8] sm:$0xff]
        %v1556 = vld [vmem:[%s11 + $0xd0] sm:$0xff]
        %v1557 = vld [vmem:[%s11 + $0xd8] sm:$0xff]
        %v1558 = vld [vmem:[%s11 + $0xe0] sm:$0xff]
        %v1559 = vld [vmem:[%s11 + $0xe8] sm:$0xff]
        %v1560 = vld [vmem:[%s11 + $0xf0] sm:$0xff]
        %v1561 = vld [vmem:[%s11 + $0xf8] sm:$0xff]
        %1563 = vset.pattern.permute.xlu0 0
        %1564 = vperm.xlu0 %1563, %v1546
        %v1565 = vpop.permute.xlu0 %1564
        %1568 = vset.pattern.permute.xlu0 0
        %1569 = vperm.xlu0 %1568, %v1547
        %v1570 = vpop.permute.xlu0 %1569
        %1573 = vset.pattern.permute.xlu0 0
        %1574 = vperm.xlu0 %1573, %v1548
        %v1575 = vpop.permute.xlu0 %1574
        %1578 = vset.pattern.permute.xlu0 0
        %1579 = vperm.xlu0 %1578, %v1549
        %v1580 = vpop.permute.xlu0 %1579
        %1583 = vset.pattern.permute.xlu0 0
        %1584 = vperm.xlu0 %1583, %v1550
        %v1585 = vpop.permute.xlu0 %1584
        %1588 = vset.pattern.permute.xlu0 0
        %1589 = vperm.xlu0 %1588, %v1551
        %v1590 = vpop.permute.xlu0 %1589
        %1593 = vset.pattern.permute.xlu0 0
        %1594 = vperm.xlu0 %1593, %v1552
        %v1595 = vpop.permute.xlu0 %1594
        %1598 = vset.pattern.permute.xlu0 0
        %1599 = vperm.xlu0 %1598, %v1553
        %v1600 = vpop.permute.xlu0 %1599
        %1603 = vset.pattern.permute.xlu0 0
        %1604 = vperm.xlu0 %1603, %v1554
        %v1605 = vpop.permute.xlu0 %1604
        %1608 = vset.pattern.permute.xlu0 0
        %1609 = vperm.xlu0 %1608, %v1555
        %v1610 = vpop.permute.xlu0 %1609
        %1613 = vset.pattern.permute.xlu0 0
        %1614 = vperm.xlu0 %1613, %v1556
        %v1615 = vpop.permute.xlu0 %1614
        %1618 = vset.pattern.permute.xlu0 0
        %1619 = vperm.xlu0 %1618, %v1557
        %v1620 = vpop.permute.xlu0 %1619
        %1623 = vset.pattern.permute.xlu0 0
        %1624 = vperm.xlu0 %1623, %v1558
        %v1625 = vpop.permute.xlu0 %1624
        %1628 = vset.pattern.permute.xlu0 0
        %1629 = vperm.xlu0 %1628, %v1559
        %v1630 = vpop.permute.xlu0 %1629
        %1633 = vset.pattern.permute.xlu0 0
        %1634 = vperm.xlu0 %1633, %v1560
        %v1635 = vpop.permute.xlu0 %1634
        %1638 = vset.pattern.permute.xlu0 0
        %1639 = vperm.xlu0 %1638, %v1561
        %v1640 = vpop.permute.xlu0 %1639
        %v1658 = vunpack.c.l.b16 %v1514
        %v1659 = vunpack.c.l.b16 %v1515
        %v1660 = vunpack.c.l.b16 %v1516
        %v1661 = vunpack.c.l.b16 %v1517
        %v1662 = vunpack.c.l.b16 %v1518
        %v1663 = vunpack.c.l.b16 %v1519
        %v1664 = vunpack.c.l.b16 %v1520
        %v1665 = vunpack.c.l.b16 %v1521
        %v1666 = vunpack.c.l.b16 %v1522
        %v1667 = vunpack.c.l.b16 %v1523
        %v1668 = vunpack.c.l.b16 %v1524
        %v1669 = vunpack.c.l.b16 %v1525
        %v1670 = vunpack.c.l.b16 %v1526
        %v1671 = vunpack.c.l.b16 %v1527
        %v1672 = vunpack.c.l.b16 %v1528
        %v1673 = vunpack.c.l.b16 %v1529
        %v1674 = vpack.c.b16 %v1659, %v1658
        %v1675 = vpack.c.b16 %v1661, %v1660
        %v1676 = vpack.c.b16 %v1663, %v1662
        %v1677 = vpack.c.b16 %v1665, %v1664
        %v1678 = vpack.c.b16 %v1667, %v1666
        %v1679 = vpack.c.b16 %v1669, %v1668
        %v1680 = vpack.c.b16 %v1671, %v1670
        %v1681 = vpack.c.b16 %v1673, %v1672
        %1690 = vmatpush.bf16.msra.mxu0 %v1544
        %1691 = vmatpush.bf16.msra.mxu0 %v1542
        %1692 = vmatpush.bf16.msra.mxu0 %v1540
        %1693 = vmatpush.bf16.msra.mxu0 %v1538
        %1694 = vmatpush.bf16.msra.mxu0 %v1536
        %1695 = vmatpush.bf16.msra.mxu0 %v1534
        %1696 = vmatpush.bf16.msra.mxu0 %v1532
        %1697 = vmatpush.bf16.msra.mxu0 %v1530
        %1698 = vmatmul.bf16.gmra.mxu0 %v1674
        %v1699 = vpop.f32.mrf.mxu0
        %v1700 = vadd.f32 %v1565, %v1699
        %v1701 = vpop.f32.mrf.mxu0
        %v1702 = vadd.f32 %v1570, %v1701
        %1703 = vmatmul.bf16.gmra.mxu0 %v1675
        %v1704 = vpop.f32.mrf.mxu0
        %v1705 = vadd.f32 %v1575, %v1704
        %v1706 = vpop.f32.mrf.mxu0
        %v1707 = vadd.f32 %v1580, %v1706
        %1708 = vmatmul.bf16.gmra.mxu0 %v1676
        %v1709 = vpop.f32.mrf.mxu0
        %v1710 = vadd.f32 %v1585, %v1709
        %v1711 = vpop.f32.mrf.mxu0
        %v1712 = vadd.f32 %v1590, %v1711
        %1713 = vmatmul.bf16.gmra.mxu0 %v1677
        %v1714 = vpop.f32.mrf.mxu0
        %v1715 = vadd.f32 %v1595, %v1714
        %v1716 = vpop.f32.mrf.mxu0
        %v1717 = vadd.f32 %v1600, %v1716
        %1718 = vmatmul.bf16.gmra.mxu0 %v1678
        %v1719 = vpop.f32.mrf.mxu0
        %v1720 = vadd.f32 %v1605, %v1719
        %v1721 = vpop.f32.mrf.mxu0
        %v1722 = vadd.f32 %v1610, %v1721
        %1723 = vmatmul.bf16.gmra.mxu0 %v1679
        %v1724 = vpop.f32.mrf.mxu0
        %v1725 = vadd.f32 %v1615, %v1724
        %v1726 = vpop.f32.mrf.mxu0
        %v1727 = vadd.f32 %v1620, %v1726
        %1728 = vmatmul.bf16.gmra.mxu0 %v1680
        %v1729 = vpop.f32.mrf.mxu0
        %v1730 = vadd.f32 %v1625, %v1729
        %v1731 = vpop.f32.mrf.mxu0
        %v1732 = vadd.f32 %v1630, %v1731
        %1733 = vmatmul.bf16.gmra.mxu0 %v1681
        %v1734 = vpop.f32.mrf.mxu0
        %v1735 = vadd.f32 %v1635, %v1734
        %v1736 = vpop.f32.mrf.mxu0
        %v1737 = vadd.f32 %v1640, %v1736
        %1738 = vdwg.mxu0
        %1739 = vmatpush.bf16.msra.mxu0 %v1545
        %1740 = vmatpush.bf16.msra.mxu0 %v1543
        %1741 = vmatpush.bf16.msra.mxu0 %v1541
        %1742 = vmatpush.bf16.msra.mxu0 %v1539
        %1743 = vmatpush.bf16.msra.mxu0 %v1537
        %1744 = vmatpush.bf16.msra.mxu0 %v1535
        %1745 = vmatpush.bf16.msra.mxu0 %v1533
        %1746 = vmatpush.bf16.msra.mxu0 %v1531
        %1747 = vmatmul.bf16.gmra.mxu0 %v1674
        %v1748 = vpop.f32.mrf.mxu0
        %v1749 = vadd.f32 %v1565, %v1748
        %v1750 = vpop.f32.mrf.mxu0
        %v1751 = vadd.f32 %v1570, %v1750
        %1752 = vmatmul.bf16.gmra.mxu0 %v1675
        %v1753 = vpop.f32.mrf.mxu0
        %v1754 = vadd.f32 %v1575, %v1753
        %v1755 = vpop.f32.mrf.mxu0
        %v1756 = vadd.f32 %v1580, %v1755
        %1757 = vmatmul.bf16.gmra.mxu0 %v1676
        %v1758 = vpop.f32.mrf.mxu0
        %v1759 = vadd.f32 %v1585, %v1758
        %v1760 = vpop.f32.mrf.mxu0
        %v1761 = vadd.f32 %v1590, %v1760
        %1762 = vmatmul.bf16.gmra.mxu0 %v1677
        %v1763 = vpop.f32.mrf.mxu0
        %v1764 = vadd.f32 %v1595, %v1763
        %v1765 = vpop.f32.mrf.mxu0
        %v1766 = vadd.f32 %v1600, %v1765
        %1767 = vmatmul.bf16.gmra.mxu0 %v1678
        %v1768 = vpop.f32.mrf.mxu0
        %v1769 = vadd.f32 %v1605, %v1768
        %v1770 = vpop.f32.mrf.mxu0
        %v1771 = vadd.f32 %v1610, %v1770
        %1772 = vmatmul.bf16.gmra.mxu0 %v1679
        %v1773 = vpop.f32.mrf.mxu0
        %v1774 = vadd.f32 %v1615, %v1773
        %v1775 = vpop.f32.mrf.mxu0
        %v1776 = vadd.f32 %v1620, %v1775
        %1777 = vmatmul.bf16.gmra.mxu0 %v1680
        %v1778 = vpop.f32.mrf.mxu0
        %v1779 = vadd.f32 %v1625, %v1778
        %v1780 = vpop.f32.mrf.mxu0
        %v1781 = vadd.f32 %v1630, %v1780
        %1782 = vmatmul.bf16.gmra.mxu0 %v1681
        %v1783 = vpop.f32.mrf.mxu0
        %v1784 = vadd.f32 %v1635, %v1783
        %v1785 = vpop.f32.mrf.mxu0
        %v1786 = vadd.f32 %v1640, %v1785
        %1787 = vdwg.mxu0
        %v1788 = vmax.f32 %v1700, 0.0
        %v1789 = vmax.f32 %v1749, 0.0
        %v1790 = vmax.f32 %v1702, 0.0
        %v1791 = vmax.f32 %v1751, 0.0
        %v1792 = vmax.f32 %v1705, 0.0
        %v1793 = vmax.f32 %v1754, 0.0
        %v1794 = vmax.f32 %v1707, 0.0
        %v1795 = vmax.f32 %v1756, 0.0
        %v1796 = vmax.f32 %v1710, 0.0
        %v1797 = vmax.f32 %v1759, 0.0
        %v1798 = vmax.f32 %v1712, 0.0
        %v1799 = vmax.f32 %v1761, 0.0
        %v1800 = vmax.f32 %v1715, 0.0
        %v1801 = vmax.f32 %v1764, 0.0
        %v1802 = vmax.f32 %v1717, 0.0
        %v1803 = vmax.f32 %v1766, 0.0
        %v1804 = vmax.f32 %v1720, 0.0
        %v1805 = vmax.f32 %v1769, 0.0
        %v1806 = vmax.f32 %v1722, 0.0
        %v1807 = vmax.f32 %v1771, 0.0
        %v1808 = vmax.f32 %v1725, 0.0
        %v1809 = vmax.f32 %v1774, 0.0
        %v1810 = vmax.f32 %v1727, 0.0
        %v1811 = vmax.f32 %v1776, 0.0
        %v1812 = vmax.f32 %v1730, 0.0
        %v1813 = vmax.f32 %v1779, 0.0
        %v1814 = vmax.f32 %v1732, 0.0
        %v1815 = vmax.f32 %v1781, 0.0
        %v1816 = vmax.f32 %v1735, 0.0
        %v1817 = vmax.f32 %v1784, 0.0
        %v1818 = vmax.f32 %v1737, 0.0
        %v1819 = vmax.f32 %v1786, 0.0
        %v1820 = vld [vmem:[%s3] sm:$0xf]
        %v1821 = vld [vmem:[%s3 + $0x4] sm:$0xf]
        %v1822 = vld [vmem:[%s3 + $0x8] sm:$0xf]
        %v1823 = vld [vmem:[%s3 + $0xc] sm:$0xf]
        %v1824 = vld [vmem:[%s3 + $0x10] sm:$0xf]
        %v1825 = vld [vmem:[%s3 + $0x14] sm:$0xf]
        %v1826 = vld [vmem:[%s3 + $0x18] sm:$0xf]
        %v1827 = vld [vmem:[%s3 + $0x1c] sm:$0xf]
        %v1828 = vld [vmem:[%s3 + $0x20] sm:$0xf]
        %v1829 = vld [vmem:[%s3 + $0x24] sm:$0xf]
        %v1830 = vld [vmem:[%s3 + $0x28] sm:$0xf]
        %v1831 = vld [vmem:[%s3 + $0x2c] sm:$0xf]
        %v1832 = vld [vmem:[%s3 + $0x30] sm:$0xf]
        %v1833 = vld [vmem:[%s3 + $0x34] sm:$0xf]
        %v1834 = vld [vmem:[%s3 + $0x38] sm:$0xf]
        %v1835 = vld [vmem:[%s3 + $0x3c] sm:$0xf]
        %v1836 = vpack.c.bf16 %v1790, %v1788
        %v1837 = vpack.c.bf16 %v1791, %v1789
        %v1838 = vpack.c.bf16 %v1794, %v1792
        %v1839 = vpack.c.bf16 %v1795, %v1793
        %v1840 = vpack.c.bf16 %v1798, %v1796
        %v1841 = vpack.c.bf16 %v1799, %v1797
        %v1842 = vpack.c.bf16 %v1802, %v1800
        %v1843 = vpack.c.bf16 %v1803, %v1801
        %v1844 = vpack.c.bf16 %v1806, %v1804
        %v1845 = vpack.c.bf16 %v1807, %v1805
        %v1846 = vpack.c.bf16 %v1810, %v1808
        %v1847 = vpack.c.bf16 %v1811, %v1809
        %v1848 = vpack.c.bf16 %v1814, %v1812
        %v1849 = vpack.c.bf16 %v1815, %v1813
        %v1850 = vpack.c.bf16 %v1818, %v1816
        %v1851 = vpack.c.bf16 %v1819, %v1817
        %v1852 = vld [vmem:[%s11 + $0x100] sm:$0xff]
        %v1853 = vld [vmem:[%s11 + $0x108] sm:$0xff]
        %v1854 = vld [vmem:[%s11 + $0x110] sm:$0xff]
        %v1855 = vld [vmem:[%s11 + $0x118] sm:$0xff]
        %v1856 = vld [vmem:[%s11 + $0x120] sm:$0xff]
        %v1857 = vld [vmem:[%s11 + $0x128] sm:$0xff]
        %v1858 = vld [vmem:[%s11 + $0x130] sm:$0xff]
        %v1859 = vld [vmem:[%s11 + $0x138] sm:$0xff]
        %v1860 = vld [vmem:[%s11 + $0x140] sm:$0xff]
        %v1861 = vld [vmem:[%s11 + $0x148] sm:$0xff]
        %v1862 = vld [vmem:[%s11 + $0x150] sm:$0xff]
        %v1863 = vld [vmem:[%s11 + $0x158] sm:$0xff]
        %v1864 = vld [vmem:[%s11 + $0x160] sm:$0xff]
        %v1865 = vld [vmem:[%s11 + $0x168] sm:$0xff]
        %v1866 = vld [vmem:[%s11 + $0x170] sm:$0xff]
        %v1867 = vld [vmem:[%s11 + $0x178] sm:$0xff]
        %1869 = vset.pattern.permute.xlu0 0
        %1870 = vperm.xlu0 %1869, %v1852
        %v1871 = vpop.permute.xlu0 %1870
        %1874 = vset.pattern.permute.xlu0 0
        %1875 = vperm.xlu0 %1874, %v1853
        %v1876 = vpop.permute.xlu0 %1875
        %1879 = vset.pattern.permute.xlu0 0
        %1880 = vperm.xlu0 %1879, %v1854
        %v1881 = vpop.permute.xlu0 %1880
        %1884 = vset.pattern.permute.xlu0 0
        %1885 = vperm.xlu0 %1884, %v1855
        %v1886 = vpop.permute.xlu0 %1885
        %1889 = vset.pattern.permute.xlu0 0
        %1890 = vperm.xlu0 %1889, %v1856
        %v1891 = vpop.permute.xlu0 %1890
        %1894 = vset.pattern.permute.xlu0 0
        %1895 = vperm.xlu0 %1894, %v1857
        %v1896 = vpop.permute.xlu0 %1895
        %1899 = vset.pattern.permute.xlu0 0
        %1900 = vperm.xlu0 %1899, %v1858
        %v1901 = vpop.permute.xlu0 %1900
        %1904 = vset.pattern.permute.xlu0 0
        %1905 = vperm.xlu0 %1904, %v1859
        %v1906 = vpop.permute.xlu0 %1905
        %1909 = vset.pattern.permute.xlu0 0
        %1910 = vperm.xlu0 %1909, %v1860
        %v1911 = vpop.permute.xlu0 %1910
        %1914 = vset.pattern.permute.xlu0 0
        %1915 = vperm.xlu0 %1914, %v1861
        %v1916 = vpop.permute.xlu0 %1915
        %1919 = vset.pattern.permute.xlu0 0
        %1920 = vperm.xlu0 %1919, %v1862
        %v1921 = vpop.permute.xlu0 %1920
        %1924 = vset.pattern.permute.xlu0 0
        %1925 = vperm.xlu0 %1924, %v1863
        %v1926 = vpop.permute.xlu0 %1925
        %1929 = vset.pattern.permute.xlu0 0
        %1930 = vperm.xlu0 %1929, %v1864
        %v1931 = vpop.permute.xlu0 %1930
        %1934 = vset.pattern.permute.xlu0 0
        %1935 = vperm.xlu0 %1934, %v1865
        %v1936 = vpop.permute.xlu0 %1935
        %1939 = vset.pattern.permute.xlu0 0
        %1940 = vperm.xlu0 %1939, %v1866
        %v1941 = vpop.permute.xlu0 %1940
        %1944 = vset.pattern.permute.xlu0 0
        %1945 = vperm.xlu0 %1944, %v1867
        %v1946 = vpop.permute.xlu0 %1945
        %v1964 = vunpack.c.l.b16 %v1820
        %v1965 = vunpack.c.l.b16 %v1821
        %v1966 = vunpack.c.l.b16 %v1822
        %v1967 = vunpack.c.l.b16 %v1823
        %v1968 = vunpack.c.l.b16 %v1824
        %v1969 = vunpack.c.l.b16 %v1825
        %v1970 = vunpack.c.l.b16 %v1826
        %v1971 = vunpack.c.l.b16 %v1827
        %v1972 = vunpack.c.l.b16 %v1828
        %v1973 = vunpack.c.l.b16 %v1829
        %v1974 = vunpack.c.l.b16 %v1830
        %v1975 = vunpack.c.l.b16 %v1831
        %v1976 = vunpack.c.l.b16 %v1832
        %v1977 = vunpack.c.l.b16 %v1833
        %v1978 = vunpack.c.l.b16 %v1834
        %v1979 = vunpack.c.l.b16 %v1835
        %v1980 = vpack.c.b16 %v1965, %v1964
        %v1981 = vpack.c.b16 %v1967, %v1966
        %v1982 = vpack.c.b16 %v1969, %v1968
        %v1983 = vpack.c.b16 %v1971, %v1970
        %v1984 = vpack.c.b16 %v1973, %v1972
        %v1985 = vpack.c.b16 %v1975, %v1974
        %v1986 = vpack.c.b16 %v1977, %v1976
        %v1987 = vpack.c.b16 %v1979, %v1978
        %1996 = vmatpush.bf16.msra.mxu0 %v1850
        %1997 = vmatpush.bf16.msra.mxu0 %v1848
        %1998 = vmatpush.bf16.msra.mxu0 %v1846
        %1999 = vmatpush.bf16.msra.mxu0 %v1844
        %2000 = vmatpush.bf16.msra.mxu0 %v1842
        %2001 = vmatpush.bf16.msra.mxu0 %v1840
        %2002 = vmatpush.bf16.msra.mxu0 %v1838
        %2003 = vmatpush.bf16.msra.mxu0 %v1836
        %2004 = vmatmul.bf16.gmra.mxu0 %v1980
        %v2005 = vpop.f32.mrf.mxu0
        %v2006 = vadd.f32 %v1871, %v2005
        %v2007 = vpop.f32.mrf.mxu0
        %v2008 = vadd.f32 %v1876, %v2007
        %2009 = vmatmul.bf16.gmra.mxu0 %v1981
        %v2010 = vpop.f32.mrf.mxu0
        %v2011 = vadd.f32 %v1881, %v2010
        %v2012 = vpop.f32.mrf.mxu0
        %v2013 = vadd.f32 %v1886, %v2012
        %2014 = vmatmul.bf16.gmra.mxu0 %v1982
        %v2015 = vpop.f32.mrf.mxu0
        %v2016 = vadd.f32 %v1891, %v2015
        %v2017 = vpop.f32.mrf.mxu0
        %v2018 = vadd.f32 %v1896, %v2017
        %2019 = vmatmul.bf16.gmra.mxu0 %v1983
        %v2020 = vpop.f32.mrf.mxu0
        %v2021 = vadd.f32 %v1901, %v2020
        %v2022 = vpop.f32.mrf.mxu0
        %v2023 = vadd.f32 %v1906, %v2022
        %2024 = vmatmul.bf16.gmra.mxu0 %v1984
        %v2025 = vpop.f32.mrf.mxu0
        %v2026 = vadd.f32 %v1911, %v2025
        %v2027 = vpop.f32.mrf.mxu0
        %v2028 = vadd.f32 %v1916, %v2027
        %2029 = vmatmul.bf16.gmra.mxu0 %v1985
        %v2030 = vpop.f32.mrf.mxu0
        %v2031 = vadd.f32 %v1921, %v2030
        %v2032 = vpop.f32.mrf.mxu0
        %v2033 = vadd.f32 %v1926, %v2032
        %2034 = vmatmul.bf16.gmra.mxu0 %v1986
        %v2035 = vpop.f32.mrf.mxu0
        %v2036 = vadd.f32 %v1931, %v2035
        %v2037 = vpop.f32.mrf.mxu0
        %v2038 = vadd.f32 %v1936, %v2037
        %2039 = vmatmul.bf16.gmra.mxu0 %v1987
        %v2040 = vpop.f32.mrf.mxu0
        %v2041 = vadd.f32 %v1941, %v2040
        %v2042 = vpop.f32.mrf.mxu0
        %v2043 = vadd.f32 %v1946, %v2042
        %2044 = vdwg.mxu0
        %2045 = vmatpush.bf16.msra.mxu0 %v1851
        %2046 = vmatpush.bf16.msra.mxu0 %v1849
        %2047 = vmatpush.bf16.msra.mxu0 %v1847
        %2048 = vmatpush.bf16.msra.mxu0 %v1845
        %2049 = vmatpush.bf16.msra.mxu0 %v1843
        %2050 = vmatpush.bf16.msra.mxu0 %v1841
        %2051 = vmatpush.bf16.msra.mxu0 %v1839
        %2052 = vmatpush.bf16.msra.mxu0 %v1837
        %2053 = vmatmul.bf16.gmra.mxu0 %v1980
        %v2054 = vpop.f32.mrf.mxu0
        %v2055 = vadd.f32 %v1871, %v2054
        %v2056 = vpop.f32.mrf.mxu0
        %v2057 = vadd.f32 %v1876, %v2056
        %2058 = vmatmul.bf16.gmra.mxu0 %v1981
        %v2059 = vpop.f32.mrf.mxu0
        %v2060 = vadd.f32 %v1881, %v2059
        %v2061 = vpop.f32.mrf.mxu0
        %v2062 = vadd.f32 %v1886, %v2061
        %2063 = vmatmul.bf16.gmra.mxu0 %v1982
        %v2064 = vpop.f32.mrf.mxu0
        %v2065 = vadd.f32 %v1891, %v2064
        %v2066 = vpop.f32.mrf.mxu0
        %v2067 = vadd.f32 %v1896, %v2066
        %2068 = vmatmul.bf16.gmra.mxu0 %v1983
        %v2069 = vpop.f32.mrf.mxu0
        %v2070 = vadd.f32 %v1901, %v2069
        %v2071 = vpop.f32.mrf.mxu0
        %v2072 = vadd.f32 %v1906, %v2071
        %2073 = vmatmul.bf16.gmra.mxu0 %v1984
        %v2074 = vpop.f32.mrf.mxu0
        %v2075 = vadd.f32 %v1911, %v2074
        %v2076 = vpop.f32.mrf.mxu0
        %v2077 = vadd.f32 %v1916, %v2076
        %2078 = vmatmul.bf16.gmra.mxu0 %v1985
        %v2079 = vpop.f32.mrf.mxu0
        %v2080 = vadd.f32 %v1921, %v2079
        %v2081 = vpop.f32.mrf.mxu0
        %v2082 = vadd.f32 %v1926, %v2081
        %2083 = vmatmul.bf16.gmra.mxu0 %v1986
        %v2084 = vpop.f32.mrf.mxu0
        %v2085 = vadd.f32 %v1931, %v2084
        %v2086 = vpop.f32.mrf.mxu0
        %v2087 = vadd.f32 %v1936, %v2086
        %2088 = vmatmul.bf16.gmra.mxu0 %v1987
        %v2089 = vpop.f32.mrf.mxu0
        %v2090 = vadd.f32 %v1941, %v2089
        %v2091 = vpop.f32.mrf.mxu0
        %v2092 = vadd.f32 %v1946, %v2091
        %2093 = vdwg.mxu0
        %v2094 = vmax.f32 %v2006, 0.0
        %v2095 = vmax.f32 %v2055, 0.0
        %v2096 = vmax.f32 %v2008, 0.0
        %v2097 = vmax.f32 %v2057, 0.0
        %v2098 = vmax.f32 %v2011, 0.0
        %v2099 = vmax.f32 %v2060, 0.0
        %v2100 = vmax.f32 %v2013, 0.0
        %v2101 = vmax.f32 %v2062, 0.0
        %v2102 = vmax.f32 %v2016, 0.0
        %v2103 = vmax.f32 %v2065, 0.0
        %v2104 = vmax.f32 %v2018, 0.0
        %v2105 = vmax.f32 %v2067, 0.0
        %v2106 = vmax.f32 %v2021, 0.0
        %v2107 = vmax.f32 %v2070, 0.0
        %v2108 = vmax.f32 %v2023, 0.0
        %v2109 = vmax.f32 %v2072, 0.0
        %v2110 = vmax.f32 %v2026, 0.0
        %v2111 = vmax.f32 %v2075, 0.0
        %v2112 = vmax.f32 %v2028, 0.0
        %v2113 = vmax.f32 %v2077, 0.0
        %v2114 = vmax.f32 %v2031, 0.0
        %v2115 = vmax.f32 %v2080, 0.0
        %v2116 = vmax.f32 %v2033, 0.0
        %v2117 = vmax.f32 %v2082, 0.0
        %v2118 = vmax.f32 %v2036, 0.0
        %v2119 = vmax.f32 %v2085, 0.0
        %v2120 = vmax.f32 %v2038, 0.0
        %v2121 = vmax.f32 %v2087, 0.0
        %v2122 = vmax.f32 %v2041, 0.0
        %v2123 = vmax.f32 %v2090, 0.0
        %v2124 = vmax.f32 %v2043, 0.0
        %v2125 = vmax.f32 %v2092, 0.0
        %v2126 = vadd.f32 %v1279, %v2094
        %v2127 = vadd.f32 %v1475, %v2095
        %v2128 = vadd.f32 %v1281, %v2096
        %v2129 = vadd.f32 %v1477, %v2097
        %v2130 = vadd.f32 %v1284, %v2098
        %v2131 = vadd.f32 %v1480, %v2099
        %v2132 = vadd.f32 %v1286, %v2100
        %v2133 = vadd.f32 %v1482, %v2101
        %v2134 = vadd.f32 %v1289, %v2102
        %v2135 = vadd.f32 %v1485, %v2103
        %v2136 = vadd.f32 %v1291, %v2104
        %v2137 = vadd.f32 %v1487, %v2105
        %v2138 = vadd.f32 %v1294, %v2106
        %v2139 = vadd.f32 %v1490, %v2107
        %v2140 = vadd.f32 %v1296, %v2108
        %v2141 = vadd.f32 %v1492, %v2109
        %v2142 = vadd.f32 %v1299, %v2110
        %v2143 = vadd.f32 %v1495, %v2111
        %v2144 = vadd.f32 %v1301, %v2112
        %v2145 = vadd.f32 %v1497, %v2113
        %v2146 = vadd.f32 %v1304, %v2114
        %v2147 = vadd.f32 %v1500, %v2115
        %v2148 = vadd.f32 %v1306, %v2116
        %v2149 = vadd.f32 %v1502, %v2117
        %v2150 = vadd.f32 %v1309, %v2118
        %v2151 = vadd.f32 %v1505, %v2119
        %v2152 = vadd.f32 %v1311, %v2120
        %v2153 = vadd.f32 %v1507, %v2121
        %v2154 = vadd.f32 %v1314, %v2122
        %v2155 = vadd.f32 %v1510, %v2123
        %v2156 = vadd.f32 %v1316, %v2124
        %v2157 = vadd.f32 %v1512, %v2125
        %v2158 = vmax.f32 %v2126, 0.0
        %v2159 = vmax.f32 %v2127, 0.0
        %v2160 = vmax.f32 %v2128, 0.0
        %v2161 = vmax.f32 %v2129, 0.0
        %v2162 = vmax.f32 %v2130, 0.0
        %v2163 = vmax.f32 %v2131, 0.0
        %v2164 = vmax.f32 %v2132, 0.0
        %v2165 = vmax.f32 %v2133, 0.0
        %v2166 = vmax.f32 %v2134, 0.0
        %v2167 = vmax.f32 %v2135, 0.0
        %v2168 = vmax.f32 %v2136, 0.0
        %v2169 = vmax.f32 %v2137, 0.0
        %v2170 = vmax.f32 %v2138, 0.0
        %v2171 = vmax.f32 %v2139, 0.0
        %v2172 = vmax.f32 %v2140, 0.0
        %v2173 = vmax.f32 %v2141, 0.0
        %v2174 = vmax.f32 %v2142, 0.0
        %v2175 = vmax.f32 %v2143, 0.0
        %v2176 = vmax.f32 %v2144, 0.0
        %v2177 = vmax.f32 %v2145, 0.0
        %v2178 = vmax.f32 %v2146, 0.0
        %v2179 = vmax.f32 %v2147, 0.0
        %v2180 = vmax.f32 %v2148, 0.0
        %v2181 = vmax.f32 %v2149, 0.0
        %v2182 = vmax.f32 %v2150, 0.0
        %v2183 = vmax.f32 %v2151, 0.0
        %v2184 = vmax.f32 %v2152, 0.0
        %v2185 = vmax.f32 %v2153, 0.0
        %v2186 = vmax.f32 %v2154, 0.0
        %v2187 = vmax.f32 %v2155, 0.0
        %v2188 = vmax.f32 %v2156, 0.0
        %v2189 = vmax.f32 %v2157, 0.0
        %v2190 = vld [vmem:[%s4] sm:$0xf]
        %v2191 = vld [vmem:[%s4 + $0x4] sm:$0xf]
        %v2192 = vld [vmem:[%s4 + $0x8] sm:$0xf]
        %v2193 = vld [vmem:[%s4 + $0xc] sm:$0xf]
        %v2194 = vld [vmem:[%s4 + $0x10] sm:$0xf]
        %v2195 = vld [vmem:[%s4 + $0x14] sm:$0xf]
        %v2196 = vld [vmem:[%s4 + $0x18] sm:$0xf]
        %v2197 = vld [vmem:[%s4 + $0x1c] sm:$0xf]
        %v2198 = vpack.c.bf16 %v2159, %v2158
        %v2199 = vpack.c.bf16 %v2161, %v2160
        %v2200 = vpack.c.bf16 %v2163, %v2162
        %v2201 = vpack.c.bf16 %v2165, %v2164
        %v2202 = vpack.c.bf16 %v2167, %v2166
        %v2203 = vpack.c.bf16 %v2169, %v2168
        %v2204 = vpack.c.bf16 %v2171, %v2170
        %v2205 = vpack.c.bf16 %v2173, %v2172
        %v2206 = vpack.c.bf16 %v2175, %v2174
        %v2207 = vpack.c.bf16 %v2177, %v2176
        %v2208 = vpack.c.bf16 %v2179, %v2178
        %v2209 = vpack.c.bf16 %v2181, %v2180
        %v2210 = vpack.c.bf16 %v2183, %v2182
        %v2211 = vpack.c.bf16 %v2185, %v2184
        %v2212 = vpack.c.bf16 %v2187, %v2186
        %v2213 = vpack.c.bf16 %v2189, %v2188
        %v2214 = vld [vmem:[%s11 + $0x180] sm:$0xff]
        %v2215 = vld [vmem:[%s11 + $0x188] sm:$0xff]
        %v2216 = vld [vmem:[%s11 + $0x190] sm:$0xff]
        %v2217 = vld [vmem:[%s11 + $0x198] sm:$0xff]
        %v2218 = vld [vmem:[%s11 + $0x1a0] sm:$0xff]
        %v2219 = vld [vmem:[%s11 + $0x1a8] sm:$0xff]
        %v2220 = vld [vmem:[%s11 + $0x1b0] sm:$0xff]
        %v2221 = vld [vmem:[%s11 + $0x1b8] sm:$0xff]
        %2223 = vset.pattern.permute.xlu0 0
        %2224 = vperm.xlu0 %2223, %v2214
        %v2225 = vpop.permute.xlu0 %2224
        %2228 = vset.pattern.permute.xlu0 0
        %2229 = vperm.xlu0 %2228, %v2215
        %v2230 = vpop.permute.xlu0 %2229
        %2233 = vset.pattern.permute.xlu0 0
        %2234 = vperm.xlu0 %2233, %v2216
        %v2235 = vpop.permute.xlu0 %2234
        %2238 = vset.pattern.permute.xlu0 0
        %2239 = vperm.xlu0 %2238, %v2217
        %v2240 = vpop.permute.xlu0 %2239
        %2243 = vset.pattern.permute.xlu0 0
        %2244 = vperm.xlu0 %2243, %v2218
        %v2245 = vpop.permute.xlu0 %2244
        %2248 = vset.pattern.permute.xlu0 0
        %2249 = vperm.xlu0 %2248, %v2219
        %v2250 = vpop.permute.xlu0 %2249
        %2253 = vset.pattern.permute.xlu0 0
        %2254 = vperm.xlu0 %2253, %v2220
        %v2255 = vpop.permute.xlu0 %2254
        %2258 = vset.pattern.permute.xlu0 0
        %2259 = vperm.xlu0 %2258, %v2221
        %v2260 = vpop.permute.xlu0 %2259
        %v2270 = vunpack.c.l.b16 %v2190
        %v2271 = vunpack.c.l.b16 %v2191
        %v2272 = vunpack.c.l.b16 %v2192
        %v2273 = vunpack.c.l.b16 %v2193
        %v2274 = vunpack.c.l.b16 %v2194
        %v2275 = vunpack.c.l.b16 %v2195
        %v2276 = vunpack.c.l.b16 %v2196
        %v2277 = vunpack.c.l.b16 %v2197
        %v2278 = vpack.c.b16 %v2271, %v2270
        %v2279 = vpack.c.b16 %v2273, %v2272
        %v2280 = vpack.c.b16 %v2275, %v2274
        %v2281 = vpack.c.b16 %v2277, %v2276
        %v2302 = vunpack.c.l.b16 %v2198
        %v2303 = vunpack.c.h.b16 %v2198
        %v2304 = vunpack.c.l.b16 %v2199
        %v2305 = vunpack.c.h.b16 %v2199
        %v2306 = vunpack.c.l.b16 %v2200
        %v2307 = vunpack.c.h.b16 %v2200
        %v2308 = vunpack.c.l.b16 %v2201
        %v2309 = vunpack.c.h.b16 %v2201
        %v2310 = vunpack.c.l.b16 %v2202
        %v2311 = vunpack.c.h.b16 %v2202
        %v2312 = vunpack.c.l.b16 %v2203
        %v2313 = vunpack.c.h.b16 %v2203
        %v2314 = vunpack.c.l.b16 %v2204
        %v2315 = vunpack.c.h.b16 %v2204
        %v2316 = vunpack.c.l.b16 %v2205
        %v2317 = vunpack.c.h.b16 %v2205
        %v2318 = vunpack.c.l.b16 %v2206
        %v2319 = vunpack.c.h.b16 %v2206
        %v2320 = vunpack.c.l.b16 %v2207
        %v2321 = vunpack.c.h.b16 %v2207
        %v2322 = vunpack.c.l.b16 %v2208
        %v2323 = vunpack.c.h.b16 %v2208
        %v2324 = vunpack.c.l.b16 %v2209
        %v2325 = vunpack.c.h.b16 %v2209
        %v2326 = vunpack.c.l.b16 %v2210
        %v2327 = vunpack.c.h.b16 %v2210
        %v2328 = vunpack.c.l.b16 %v2211
        %v2329 = vunpack.c.h.b16 %v2211
        %v2330 = vunpack.c.l.b16 %v2212
        %v2331 = vunpack.c.h.b16 %v2212
        %v2332 = vunpack.c.l.b16 %v2213
        %v2333 = vunpack.c.h.b16 %v2213
        %v2334 = vpack.c.b16 %v2304, %v2302
        %v2335 = vpack.c.b16 %v2305, %v2303
        %v2336 = vpack.c.b16 %v2308, %v2306
        %v2337 = vpack.c.b16 %v2309, %v2307
        %v2338 = vpack.c.b16 %v2312, %v2310
        %v2339 = vpack.c.b16 %v2313, %v2311
        %v2340 = vpack.c.b16 %v2316, %v2314
        %v2341 = vpack.c.b16 %v2317, %v2315
        %v2342 = vpack.c.b16 %v2320, %v2318
        %v2343 = vpack.c.b16 %v2321, %v2319
        %v2344 = vpack.c.b16 %v2324, %v2322
        %v2345 = vpack.c.b16 %v2325, %v2323
        %v2346 = vpack.c.b16 %v2328, %v2326
        %v2347 = vpack.c.b16 %v2329, %v2327
        %v2348 = vpack.c.b16 %v2332, %v2330
        %v2349 = vpack.c.b16 %v2333, %v2331
        %2366 = vmatpush.bf16.msra.mxu0 %v2348
        %2367 = vmatpush.bf16.msra.mxu0 %v2346
        %2368 = vmatpush.bf16.msra.mxu0 %v2344
        %2369 = vmatpush.bf16.msra.mxu0 %v2342
        %2370 = vmatpush.bf16.msra.mxu0 %v2340
        %2371 = vmatpush.bf16.msra.mxu0 %v2338
        %2372 = vmatpush.bf16.msra.mxu0 %v2336
        %2373 = vmatpush.bf16.msra.mxu0 %v2334
        %2374 = vmatmul.bf16.gmra.mxu0 %v2278
        %v2375 = vpop.f32.mrf.mxu0
        %v2376 = vadd.f32 %v2225, %v2375
        %v2377 = vpop.f32.mrf.mxu0
        %v2378 = vadd.f32 %v2230, %v2377
        %2379 = vmatmul.bf16.gmra.mxu0 %v2279
        %v2380 = vpop.f32.mrf.mxu0
        %v2381 = vadd.f32 %v2235, %v2380
        %v2382 = vpop.f32.mrf.mxu0
        %v2383 = vadd.f32 %v2240, %v2382
        %2384 = vmatmul.bf16.gmra.mxu0 %v2280
        %v2385 = vpop.f32.mrf.mxu0
        %v2386 = vadd.f32 %v2245, %v2385
        %v2387 = vpop.f32.mrf.mxu0
        %v2388 = vadd.f32 %v2250, %v2387
        %2389 = vmatmul.bf16.gmra.mxu0 %v2281
        %v2390 = vpop.f32.mrf.mxu0
        %v2391 = vadd.f32 %v2255, %v2390
        %v2392 = vpop.f32.mrf.mxu0
        %v2393 = vadd.f32 %v2260, %v2392
        %2394 = vdwg.mxu0
        %2395 = vmatpush.bf16.msra.mxu0 %v2349
        %2396 = vmatpush.bf16.msra.mxu0 %v2347
        %2397 = vmatpush.bf16.msra.mxu0 %v2345
        %2398 = vmatpush.bf16.msra.mxu0 %v2343
        %2399 = vmatpush.bf16.msra.mxu0 %v2341
        %2400 = vmatpush.bf16.msra.mxu0 %v2339
        %2401 = vmatpush.bf16.msra.mxu0 %v2337
        %2402 = vmatpush.bf16.msra.mxu0 %v2335
        %2403 = vmatmul.bf16.gmra.mxu0 %v2278
        %v2404 = vpop.f32.mrf.mxu0
        %v2405 = vadd.f32 %v2225, %v2404
        %v2406 = vpop.f32.mrf.mxu0
        %v2407 = vadd.f32 %v2230, %v2406
        %2408 = vmatmul.bf16.gmra.mxu0 %v2279
        %v2409 = vpop.f32.mrf.mxu0
        %v2410 = vadd.f32 %v2235, %v2409
        %v2411 = vpop.f32.mrf.mxu0
        %v2412 = vadd.f32 %v2240, %v2411
        %2413 = vmatmul.bf16.gmra.mxu0 %v2280
        %v2414 = vpop.f32.mrf.mxu0
        %v2415 = vadd.f32 %v2245, %v2414
        %v2416 = vpop.f32.mrf.mxu0
        %v2417 = vadd.f32 %v2250, %v2416
        %2418 = vmatmul.bf16.gmra.mxu0 %v2281
        %v2419 = vpop.f32.mrf.mxu0
        %v2420 = vadd.f32 %v2255, %v2419
        %v2421 = vpop.f32.mrf.mxu0
        %v2422 = vadd.f32 %v2260, %v2421
        %2423 = vdwg.mxu0
        %v2424 = vld [vmem:[%s5] sm:$0xf]
        %v2425 = vld [vmem:[%s5 + $0x4] sm:$0xf]
        %v2426 = vld [vmem:[%s5 + $0x8] sm:$0xf]
        %v2427 = vld [vmem:[%s5 + $0xc] sm:$0xf]
        %v2428 = vld [vmem:[%s5 + $0x10] sm:$0xf]
        %v2429 = vld [vmem:[%s5 + $0x14] sm:$0xf]
        %v2430 = vld [vmem:[%s5 + $0x18] sm:$0xf]
        %v2431 = vld [vmem:[%s5 + $0x1c] sm:$0xf]
        %v2432 = vpack.c.bf16 %v2378, %v2376
        %v2433 = vpack.c.bf16 %v2407, %v2405
        %v2434 = vpack.c.bf16 %v2383, %v2381
        %v2435 = vpack.c.bf16 %v2412, %v2410
        %v2436 = vpack.c.bf16 %v2388, %v2386
        %v2437 = vpack.c.bf16 %v2417, %v2415
        %v2438 = vpack.c.bf16 %v2393, %v2391
        %v2439 = vpack.c.bf16 %v2422, %v2420
        %v2440 = vld [vmem:[%s11 + $0x1c0] sm:$0xff]
        %v2441 = vld [vmem:[%s11 + $0x1c8] sm:$0xff]
        %v2442 = vld [vmem:[%s11 + $0x1d0] sm:$0xff]
        %v2443 = vld [vmem:[%s11 + $0x1d8] sm:$0xff]
        %v2444 = vld [vmem:[%s11 + $0x1e0] sm:$0xff]
        %v2445 = vld [vmem:[%s11 + $0x1e8] sm:$0xff]
        %v2446 = vld [vmem:[%s11 + $0x1f0] sm:$0xff]
        %v2447 = vld [vmem:[%s11 + $0x1f8] sm:$0xff]
        %2449 = vset.pattern.permute.xlu0 0
        %2450 = vperm.xlu0 %2449, %v2440
        %v2451 = vpop.permute.xlu0 %2450
        %2454 = vset.pattern.permute.xlu0 0
        %2455 = vperm.xlu0 %2454, %v2441
        %v2456 = vpop.permute.xlu0 %2455
        %2459 = vset.pattern.permute.xlu0 0
        %2460 = vperm.xlu0 %2459, %v2442
        %v2461 = vpop.permute.xlu0 %2460
        %2464 = vset.pattern.permute.xlu0 0
        %2465 = vperm.xlu0 %2464, %v2443
        %v2466 = vpop.permute.xlu0 %2465
        %2469 = vset.pattern.permute.xlu0 0
        %2470 = vperm.xlu0 %2469, %v2444
        %v2471 = vpop.permute.xlu0 %2470
        %2474 = vset.pattern.permute.xlu0 0
        %2475 = vperm.xlu0 %2474, %v2445
        %v2476 = vpop.permute.xlu0 %2475
        %2479 = vset.pattern.permute.xlu0 0
        %2480 = vperm.xlu0 %2479, %v2446
        %v2481 = vpop.permute.xlu0 %2480
        %2484 = vset.pattern.permute.xlu0 0
        %2485 = vperm.xlu0 %2484, %v2447
        %v2486 = vpop.permute.xlu0 %2485
        %v2496 = vunpack.c.l.b16 %v2424
        %v2497 = vunpack.c.l.b16 %v2425
        %v2498 = vunpack.c.l.b16 %v2426
        %v2499 = vunpack.c.l.b16 %v2427
        %v2500 = vunpack.c.l.b16 %v2428
        %v2501 = vunpack.c.l.b16 %v2429
        %v2502 = vunpack.c.l.b16 %v2430
        %v2503 = vunpack.c.l.b16 %v2431
        %v2504 = vpack.c.b16 %v2497, %v2496
        %v2505 = vpack.c.b16 %v2499, %v2498
        %v2506 = vpack.c.b16 %v2501, %v2500
        %v2507 = vpack.c.b16 %v2503, %v2502
        %vm2508 = vcmask 523264
        %v2510 = vsel %vm2508, %v2504, 0
        %v2513 = vsel %vm2508, %v2505, 0
        %v2516 = vsel %vm2508, %v2506, 0
        %v2519 = vsel %vm2508, %v2507, 0
        %2521 = vmatpush.bf16.msra.mxu0 0
        %2522 = vmatpush.bf16.msra.mxu0 0
        %2523 = vmatpush.bf16.msra.mxu0 0
        %2524 = vmatpush.bf16.msra.mxu0 0
        %2525 = vmatpush.bf16.msra.mxu0 %v2438
        %2526 = vmatpush.bf16.msra.mxu0 %v2436
        %2527 = vmatpush.bf16.msra.mxu0 %v2434
        %2528 = vmatpush.bf16.msra.mxu0 %v2432
        %2529 = vmatmul.bf16.gmra.mxu0 %v2510
        %v2530 = vpop.f32.mrf.mxu0
        %v2531 = vadd.f32 %v2451, %v2530
        %v2532 = vpop.f32.mrf.mxu0
        %v2533 = vadd.f32 %v2456, %v2532
        %2534 = vmatmul.bf16.gmra.mxu0 %v2513
        %v2535 = vpop.f32.mrf.mxu0
        %v2536 = vadd.f32 %v2461, %v2535
        %v2537 = vpop.f32.mrf.mxu0
        %v2538 = vadd.f32 %v2466, %v2537
        %2539 = vmatmul.bf16.gmra.mxu0 %v2516
        %v2540 = vpop.f32.mrf.mxu0
        %v2541 = vadd.f32 %v2471, %v2540
        %v2542 = vpop.f32.mrf.mxu0
        %v2543 = vadd.f32 %v2476, %v2542
        %2544 = vmatmul.bf16.gmra.mxu0 %v2519
        %v2545 = vpop.f32.mrf.mxu0
        %v2546 = vadd.f32 %v2481, %v2545
        %v2547 = vpop.f32.mrf.mxu0
        %v2548 = vadd.f32 %v2486, %v2547
        %2549 = vdwg.mxu0
        %2550 = vmatpush.bf16.msra.mxu0 0
        %2551 = vmatpush.bf16.msra.mxu0 0
        %2552 = vmatpush.bf16.msra.mxu0 0
        %2553 = vmatpush.bf16.msra.mxu0 0
        %2554 = vmatpush.bf16.msra.mxu0 %v2439
        %2555 = vmatpush.bf16.msra.mxu0 %v2437
        %2556 = vmatpush.bf16.msra.mxu0 %v2435
        %2557 = vmatpush.bf16.msra.mxu0 %v2433
        %2558 = vmatmul.bf16.gmra.mxu0 %v2510
        %v2559 = vpop.f32.mrf.mxu0
        %v2560 = vadd.f32 %v2451, %v2559
        %v2561 = vpop.f32.mrf.mxu0
        %v2562 = vadd.f32 %v2456, %v2561
        %2563 = vmatmul.bf16.gmra.mxu0 %v2513
        %v2564 = vpop.f32.mrf.mxu0
        %v2565 = vadd.f32 %v2461, %v2564
        %v2566 = vpop.f32.mrf.mxu0
        %v2567 = vadd.f32 %v2466, %v2566
        %2568 = vmatmul.bf16.gmra.mxu0 %v2516
        %v2569 = vpop.f32.mrf.mxu0
        %v2570 = vadd.f32 %v2471, %v2569
        %v2571 = vpop.f32.mrf.mxu0
        %v2572 = vadd.f32 %v2476, %v2571
        %2573 = vmatmul.bf16.gmra.mxu0 %v2519
        %v2574 = vpop.f32.mrf.mxu0
        %v2575 = vadd.f32 %v2481, %v2574
        %v2576 = vpop.f32.mrf.mxu0
        %v2577 = vadd.f32 %v2486, %v2576
        %2578 = vdwg.mxu0
        %v2579 = vmax.f32 %v2531, 0.0
        %v2580 = vmax.f32 %v2560, 0.0
        %v2581 = vmax.f32 %v2533, 0.0
        %v2582 = vmax.f32 %v2562, 0.0
        %v2583 = vmax.f32 %v2536, 0.0
        %v2584 = vmax.f32 %v2565, 0.0
        %v2585 = vmax.f32 %v2538, 0.0
        %v2586 = vmax.f32 %v2567, 0.0
        %v2587 = vmax.f32 %v2541, 0.0
        %v2588 = vmax.f32 %v2570, 0.0
        %v2589 = vmax.f32 %v2543, 0.0
        %v2590 = vmax.f32 %v2572, 0.0
        %v2591 = vmax.f32 %v2546, 0.0
        %v2592 = vmax.f32 %v2575, 0.0
        %v2593 = vmax.f32 %v2548, 0.0
        %v2594 = vmax.f32 %v2577, 0.0
        %v2595 = vld [vmem:[%s6] sm:$0xf]
        %v2596 = vld [vmem:[%s6 + $0x4] sm:$0xf]
        %v2597 = vld [vmem:[%s6 + $0x8] sm:$0xf]
        %v2598 = vld [vmem:[%s6 + $0xc] sm:$0xf]
        %v2599 = vld [vmem:[%s6 + $0x10] sm:$0xf]
        %v2600 = vld [vmem:[%s6 + $0x14] sm:$0xf]
        %v2601 = vld [vmem:[%s6 + $0x18] sm:$0xf]
        %v2602 = vld [vmem:[%s6 + $0x1c] sm:$0xf]
        %v2603 = vpack.c.bf16 %v2581, %v2579
        %v2604 = vpack.c.bf16 %v2582, %v2580
        %v2605 = vpack.c.bf16 %v2585, %v2583
        %v2606 = vpack.c.bf16 %v2586, %v2584
        %v2607 = vpack.c.bf16 %v2589, %v2587
        %v2608 = vpack.c.bf16 %v2590, %v2588
        %v2609 = vpack.c.bf16 %v2593, %v2591
        %v2610 = vpack.c.bf16 %v2594, %v2592
        %v2611 = vld [vmem:[%s11 + $0x200] sm:$0xff]
        %v2612 = vld [vmem:[%s11 + $0x208] sm:$0xff]
        %v2613 = vld [vmem:[%s11 + $0x210] sm:$0xff]
        %v2614 = vld [vmem:[%s11 + $0x218] sm:$0xff]
        %v2615 = vld [vmem:[%s11 + $0x220] sm:$0xff]
        %v2616 = vld [vmem:[%s11 + $0x228] sm:$0xff]
        %v2617 = vld [vmem:[%s11 + $0x230] sm:$0xff]
        %v2618 = vld [vmem:[%s11 + $0x238] sm:$0xff]
        %2620 = vset.pattern.permute.xlu0 0
        %2621 = vperm.xlu0 %2620, %v2611
        %v2622 = vpop.permute.xlu0 %2621
        %2625 = vset.pattern.permute.xlu0 0
        %2626 = vperm.xlu0 %2625, %v2612
        %v2627 = vpop.permute.xlu0 %2626
        %2630 = vset.pattern.permute.xlu0 0
        %2631 = vperm.xlu0 %2630, %v2613
        %v2632 = vpop.permute.xlu0 %2631
        %2635 = vset.pattern.permute.xlu0 0
        %2636 = vperm.xlu0 %2635, %v2614
        %v2637 = vpop.permute.xlu0 %2636
        %2640 = vset.pattern.permute.xlu0 0
        %2641 = vperm.xlu0 %2640, %v2615
        %v2642 = vpop.permute.xlu0 %2641
        %2645 = vset.pattern.permute.xlu0 0
        %2646 = vperm.xlu0 %2645, %v2616
        %v2647 = vpop.permute.xlu0 %2646
        %2650 = vset.pattern.permute.xlu0 0
        %2651 = vperm.xlu0 %2650, %v2617
        %v2652 = vpop.permute.xlu0 %2651
        %2655 = vset.pattern.permute.xlu0 0
        %2656 = vperm.xlu0 %2655, %v2618
        %v2657 = vpop.permute.xlu0 %2656
        %v2667 = vunpack.c.l.b16 %v2595
        %v2668 = vunpack.c.l.b16 %v2596
        %v2669 = vunpack.c.l.b16 %v2597
        %v2670 = vunpack.c.l.b16 %v2598
        %v2671 = vunpack.c.l.b16 %v2599
        %v2672 = vunpack.c.l.b16 %v2600
        %v2673 = vunpack.c.l.b16 %v2601
        %v2674 = vunpack.c.l.b16 %v2602
        %v2675 = vpack.c.b16 %v2668, %v2667
        %v2676 = vpack.c.b16 %v2670, %v2669
        %v2677 = vpack.c.b16 %v2672, %v2671
        %v2678 = vpack.c.b16 %v2674, %v2673
        %v2680 = vsel %vm2508, %v2675, 0
        %v2683 = vsel %vm2508, %v2676, 0
        %v2686 = vsel %vm2508, %v2677, 0
        %v2689 = vsel %vm2508, %v2678, 0
        %2691 = vmatpush.bf16.msra.mxu0 0
        %2692 = vmatpush.bf16.msra.mxu0 0
        %2693 = vmatpush.bf16.msra.mxu0 0
        %2694 = vmatpush.bf16.msra.mxu0 0
        %2695 = vmatpush.bf16.msra.mxu0 %v2609
        %2696 = vmatpush.bf16.msra.mxu0 %v2607
        %2697 = vmatpush.bf16.msra.mxu0 %v2605
        %2698 = vmatpush.bf16.msra.mxu0 %v2603
        %2699 = vmatmul.bf16.gmra.mxu0 %v2680
        %v2700 = vpop.f32.mrf.mxu0
        %v2701 = vadd.f32 %v2622, %v2700
        %v2702 = vpop.f32.mrf.mxu0
        %v2703 = vadd.f32 %v2627, %v2702
        %2704 = vmatmul.bf16.gmra.mxu0 %v2683
        %v2705 = vpop.f32.mrf.mxu0
        %v2706 = vadd.f32 %v2632, %v2705
        %v2707 = vpop.f32.mrf.mxu0
        %v2708 = vadd.f32 %v2637, %v2707
        %2709 = vmatmul.bf16.gmra.mxu0 %v2686
        %v2710 = vpop.f32.mrf.mxu0
        %v2711 = vadd.f32 %v2642, %v2710
        %v2712 = vpop.f32.mrf.mxu0
        %v2713 = vadd.f32 %v2647, %v2712
        %2714 = vmatmul.bf16.gmra.mxu0 %v2689
        %v2715 = vpop.f32.mrf.mxu0
        %v2716 = vadd.f32 %v2652, %v2715
        %v2717 = vpop.f32.mrf.mxu0
        %v2718 = vadd.f32 %v2657, %v2717
        %2719 = vdwg.mxu0
        %2720 = vmatpush.bf16.msra.mxu0 0
        %2721 = vmatpush.bf16.msra.mxu0 0
        %2722 = vmatpush.bf16.msra.mxu0 0
        %2723 = vmatpush.bf16.msra.mxu0 0
        %2724 = vmatpush.bf16.msra.mxu0 %v2610
        %2725 = vmatpush.bf16.msra.mxu0 %v2608
        %2726 = vmatpush.bf16.msra.mxu0 %v2606
        %2727 = vmatpush.bf16.msra.mxu0 %v2604
        %2728 = vmatmul.bf16.gmra.mxu0 %v2680
        %v2729 = vpop.f32.mrf.mxu0
        %v2730 = vadd.f32 %v2622, %v2729
        %v2731 = vpop.f32.mrf.mxu0
        %v2732 = vadd.f32 %v2627, %v2731
        %2733 = vmatmul.bf16.gmra.mxu0 %v2683
        %v2734 = vpop.f32.mrf.mxu0
        %v2735 = vadd.f32 %v2632, %v2734
        %v2736 = vpop.f32.mrf.mxu0
        %v2737 = vadd.f32 %v2637, %v2736
        %2738 = vmatmul.bf16.gmra.mxu0 %v2686
        %v2739 = vpop.f32.mrf.mxu0
        %v2740 = vadd.f32 %v2642, %v2739
        %v2741 = vpop.f32.mrf.mxu0
        %v2742 = vadd.f32 %v2647, %v2741
        %2743 = vmatmul.bf16.gmra.mxu0 %v2689
        %v2744 = vpop.f32.mrf.mxu0
        %v2745 = vadd.f32 %v2652, %v2744
        %v2746 = vpop.f32.mrf.mxu0
        %v2747 = vadd.f32 %v2657, %v2746
        %2748 = vdwg.mxu0
        %v2749 = vmax.f32 %v2701, 0.0
        %v2750 = vmax.f32 %v2730, 0.0
        %v2751 = vmax.f32 %v2703, 0.0
        %v2752 = vmax.f32 %v2732, 0.0
        %v2753 = vmax.f32 %v2706, 0.0
        %v2754 = vmax.f32 %v2735, 0.0
        %v2755 = vmax.f32 %v2708, 0.0
        %v2756 = vmax.f32 %v2737, 0.0
        %v2757 = vmax.f32 %v2711, 0.0
        %v2758 = vmax.f32 %v2740, 0.0
        %v2759 = vmax.f32 %v2713, 0.0
        %v2760 = vmax.f32 %v2742, 0.0
        %v2761 = vmax.f32 %v2716, 0.0
        %v2762 = vmax.f32 %v2745, 0.0
        %v2763 = vmax.f32 %v2718, 0.0
        %v2764 = vmax.f32 %v2747, 0.0
        %v2765 = vadd.f32 %v2376, %v2749
        %v2766 = vadd.f32 %v2405, %v2750
        %v2767 = vadd.f32 %v2378, %v2751
        %v2768 = vadd.f32 %v2407, %v2752
        %v2769 = vadd.f32 %v2381, %v2753
        %v2770 = vadd.f32 %v2410, %v2754
        %v2771 = vadd.f32 %v2383, %v2755
        %v2772 = vadd.f32 %v2412, %v2756
        %v2773 = vadd.f32 %v2386, %v2757
        %v2774 = vadd.f32 %v2415, %v2758
        %v2775 = vadd.f32 %v2388, %v2759
        %v2776 = vadd.f32 %v2417, %v2760
        %v2777 = vadd.f32 %v2391, %v2761
        %v2778 = vadd.f32 %v2420, %v2762
        %v2779 = vadd.f32 %v2393, %v2763
        %v2780 = vadd.f32 %v2422, %v2764
        %v2781 = vmax.f32 %v2765, 0.0
        %v2782 = vmax.f32 %v2766, 0.0
        %v2783 = vmax.f32 %v2767, 0.0
        %v2784 = vmax.f32 %v2768, 0.0
        %v2785 = vmax.f32 %v2769, 0.0
        %v2786 = vmax.f32 %v2770, 0.0
        %v2787 = vmax.f32 %v2771, 0.0
        %v2788 = vmax.f32 %v2772, 0.0
        %v2789 = vmax.f32 %v2773, 0.0
        %v2790 = vmax.f32 %v2774, 0.0
        %v2791 = vmax.f32 %v2775, 0.0
        %v2792 = vmax.f32 %v2776, 0.0
        %v2793 = vmax.f32 %v2777, 0.0
        %v2794 = vmax.f32 %v2778, 0.0
        %v2795 = vmax.f32 %v2779, 0.0
        %v2796 = vmax.f32 %v2780, 0.0
        %v2797 = vld [vmem:[%s7] sm:$0xf]
        %v2798 = vld [vmem:[%s7 + $0x4] sm:$0xf]
        %v2799 = vld [vmem:[%s7 + $0x8] sm:$0xf]
        %v2800 = vld [vmem:[%s7 + $0xc] sm:$0xf]
        %v2801 = vpack.c.bf16 %v2782, %v2781
        %v2802 = vpack.c.bf16 %v2784, %v2783
        %v2803 = vpack.c.bf16 %v2786, %v2785
        %v2804 = vpack.c.bf16 %v2788, %v2787
        %v2805 = vpack.c.bf16 %v2790, %v2789
        %v2806 = vpack.c.bf16 %v2792, %v2791
        %v2807 = vpack.c.bf16 %v2794, %v2793
        %v2808 = vpack.c.bf16 %v2796, %v2795
        %v2809 = vld [vmem:[%s11 + $0x240] sm:$0xff]
        %v2810 = vld [vmem:[%s11 + $0x248] sm:$0xff]
        %v2811 = vld [vmem:[%s11 + $0x250] sm:$0xff]
        %v2812 = vld [vmem:[%s11 + $0x258] sm:$0xff]
        %2814 = vset.pattern.permute.xlu0 0
        %2815 = vperm.xlu0 %2814, %v2809
        %v2816 = vpop.permute.xlu0 %2815
        %2819 = vset.pattern.permute.xlu0 0
        %2820 = vperm.xlu0 %2819, %v2810
        %v2821 = vpop.permute.xlu0 %2820
        %2824 = vset.pattern.permute.xlu0 0
        %2825 = vperm.xlu0 %2824, %v2811
        %v2826 = vpop.permute.xlu0 %2825
        %2829 = vset.pattern.permute.xlu0 0
        %2830 = vperm.xlu0 %2829, %v2812
        %v2831 = vpop.permute.xlu0 %2830
        %v2837 = vunpack.c.l.b16 %v2797
        %v2838 = vunpack.c.l.b16 %v2798
        %v2839 = vunpack.c.l.b16 %v2799
        %v2840 = vunpack.c.l.b16 %v2800
        %v2841 = vpack.c.b16 %v2838, %v2837
        %v2842 = vpack.c.b16 %v2840, %v2839
        %v2851 = vunpack.c.l.b16 %v2801
        %v2852 = vunpack.c.h.b16 %v2801
        %v2853 = vunpack.c.l.b16 %v2802
        %v2854 = vunpack.c.h.b16 %v2802
        %v2855 = vunpack.c.l.b16 %v2803
        %v2856 = vunpack.c.h.b16 %v2803
        %v2857 = vunpack.c.l.b16 %v2804
        %v2858 = vunpack.c.h.b16 %v2804
        %v2859 = vunpack.c.l.b16 %v2805
        %v2860 = vunpack.c.h.b16 %v2805
        %v2861 = vunpack.c.l.b16 %v2806
        %v2862 = vunpack.c.h.b16 %v2806
        %v2863 = vunpack.c.l.b16 %v2807
        %v2864 = vunpack.c.h.b16 %v2807
        %v2865 = vunpack.c.l.b16 %v2808
        %v2866 = vunpack.c.h.b16 %v2808
        %v2867 = vpack.c.b16 %v2853, %v2851
        %v2868 = vpack.c.b16 %v2854, %v2852
        %v2869 = vpack.c.b16 %v2857, %v2855
        %v2870 = vpack.c.b16 %v2858, %v2856
        %v2871 = vpack.c.b16 %v2861, %v2859
        %v2872 = vpack.c.b16 %v2862, %v2860
        %v2873 = vpack.c.b16 %v2865, %v2863
        %v2874 = vpack.c.b16 %v2866, %v2864
        %v2884 = vsel %vm2508, %v2841, 0
        %v2887 = vsel %vm2508, %v2842, 0
        %2889 = vmatpush.bf16.msra.mxu0 0
        %2890 = vmatpush.bf16.msra.mxu0 0
        %2891 = vmatpush.bf16.msra.mxu0 0
        %2892 = vmatpush.bf16.msra.mxu0 0
        %2893 = vmatpush.bf16.msra.mxu0 %v2873
        %2894 = vmatpush.bf16.msra.mxu0 %v2871
        %2895 = vmatpush.bf16.msra.mxu0 %v2869
        %2896 = vmatpush.bf16.msra.mxu0 %v2867
        %2897 = vmatmul.bf16.gmra.mxu0 %v2884
        %v2898 = vpop.f32.mrf.mxu0
        %v2899 = vadd.f32 %v2816, %v2898
        %v2900 = vpop.f32.mrf.mxu0
        %v2901 = vadd.f32 %v2821, %v2900
        %2902 = vmatmul.bf16.gmra.mxu0 %v2887
        %v2903 = vpop.f32.mrf.mxu0
        %v2904 = vadd.f32 %v2826, %v2903
        %v2905 = vpop.f32.mrf.mxu0
        %v2906 = vadd.f32 %v2831, %v2905
        %2907 = vdwg.mxu0
        %2908 = vmatpush.bf16.msra.mxu0 0
        %2909 = vmatpush.bf16.msra.mxu0 0
        %2910 = vmatpush.bf16.msra.mxu0 0
        %2911 = vmatpush.bf16.msra.mxu0 0
        %2912 = vmatpush.bf16.msra.mxu0 %v2874
        %2913 = vmatpush.bf16.msra.mxu0 %v2872
        %2914 = vmatpush.bf16.msra.mxu0 %v2870
        %2915 = vmatpush.bf16.msra.mxu0 %v2868
        %2916 = vmatmul.bf16.gmra.mxu0 %v2884
        %v2917 = vpop.f32.mrf.mxu0
        %v2918 = vadd.f32 %v2816, %v2917
        %v2919 = vpop.f32.mrf.mxu0
        %v2920 = vadd.f32 %v2821, %v2919
        %2921 = vmatmul.bf16.gmra.mxu0 %v2887
        %v2922 = vpop.f32.mrf.mxu0
        %v2923 = vadd.f32 %v2826, %v2922
        %v2924 = vpop.f32.mrf.mxu0
        %v2925 = vadd.f32 %v2831, %v2924
        %2926 = vdwg.mxu0
        %v2927 = vld [vmem:[%s8] sm:$0xf]
        %v2928 = vld [vmem:[%s8 + $0x4] sm:$0xf]
        %v2929 = vld [vmem:[%s8 + $0x8] sm:$0xf]
        %v2930 = vld [vmem:[%s8 + $0xc] sm:$0xf]
        %v2931 = vpack.c.bf16 %v2901, %v2899
        %v2932 = vpack.c.bf16 %v2920, %v2918
        %v2933 = vpack.c.bf16 %v2906, %v2904
        %v2934 = vpack.c.bf16 %v2925, %v2923
        %v2935 = vld [vmem:[%s11 + $0x260] sm:$0xff]
        %v2936 = vld [vmem:[%s11 + $0x268] sm:$0xff]
        %v2937 = vld [vmem:[%s11 + $0x270] sm:$0xff]
        %v2938 = vld [vmem:[%s11 + $0x278] sm:$0xff]
        %2940 = vset.pattern.permute.xlu0 0
        %2941 = vperm.xlu0 %2940, %v2935
        %v2942 = vpop.permute.xlu0 %2941
        %2945 = vset.pattern.permute.xlu0 0
        %2946 = vperm.xlu0 %2945, %v2936
        %v2947 = vpop.permute.xlu0 %2946
        %2950 = vset.pattern.permute.xlu0 0
        %2951 = vperm.xlu0 %2950, %v2937
        %v2952 = vpop.permute.xlu0 %2951
        %2955 = vset.pattern.permute.xlu0 0
        %2956 = vperm.xlu0 %2955, %v2938
        %v2957 = vpop.permute.xlu0 %2956
        %v2963 = vunpack.c.l.b16 %v2927
        %v2964 = vunpack.c.l.b16 %v2928
        %v2965 = vunpack.c.l.b16 %v2929
        %v2966 = vunpack.c.l.b16 %v2930
        %v2967 = vpack.c.b16 %v2964, %v2963
        %v2968 = vpack.c.b16 %v2966, %v2965
        %vm2969 = vcmask 261120
        %v2971 = vsel %vm2969, %v2967, 0
        %v2974 = vsel %vm2969, %v2968, 0
        %2976 = vmatpush.bf16.msra.mxu0 0
        %2977 = vmatpush.bf16.msra.mxu0 0
        %2978 = vmatpush.bf16.msra.mxu0 0
        %2979 = vmatpush.bf16.msra.mxu0 0
        %2980 = vmatpush.bf16.msra.mxu0 0
        %2981 = vmatpush.bf16.msra.mxu0 0
        %2982 = vmatpush.bf16.msra.mxu0 %v2933
        %2983 = vmatpush.bf16.msra.mxu0 %v2931
        %2984 = vmatmul.bf16.gmra.mxu0 %v2971
        %v2985 = vpop.f32.mrf.mxu0
        %v2986 = vadd.f32 %v2942, %v2985
        %v2987 = vpop.f32.mrf.mxu0
        %v2988 = vadd.f32 %v2947, %v2987
        %2989 = vmatmul.bf16.gmra.mxu0 %v2974
        %v2990 = vpop.f32.mrf.mxu0
        %v2991 = vadd.f32 %v2952, %v2990
        %v2992 = vpop.f32.mrf.mxu0
        %v2993 = vadd.f32 %v2957, %v2992
        %2994 = vdwg.mxu0
        %2995 = vmatpush.bf16.msra.mxu0 0
        %2996 = vmatpush.bf16.msra.mxu0 0
        %2997 = vmatpush.bf16.msra.mxu0 0
        %2998 = vmatpush.bf16.msra.mxu0 0
        %2999 = vmatpush.bf16.msra.mxu0 0
        %3000 = vmatpush.bf16.msra.mxu0 0
        %3001 = vmatpush.bf16.msra.mxu0 %v2934
        %3002 = vmatpush.bf16.msra.mxu0 %v2932
        %3003 = vmatmul.bf16.gmra.mxu0 %v2971
        %v3004 = vpop.f32.mrf.mxu0
        %v3005 = vadd.f32 %v2942, %v3004
        %v3006 = vpop.f32.mrf.mxu0
        %v3007 = vadd.f32 %v2947, %v3006
        %3008 = vmatmul.bf16.gmra.mxu0 %v2974
        %v3009 = vpop.f32.mrf.mxu0
        %v3010 = vadd.f32 %v2952, %v3009
        %v3011 = vpop.f32.mrf.mxu0
        %v3012 = vadd.f32 %v2957, %v3011
        %3013 = vdwg.mxu0
        %v3014 = vmax.f32 %v2986, 0.0
        %v3015 = vmax.f32 %v3005, 0.0
        %v3016 = vmax.f32 %v2988, 0.0
        %v3017 = vmax.f32 %v3007, 0.0
        %v3018 = vmax.f32 %v2991, 0.0
        %v3019 = vmax.f32 %v3010, 0.0
        %v3020 = vmax.f32 %v2993, 0.0
        %v3021 = vmax.f32 %v3012, 0.0
        %v3022 = vld [vmem:[%s9] sm:$0xf]
        %v3023 = vld [vmem:[%s9 + $0x4] sm:$0xf]
        %v3024 = vld [vmem:[%s9 + $0x8] sm:$0xf]
        %v3025 = vld [vmem:[%s9 + $0xc] sm:$0xf]
        %v3026 = vpack.c.bf16 %v3016, %v3014
        %v3027 = vpack.c.bf16 %v3017, %v3015
        %v3028 = vpack.c.bf16 %v3020, %v3018
        %v3029 = vpack.c.bf16 %v3021, %v3019
        %v3030 = vld [vmem:[%s11 + $0x280] sm:$0xff]
        %v3031 = vld [vmem:[%s11 + $0x288] sm:$0xff]
        %v3032 = vld [vmem:[%s11 + $0x290] sm:$0xff]
        %v3033 = vld [vmem:[%s11 + $0x298] sm:$0xff]
        %3035 = vset.pattern.permute.xlu0 0
        %3036 = vperm.xlu0 %3035, %v3030
        %v3037 = vpop.permute.xlu0 %3036
        %3040 = vset.pattern.permute.xlu0 0
        %3041 = vperm.xlu0 %3040, %v3031
        %v3042 = vpop.permute.xlu0 %3041
        %3045 = vset.pattern.permute.xlu0 0
        %3046 = vperm.xlu0 %3045, %v3032
        %v3047 = vpop.permute.xlu0 %3046
        %3050 = vset.pattern.permute.xlu0 0
        %3051 = vperm.xlu0 %3050, %v3033
        %v3052 = vpop.permute.xlu0 %3051
        %v3058 = vunpack.c.l.b16 %v3022
        %v3059 = vunpack.c.l.b16 %v3023
        %v3060 = vunpack.c.l.b16 %v3024
        %v3061 = vunpack.c.l.b16 %v3025
        %v3062 = vpack.c.b16 %v3059, %v3058
        %v3063 = vpack.c.b16 %v3061, %v3060
        %v3065 = vsel %vm2969, %v3062, 0
        %v3068 = vsel %vm2969, %v3063, 0
        %3070 = vmatpush.bf16.msra.mxu0 0
        %3071 = vmatpush.bf16.msra.mxu0 0
        %3072 = vmatpush.bf16.msra.mxu0 0
        %3073 = vmatpush.bf16.msra.mxu0 0
        %3074 = vmatpush.bf16.msra.mxu0 0
        %3075 = vmatpush.bf16.msra.mxu0 0
        %3076 = vmatpush.bf16.msra.mxu0 %v3028
        %3077 = vmatpush.bf16.msra.mxu0 %v3026
        %3078 = vmatmul.bf16.gmra.mxu0 %v3065
        %v3079 = vpop.f32.mrf.mxu0
        %v3080 = vadd.f32 %v3037, %v3079
        %v3081 = vpop.f32.mrf.mxu0
        %v3082 = vadd.f32 %v3042, %v3081
        %3083 = vmatmul.bf16.gmra.mxu0 %v3068
        %v3084 = vpop.f32.mrf.mxu0
        %v3085 = vadd.f32 %v3047, %v3084
        %v3086 = vpop.f32.mrf.mxu0
        %v3087 = vadd.f32 %v3052, %v3086
        %3088 = vdwg.mxu0
        %3089 = vmatpush.bf16.msra.mxu0 0
        %3090 = vmatpush.bf16.msra.mxu0 0
        %3091 = vmatpush.bf16.msra.mxu0 0
        %3092 = vmatpush.bf16.msra.mxu0 0
        %3093 = vmatpush.bf16.msra.mxu0 0
        %3094 = vmatpush.bf16.msra.mxu0 0
        %3095 = vmatpush.bf16.msra.mxu0 %v3029
        %3096 = vmatpush.bf16.msra.mxu0 %v3027
        %3097 = vmatmul.bf16.gmra.mxu0 %v3065
        %v3098 = vpop.f32.mrf.mxu0
        %v3099 = vadd.f32 %v3037, %v3098
        %v3100 = vpop.f32.mrf.mxu0
        %v3101 = vadd.f32 %v3042, %v3100
        %3102 = vmatmul.bf16.gmra.mxu0 %v3068
        %v3103 = vpop.f32.mrf.mxu0
        %v3104 = vadd.f32 %v3047, %v3103
        %v3105 = vpop.f32.mrf.mxu0
        %v3106 = vadd.f32 %v3052, %v3105
        %3107 = vdwg.mxu0
        %v3108 = vmax.f32 %v3080, 0.0
        %v3109 = vmax.f32 %v3099, 0.0
        %v3110 = vmax.f32 %v3082, 0.0
        %v3111 = vmax.f32 %v3101, 0.0
        %v3112 = vmax.f32 %v3085, 0.0
        %v3113 = vmax.f32 %v3104, 0.0
        %v3114 = vmax.f32 %v3087, 0.0
        %v3115 = vmax.f32 %v3106, 0.0
        %v3116 = vadd.f32 %v2899, %v3108
        %v3117 = vadd.f32 %v2918, %v3109
        %v3118 = vadd.f32 %v2901, %v3110
        %v3119 = vadd.f32 %v2920, %v3111
        %v3120 = vadd.f32 %v2904, %v3112
        %v3121 = vadd.f32 %v2923, %v3113
        %v3122 = vadd.f32 %v2906, %v3114
        %v3123 = vadd.f32 %v2925, %v3115
        %v3124 = vmax.f32 %v3116, 0.0
        %v3125 = vmax.f32 %v3117, 0.0
        %v3126 = vmax.f32 %v3118, 0.0
        %v3127 = vmax.f32 %v3119, 0.0
        %v3128 = vmax.f32 %v3120, 0.0
        %v3129 = vmax.f32 %v3121, 0.0
        %v3130 = vmax.f32 %v3122, 0.0
        %v3131 = vmax.f32 %v3123, 0.0
        %v3132 = vld [vmem:[%s10] sm:$0xf]
        %v3133 = vld [vmem:[%s10 + $0x4] sm:$0xf]
        %v3134 = vld [vmem:[%s10 + $0x8] sm:$0xf]
        %v3135 = vld [vmem:[%s10 + $0xc] sm:$0xf]
        %v3136 = vpack.c.bf16 %v3125, %v3124
        %v3137 = vpack.c.bf16 %v3127, %v3126
        %v3138 = vpack.c.bf16 %v3129, %v3128
        %v3139 = vpack.c.bf16 %v3131, %v3130
        %v3140 = vld [vmem:[%s11 + $0x2a0] sm:$0xff]
        %v3141 = vld [vmem:[%s11 + $0x2a8] sm:$0xff]
        %v3142 = vld [vmem:[%s11 + $0x2b0] sm:$0xff]
        %v3143 = vld [vmem:[%s11 + $0x2b8] sm:$0xff]
        %3145 = vset.pattern.permute.xlu0 0
        %3146 = vperm.xlu0 %3145, %v3140
        %v3147 = vpop.permute.xlu0 %3146
        %3150 = vset.pattern.permute.xlu0 0
        %3151 = vperm.xlu0 %3150, %v3141
        %v3152 = vpop.permute.xlu0 %3151
        %3155 = vset.pattern.permute.xlu0 0
        %3156 = vperm.xlu0 %3155, %v3142
        %v3157 = vpop.permute.xlu0 %3156
        %3160 = vset.pattern.permute.xlu0 0
        %3161 = vperm.xlu0 %3160, %v3143
        %v3162 = vpop.permute.xlu0 %3161
        %v3168 = vunpack.c.l.b16 %v3132
        %v3169 = vunpack.c.l.b16 %v3133
        %v3170 = vunpack.c.l.b16 %v3134
        %v3171 = vunpack.c.l.b16 %v3135
        %v3172 = vpack.c.b16 %v3169, %v3168
        %v3173 = vpack.c.b16 %v3171, %v3170
        %v3178 = vunpack.c.l.b16 %v3136
        %v3179 = vunpack.c.h.b16 %v3136
        %v3180 = vunpack.c.l.b16 %v3137
        %v3181 = vunpack.c.h.b16 %v3137
        %v3182 = vunpack.c.l.b16 %v3138
        %v3183 = vunpack.c.h.b16 %v3138
        %v3184 = vunpack.c.l.b16 %v3139
        %v3185 = vunpack.c.h.b16 %v3139
        %v3186 = vpack.c.b16 %v3180, %v3178
        %v3187 = vpack.c.b16 %v3181, %v3179
        %v3188 = vpack.c.b16 %v3184, %v3182
        %v3189 = vpack.c.b16 %v3185, %v3183
        %v3195 = vsel %vm2969, %v3172, 0
        %v3198 = vsel %vm2969, %v3173, 0
        %3200 = vmatpush.bf16.msra.mxu0 0
        %3201 = vmatpush.bf16.msra.mxu0 0
        %3202 = vmatpush.bf16.msra.mxu0 0
        %3203 = vmatpush.bf16.msra.mxu0 0
        %3204 = vmatpush.bf16.msra.mxu0 0
        %3205 = vmatpush.bf16.msra.mxu0 0
        %3206 = vmatpush.bf16.msra.mxu0 %v3188
        %3207 = vmatpush.bf16.msra.mxu0 %v3186
        %3208 = vmatmul.bf16.gmra.mxu0 %v3195
        %v3209 = vpop.f32.mrf.mxu0
        %v3210 = vadd.f32 %v3147, %v3209
        %v3211 = vpop.f32.mrf.mxu0
        %v3212 = vadd.f32 %v3152, %v3211
        %3213 = vmatmul.bf16.gmra.mxu0 %v3198
        %v3214 = vpop.f32.mrf.mxu0
        %v3215 = vadd.f32 %v3157, %v3214
        %v3216 = vpop.f32.mrf.mxu0
        %v3217 = vadd.f32 %v3162, %v3216
        %3218 = vdwg.mxu0
        %3219 = vmatpush.bf16.msra.mxu0 0
        %3220 = vmatpush.bf16.msra.mxu0 0
        %3221 = vmatpush.bf16.msra.mxu0 0
        %3222 = vmatpush.bf16.msra.mxu0 0
        %3223 = vmatpush.bf16.msra.mxu0 0
        %3224 = vmatpush.bf16.msra.mxu0 0
        %3225 = vmatpush.bf16.msra.mxu0 %v3189
        %3226 = vmatpush.bf16.msra.mxu0 %v3187
        %3227 = vmatmul.bf16.gmra.mxu0 %v3195
        %v3228 = vpop.f32.mrf.mxu0
        %v3229 = vadd.f32 %v3147, %v3228
        %v3230 = vpop.f32.mrf.mxu0
        %v3231 = vadd.f32 %v3152, %v3230
        %3232 = vmatmul.bf16.gmra.mxu0 %v3198
        %v3233 = vpop.f32.mrf.mxu0
        %v3234 = vadd.f32 %v3157, %v3233
        %v3235 = vpop.f32.mrf.mxu0
        %v3236 = vadd.f32 %v3162, %v3235
        %3237 = vdwg.mxu0
        %3238 = vst [vmem:[%s431] sm:$0xff] %v2198
        %3239 = vst [vmem:[%s431 + $0x8] sm:$0xff] %v2199
        %3240 = vst [vmem:[%s431 + $0x10] sm:$0xff] %v2200
        %3241 = vst [vmem:[%s431 + $0x18] sm:$0xff] %v2201
        %3242 = vst [vmem:[%s431 + $0x20] sm:$0xff] %v2202
        %3243 = vst [vmem:[%s431 + $0x28] sm:$0xff] %v2203
        %3244 = vst [vmem:[%s431 + $0x30] sm:$0xff] %v2204
        %3245 = vst [vmem:[%s431 + $0x38] sm:$0xff] %v2205
        %3246 = vst [vmem:[%s431 + $0x40] sm:$0xff] %v2206
        %3247 = vst [vmem:[%s431 + $0x48] sm:$0xff] %v2207
        %3248 = vst [vmem:[%s431 + $0x50] sm:$0xff] %v2208
        %3249 = vst [vmem:[%s431 + $0x58] sm:$0xff] %v2209
        %3250 = vst [vmem:[%s431 + $0x60] sm:$0xff] %v2210
        %3251 = vst [vmem:[%s431 + $0x68] sm:$0xff] %v2211
        %3252 = vst [vmem:[%s431 + $0x70] sm:$0xff] %v2212
        %3253 = vst [vmem:[%s431 + $0x78] sm:$0xff] %v2213
        %3254 = vst [vmem:[%s431 + $0x80] sm:$0xff] %v2801
        %3255 = vst [vmem:[%s431 + $0x88] sm:$0xff] %v2802
        %3256 = vst [vmem:[%s431 + $0x90] sm:$0xff] %v2803
        %3257 = vst [vmem:[%s431 + $0x98] sm:$0xff] %v2804
        %3258 = vst [vmem:[%s431 + $0xa0] sm:$0xff] %v2805
        %3259 = vst [vmem:[%s431 + $0xa8] sm:$0xff] %v2806
        %3260 = vst [vmem:[%s431 + $0xb0] sm:$0xff] %v2807
        %3261 = vst [vmem:[%s431 + $0xb8] sm:$0xff] %v2808
        %3262 = vst [vmem:[%s431 + $0xc0] sm:$0xff] %v3136
        %3263 = vst [vmem:[%s431 + $0xc8] sm:$0xff] %v3137
        %3264 = vst [vmem:[%s431 + $0xd0] sm:$0xff] %v3138
        %3265 = vst [vmem:[%s431 + $0xd8] sm:$0xff] %v3139
        %v3266 = vpack.c.bf16 %v3229, %v3210
        %v3267 = vpack.c.bf16 %v3231, %v3212
        %v3268 = vpack.c.bf16 %v3234, %v3215
        %v3269 = vpack.c.bf16 %v3236, %v3217
        %3270 = vst [vmem:[%s431 + $0xe0] sm:$0xff] %v3266
        %3271 = vst [vmem:[%s431 + $0xe8] sm:$0xff] %v3267
        %3272 = vst [vmem:[%s431 + $0xf0] sm:$0xff] %v3268
        %3273 = vst [vmem:[%s431 + $0xf8] sm:$0xff] %v3269
        %s3274 = sand.u32 %s307, 1
        %s3275 = scalar_lea.sflag [#allocation3], %s3274
        %s3276 = sand.u32 %s307, 1
        %s3277 = smul.addr %s3276, 256
        %s3278 = scalar_lea.vmem [#allocation2], %s3277
        // Predicated region
        $region69: #{tpu_custom_call.1} parent=67 // pred_check
          %p3279 = pneg %p317
        $region70: #{tpu_custom_call.1} parent=67 // pred_check_branch
          %3281 = sbr.rel (%p3279) target = $region72
        $region71: #{tpu_custom_call.1} parent=67 // pred_region
          %s3282 = smul.u32 2, %s31
          %3284 = vsyncadd %s3275, 0
          %s3285 = smul.addr %s30, 64
          %s3286 = sadd.s32 %s3282, %s3285
          %s3287 = smul.addr %s3286, 4
          %s3288 = scalar_lea.hbm %s12, %s3287
          %s3289 = sshll.u32 %s3278, 4
          %s3290 = int_to_ptr.vmem [resolvable:$true] %s3289
          %s3291 = sshll.u32 %s3288, 4
          %s3292 = int_to_ptr.hbm [resolvable:$true] %s3291
          %3297 = dma.vmem_to_hbm [thread:$0]  %s3290, 4096, %s3292, %s3275, 128, 128, 8
        $region72: #{tpu_custom_call.1} parent=67 // pred_fallthru
          _
      $region68: #{tpu_custom_call.1} parent=5 // pred_fallthru
        _
      %p3298 = scmp.le.s32.totalorder 2, %s21
      // Predicated region
      $region73: #{tpu_custom_call.1} parent=5 // pred_check
        %p3299 = pneg %p3298
      $region74: #{tpu_custom_call.1} parent=5 // pred_check_branch
        %3301 = sbr.rel (%p3299) target = $region76
      $region75: #{tpu_custom_call.1} parent=5 // pred_region
        %s3302 = ssub.s32 %s21, 2
        // Predicated region
        $region77: #{tpu_custom_call.1} parent=75 // pred_check
          %p3303 = pneg %p323
        $region78: #{tpu_custom_call.1} parent=75 // pred_check_branch
          %3305 = sbr.rel (%p3303) target = $region80
        $region79: #{tpu_custom_call.1} parent=75 // pred_region
          %s3306 = sand.u32 %s308, 1
          %s3307 = scalar_lea.sflag [#allocation3], %s3306
          %s3308 = sand.u32 %s308, 1
          %s3309 = smul.addr %s3308, 256
          %s3310 = scalar_lea.vmem [#allocation2], %s3309
          %3312 = dma.done %s3307, 4096
        $region80: #{tpu_custom_call.1} parent=75 // pred_fallthru
          _
      $region76: #{tpu_custom_call.1} parent=5 // pred_fallthru
        _
    $region6: #{tpu_custom_call.1} parent=1 // loop_footer
      %s25 = sadd.s32 1, %s21
    $region7: #{tpu_custom_call.1} parent=1 // loop_footer_branch
      %20 = sbr.rel target = $region3
    $region8: #{tpu_custom_call.1} parent=1 // loop_exit
      _
    %3313 = vsyncpa [#allocation3], 1
    %s3314 = scalar_lea.sflag [#allocation3], 1
    %3315 = vsyncpa %s3314, 1

</llo_original>
